<compile_context>
chip_gen: v6e
topology: v6e:2x2x1
jax: 0.10.0
libtpu: 0.0.40
codegen_flags: <defaults>
</compile_context>

<pallas_src>
import jax
import jax.numpy as jnp
from jax import lax
from jax.experimental import pallas as pl
from jax.experimental.pallas import tpu as pltpu


def _round_up(n, m):
    return ((n + m - 1) // m) * m


def _vmem_capacity_bytes():
    try:
        info = pltpu.get_tpu_info()
        for name in ("vmem_capacity_bytes", "vmem_size_bytes", "vmem_bytes"):
            v = getattr(info, name, None)
            if v:
                return int(v)
    except Exception:
        pass
    return 64 << 20  # conservative (v7x-sized) default


def _pick_tiling(batch):
    """Returns (TB, vmem_limit_bytes). TB is a multiple of 16 (bf16 sublanes)."""
    vmem = _vmem_capacity_bytes()
    if vmem >= (96 << 20):
        # v5e / v6e: 128 MiB VMEM, single TensorCore -> big tiles.
        tb_max, vmem_limit, want_even_steps = 1024, 100 << 20, False
    else:
        # v7x: 64 MiB VMEM/TC, 2 TCs -> keep grid-step count even for balance.
        tb_max, vmem_limit, want_even_steps = 512, 52 << 20, True

    if want_even_steps and batch > 16:
        steps = 2 * pl.cdiv(batch, 2 * tb_max)          # even, >= 2
        tb = _round_up(pl.cdiv(batch, steps), 16)
    else:
        tb = min(tb_max, _round_up(max(batch, 1), 16))
    return tb, vmem_limit


def mlp_kernel(x_ref, w1_ref, b1_ref, w2_ref, b2_ref, w3_ref, b3_ref, o_ref):
    # fc1 + relu : (TB, 10000)bf16 @ (10000, 16)bf16 -> f32 accumulation (MXU)
    h1 = jnp.dot(x_ref[...], w1_ref[...], preferred_element_type=jnp.float32)
    h1 = jnp.maximum(h1 + b1_ref[...], 0.0)
    # fc2 + relu : (TB, 16) @ (16, 16), f32
    h2 = jnp.dot(h1, w2_ref[...], preferred_element_type=jnp.float32)
    h2 = jnp.maximum(h2 + b2_ref[...], 0.0)
    # fc3 : contract the 16 features against the (1, 16) weight row, producing
    # a lane-dense (1, TB) result directly (batch on the lane axis).
    z = lax.dot_general(
        w3_ref[...], h2,
        dimension_numbers=(((1,), (1,)), ((), ())),
        preferred_element_type=jnp.float32) + b3_ref[...]          # (1, TB)
    sig = pl.reciprocal(1.0 + jnp.exp(-z), approx=True)            # sigmoid
    o_ref[...] = sig.reshape(o_ref.shape)                          # (1, 1, TB)


def mlp_forward(x, w1, b1, w2, b2, w3, b3):
    """x: (B, 10000) f32/bf16.  Params in PyTorch nn.Linear layout:
    w1 (16, 10000), b1 (16,), w2 (16, 16), b2 (16,), w3 (1, 16), b3 (1,)."""
    B, D = x.shape
    H = w1.shape[0]
    TB, vmem_limit = _pick_tiling(B)

    # bf16 stream (halves HBM bytes of the only large operand).
    x = x.astype(jnp.bfloat16)
    # Pre-transpose / layout-prep the tiny resident params once, outside.
    w1t = jnp.transpose(w1).astype(jnp.bfloat16)     # (10000, 16)
    w2t = jnp.transpose(w2).astype(jnp.float32)      # (16, 16)
    w3r = w3.astype(jnp.float32)                     # (1, 16) already lane-dense
    b1r = b1.reshape(1, H).astype(jnp.float32)
    b2r = b2.reshape(1, H).astype(jnp.float32)
    b3r = b3.reshape(1, 1).astype(jnp.float32)

    # Only the tiny B < TB case gets padded; otherwise Pallas handles the
    # ragged last batch tile (no full-size copy of x).
    if B < TB:
        x = jnp.pad(x, ((0, TB - B), (0, 0)))
    rows = x.shape[0]
    num_tiles = pl.cdiv(rows, TB)

    out = pl.pallas_call(
        mlp_kernel,
        out_shape=jax.ShapeDtypeStruct((num_tiles, 1, TB), jnp.float32),
        grid=(num_tiles,),
        in_specs=[
            # x: streamed batch tiles (auto double-buffered by the pipeline).
            pl.BlockSpec((TB, D), lambda i: (i, 0)),
            # weights/biases: constant block index -> fetched once, resident.
            pl.BlockSpec((D, H), lambda i: (0, 0)),
            pl.BlockSpec((1, H), lambda i: (0, 0)),
            pl.BlockSpec((H, H), lambda i: (0, 0)),
            pl.BlockSpec((1, H), lambda i: (0, 0)),
            pl.BlockSpec((1, H), lambda i: (0, 0)),
            pl.BlockSpec((1, 1), lambda i: (0, 0)),
        ],
        # Lane-dense output: one (1, 1, TB) row per grid step.
        out_specs=pl.BlockSpec((1, 1, TB), lambda i: (i, 0, 0)),
        compiler_params=pltpu.CompilerParams(
            dimension_semantics=("parallel",),   # batch tiles across TCs (v7x)
            vmem_limit_bytes=vmem_limit,
        ),
    )(x, w1t, b1r, w2t, b2r, w3r, b3r)

    return out.reshape(-1, 1)[:B]


def init_params(key):
    # Mimics nn.Linear init: uniform(-1/sqrt(fan_in), 1/sqrt(fan_in)),
    # PyTorch layout (out_features, in_features) for weights.
    def linear(k, fan_in, fan_out):
        kw, kb = jax.random.split(k)
        bound = 1.0 / jnp.sqrt(fan_in)
        w = jax.random.uniform(kw, (fan_out, fan_in), jnp.float32, -bound, bound)
        b = jax.random.uniform(kb, (fan_out,), jnp.float32, -bound, bound)
        return w, b

    k1, k2, k3 = jax.random.split(key, 3)
    w1, b1 = linear(k1, 10000, 16)   # (16, 10000), (16,)
    w2, b2 = linear(k2, 16, 16)      # (16, 16),    (16,)
    w3, b3 = linear(k3, 16, 1)       # (1, 16),     (1,)
    return w1, b1, w2, b2, w3, b3


if __name__ == "__main__":
    key = jax.random.PRNGKey(0)
    kx, kp = jax.random.split(key)

    B = 2
    x = jax.random.normal(kx, (B, 10000), jnp.float32)
    w1, b1, w2, b2, w3, b3 = init_params(kp)

    out = mlp_forward(x, w1, b1, w2, b2, w3, b3)
    out = jax.block_until_ready(out)

    # Plain-JAX f32 reference (same math as the PyTorch forward).
    h1 = jnp.maximum(x @ w1.T + b1, 0.0)
    h2 = jnp.maximum(h1 @ w2.T + b2, 0.0)
    ref = jax.nn.sigmoid(h2 @ w3.T + b3).reshape(-1, 1)

    assert out.shape == (B, 1)
    # bf16 input stream + approx reciprocal -> loosened tolerance.
    assert jnp.allclose(out, ref, atol=1e-2, rtol=1e-2), float(
        jnp.max(jnp.abs(out - ref)))

    print("KERNEL_OK")
</pallas_src>

<mosaic_0001>
module attributes {stable_mosaic.version = 11 : i64} {
  func.func @mlp_kernel(%arg0: i32, %arg1: memref<16x10000xbf16, #tpu.memory_space<vmem>>, %arg2: memref<10000x16xbf16, #tpu.memory_space<vmem>>, %arg3: memref<1x16xf32, #tpu.memory_space<vmem>>, %arg4: memref<16x16xf32, #tpu.memory_space<vmem>>, %arg5: memref<1x16xf32, #tpu.memory_space<vmem>>, %arg6: memref<1x16xf32, #tpu.memory_space<vmem>>, %arg7: memref<1x1xf32, #tpu.memory_space<vmem>>, %arg8: memref<1x1x16xf32, #tpu.memory_space<vmem>>) attributes {dimension_semantics = [#tpu.dimension_semantics<parallel>], iteration_bounds = array<i64: 1>, scalar_prefetch = 0 : i64, scratch_operands = 0 : i64, tpu.core_type = #tpu.core_type<tc>, window_params = [{transform_indices = @transform_0, window_bounds = array<i64: 16, 10000>}, {pipeline_mode = #tpu.pipeline_mode<synchronous>, transform_indices = @transform_1, window_bounds = array<i64: 10000, 16>}, {pipeline_mode = #tpu.pipeline_mode<synchronous>, transform_indices = @transform_2, window_bounds = array<i64: 1, 16>}, {pipeline_mode = #tpu.pipeline_mode<synchronous>, transform_indices = @transform_3, window_bounds = array<i64: 16, 16>}, {pipeline_mode = #tpu.pipeline_mode<synchronous>, transform_indices = @transform_4, window_bounds = array<i64: 1, 16>}, {pipeline_mode = #tpu.pipeline_mode<synchronous>, transform_indices = @transform_5, window_bounds = array<i64: 1, 16>}, {pipeline_mode = #tpu.pipeline_mode<synchronous>, transform_indices = @transform_6, window_bounds = array<i64: 1, 1>}, {transform_indices = @transform_7, window_bounds = array<i64: 1, 1, 16>}]} {
    %c0 = arith.constant 0 : index
    %c0_0 = arith.constant 0 : index
    %0 = vector.load %arg1[%c0, %c0_0] : memref<16x10000xbf16, #tpu.memory_space<vmem>>, vector<16x10000xbf16>
    %c0_1 = arith.constant 0 : index
    %c0_2 = arith.constant 0 : index
    %1 = vector.load %arg2[%c0_1, %c0_2] : memref<10000x16xbf16, #tpu.memory_space<vmem>>, vector<10000x16xbf16>
    %cst = arith.constant dense<0.000000e+00> : vector<16x16xf32>
    %2 = tpu.matmul %0, %1, %cst {dimension_numbers = #tpu.dot_dimension_numbers<[1], [0], [0], [1], [0, 0, 1, 1], [], []>} : vector<16x10000xbf16>, vector<10000x16xbf16>, vector<16x16xf32> -> vector<16x16xf32>
    %c0_3 = arith.constant 0 : index
    %c0_4 = arith.constant 0 : index
    %3 = vector.load %arg3[%c0_3, %c0_4] : memref<1x16xf32, #tpu.memory_space<vmem>>, vector<1x16xf32>
    %4 = vector.broadcast %3 : vector<1x16xf32> to vector<16x16xf32>
    %5 = arith.addf %2, %4 : vector<16x16xf32>
    %cst_5 = arith.constant 0.000000e+00 : f32
    %6 = vector.broadcast %cst_5 : f32 to vector<16x16xf32>
    %7 = arith.maximumf %5, %6 : vector<16x16xf32>
    %c0_6 = arith.constant 0 : index
    %c0_7 = arith.constant 0 : index
    %8 = vector.load %arg4[%c0_6, %c0_7] : memref<16x16xf32, #tpu.memory_space<vmem>>, vector<16x16xf32>
    %cst_8 = arith.constant dense<0.000000e+00> : vector<16x16xf32>
    %9 = tpu.matmul %7, %8, %cst_8 {dimension_numbers = #tpu.dot_dimension_numbers<[1], [0], [0], [1], [0, 0, 1, 1], [], []>} : vector<16x16xf32>, vector<16x16xf32>, vector<16x16xf32> -> vector<16x16xf32>
    %c0_9 = arith.constant 0 : index
    %c0_10 = arith.constant 0 : index
    %10 = vector.load %arg5[%c0_9, %c0_10] : memref<1x16xf32, #tpu.memory_space<vmem>>, vector<1x16xf32>
    %11 = vector.broadcast %10 : vector<1x16xf32> to vector<16x16xf32>
    %12 = arith.addf %9, %11 : vector<16x16xf32>
    %cst_11 = arith.constant 0.000000e+00 : f32
    %13 = vector.broadcast %cst_11 : f32 to vector<16x16xf32>
    %14 = arith.maximumf %12, %13 : vector<16x16xf32>
    %c0_12 = arith.constant 0 : index
    %c0_13 = arith.constant 0 : index
    %15 = vector.load %arg6[%c0_12, %c0_13] : memref<1x16xf32, #tpu.memory_space<vmem>>, vector<1x16xf32>
    %cst_14 = arith.constant dense<0.000000e+00> : vector<1x16xf32>
    %16 = tpu.matmul %15, %14, %cst_14 {dimension_numbers = #tpu.dot_dimension_numbers<[1], [1], [0], [0], [0, 0, 1, 0], [], []>} : vector<1x16xf32>, vector<16x16xf32>, vector<1x16xf32> -> vector<1x16xf32>
    %c0_15 = arith.constant 0 : index
    %c0_16 = arith.constant 0 : index
    %17 = vector.load %arg7[%c0_15, %c0_16] : memref<1x1xf32, #tpu.memory_space<vmem>>, vector<1x1xf32>
    %18 = vector.broadcast %17 : vector<1x1xf32> to vector<1x16xf32>
    %19 = arith.addf %16, %18 : vector<1x16xf32>
    %cst_17 = arith.constant 0.000000e+00 : f32
    %20 = vector.broadcast %cst_17 : f32 to vector<1x16xf32>
    %21 = arith.subf %20, %19 : vector<1x16xf32>
    %22 = math.exp %21 : vector<1x16xf32>
    %cst_18 = arith.constant 1.000000e+00 : f32
    %23 = vector.broadcast %cst_18 : f32 to vector<1x16xf32>
    %24 = arith.addf %23, %22 : vector<1x16xf32>
    %25 = tpu.reciprocal %24 {approx = true} : vector<1x16xf32> -> vector<1x16xf32>
    %26 = vector.shape_cast %25 : vector<1x16xf32> to vector<1x1x16xf32>
    %c0_19 = arith.constant 0 : index
    %c0_20 = arith.constant 0 : index
    %c0_21 = arith.constant 0 : index
    %27 = vector.load %arg8[%c0_19, %c0_20, %c0_21] : memref<1x1x16xf32, #tpu.memory_space<vmem>>, vector<1x1x16xf32>
    tpu.vector_store %arg8[%c0_19, %c0_20, %c0_21], %26 {strides = array<i32>} : memref<1x1x16xf32, #tpu.memory_space<vmem>>, vector<1x1x16xf32>,
    return
  }
  func.func @transform_0(%arg0: i32) -> (i32, i32) {
    %c0_i32 = arith.constant 0 : i32
    %c0_i32_0 = arith.constant 0 : i32
    return %arg0, %c0_i32 : i32, i32
  }
  func.func @transform_1(%arg0: i32) -> (i32, i32) {
    %c0_i32 = arith.constant 0 : i32
    %c0_i32_0 = arith.constant 0 : i32
    %c0_i32_1 = arith.constant 0 : i32
    return %c0_i32, %c0_i32_0 : i32, i32
  }
  func.func @transform_2(%arg0: i32) -> (i32, i32) {
    %c0_i32 = arith.constant 0 : i32
    %c0_i32_0 = arith.constant 0 : i32
    %c0_i32_1 = arith.constant 0 : i32
    return %c0_i32, %c0_i32_0 : i32, i32
  }
  func.func @transform_3(%arg0: i32) -> (i32, i32) {
    %c0_i32 = arith.constant 0 : i32
    %c0_i32_0 = arith.constant 0 : i32
    %c0_i32_1 = arith.constant 0 : i32
    return %c0_i32, %c0_i32_0 : i32, i32
  }
  func.func @transform_4(%arg0: i32) -> (i32, i32) {
    %c0_i32 = arith.constant 0 : i32
    %c0_i32_0 = arith.constant 0 : i32
    %c0_i32_1 = arith.constant 0 : i32
    return %c0_i32, %c0_i32_0 : i32, i32
  }
  func.func @transform_5(%arg0: i32) -> (i32, i32) {
    %c0_i32 = arith.constant 0 : i32
    %c0_i32_0 = arith.constant 0 : i32
    %c0_i32_1 = arith.constant 0 : i32
    return %c0_i32, %c0_i32_0 : i32, i32
  }
  func.func @transform_6(%arg0: i32) -> (i32, i32) {
    %c0_i32 = arith.constant 0 : i32
    %c0_i32_0 = arith.constant 0 : i32
    %c0_i32_1 = arith.constant 0 : i32
    return %c0_i32, %c0_i32_0 : i32, i32
  }
  func.func @transform_7(%arg0: i32) -> (i32, i32, i32) {
    %c0_i32 = arith.constant 0 : i32
    %c0_i32_0 = arith.constant 0 : i32
    %c0_i32_1 = arith.constant 0 : i32
    return %arg0, %c0_i32, %c0_i32_0 : i32, i32, i32
  }
}

</mosaic_0001>

<llo_original>
// kernel: tpu_custom_call.1
$region0: #{tpu_custom_call.1}
  #allocation0 [shape = 'u32[]', space=smem, size = 0x4, offset = 0x4, fixed_abs, tag = 'smem constant byte address 0x4 - core index']
  #allocation1 [shape = 'u32[144,128]{1,0:T(1,128)}', space=vmem, size = 0x12000, scoped, tag = 'internal scratch']
  #allocation2 [shape = 'f32[1,1]{1,0:T(1,128)S(1)}', space=vmem, size = 0x200, scoped, tag = 'scoped memory for tpu_custom_call.1']
  %s0 = inlined_call_operand.vmem [shape: bf16[16,10000], index: 0, kind: input, shape index: {}]
  %s1 = inlined_call_operand.vmem [shape: bf16[10000,16], index: 1, kind: input, shape index: {}]
  %s2 = inlined_call_operand.vmem [shape: f32[1,16], index: 2, kind: input, shape index: {}]
  %s3 = inlined_call_operand.vmem [shape: f32[16,16], index: 3, kind: input, shape index: {}]
  %s4 = inlined_call_operand.vmem [shape: f32[1,16], index: 4, kind: input, shape index: {}]
  %s5 = inlined_call_operand.vmem [shape: f32[1,16], index: 5, kind: input, shape index: {}]
  %s6 = inlined_call_operand.<no memory space> [shape: f32[1,1], index: 6, kind: input, shape index: {}]
  %s7 = inlined_call_operand.hbm [shape: f32[1,1,16], index: 7, kind: output, shape index: {}]
  %s8 = sld [smem:[#allocation0]]
  $region38: #{tpu_custom_call.1} parent=0
    _
  %s10 = ssub.s32 1, %s8
  %s11 = scalar_select 0, %s10, %s8
  %v12 = vstv %s6
  %13 = vst [vmem:[#allocation2] sm:$0x1] %v12
  $region1: #{tpu_custom_call.1} parent=0
    #allocation3 [shape = 'u8[512]{0}', space=vmem, size = 0x400, scoped, tag = 'output window, operand 0, single buffered']
    #allocation4 [shape = 's32[1]{0}', space=sflag, size = 0x4, scoped, tag = 'scoped memory for tpu_custom_call.1']
    %14 = vsyncpa [#allocation4], 0
    // Predicated region
    $region2: #{tpu_custom_call.1} parent=1 // pred_check
      _
    $region3: #{tpu_custom_call.1} parent=1 // pred_check_branch
      %16 = sbr.rel (0) target = $region5
    $region4: #{tpu_custom_call.1} parent=1 // pred_region
      _
    $region5: #{tpu_custom_call.1} parent=1 // pred_fallthru
      _
    // Predicated region
    $region6: #{tpu_custom_call.1} parent=1 // pred_check
      _
    $region7: #{tpu_custom_call.1} parent=1 // pred_check_branch
      %18 = sbr.rel (0) target = $region9
    $region8: #{tpu_custom_call.1} parent=1 // pred_region
      _
    $region9: #{tpu_custom_call.1} parent=1 // pred_fallthru
      _
    // Predicated region
    $region10: #{tpu_custom_call.1} parent=1 // pred_check
      _
    $region11: #{tpu_custom_call.1} parent=1 // pred_check_branch
      %20 = sbr.rel (0) target = $region13
    $region12: #{tpu_custom_call.1} parent=1 // pred_region
      _
    $region13: #{tpu_custom_call.1} parent=1 // pred_fallthru
      _
    // Predicated region
    $region14: #{tpu_custom_call.1} parent=1 // pred_check
      _
    $region15: #{tpu_custom_call.1} parent=1 // pred_check_branch
      %22 = sbr.rel (0) target = $region17
    $region16: #{tpu_custom_call.1} parent=1 // pred_region
      _
    $region17: #{tpu_custom_call.1} parent=1 // pred_fallthru
      _
    // Predicated region
    $region18: #{tpu_custom_call.1} parent=1 // pred_check
      _
    $region19: #{tpu_custom_call.1} parent=1 // pred_check_branch
      %24 = sbr.rel (0) target = $region21
    $region20: #{tpu_custom_call.1} parent=1 // pred_region
      _
    $region21: #{tpu_custom_call.1} parent=1 // pred_fallthru
      _
    // Predicated region
    $region22: #{tpu_custom_call.1} parent=1 // pred_check
      _
    $region23: #{tpu_custom_call.1} parent=1 // pred_check_branch
      %26 = sbr.rel (0) target = $region25
    $region24: #{tpu_custom_call.1} parent=1 // pred_region
      _
    $region25: #{tpu_custom_call.1} parent=1 // pred_fallthru
      _
    // Predicated region
    $region26: #{tpu_custom_call.1} parent=1 // pred_check
      _
    $region27: #{tpu_custom_call.1} parent=1 // pred_check_branch
      %28 = sbr.rel (0) target = $region29
    $region28: #{tpu_custom_call.1} parent=1 // pred_region
      _
    $region29: #{tpu_custom_call.1} parent=1 // pred_fallthru
      _
    %v30 = vld [vmem:[%s0] sm:$0xff]
    %v31 = vld [vmem:[%s0 + $0x8] sm:$0xff]
    %v32 = vld [vmem:[%s0 + $0x10] sm:$0xff]
    %v33 = vld [vmem:[%s0 + $0x18] sm:$0xff]
    %v34 = vld [vmem:[%s0 + $0x20] sm:$0xff]
    %v35 = vld [vmem:[%s0 + $0x28] sm:$0xff]
    %v36 = vld [vmem:[%s0 + $0x30] sm:$0xff]
    %v37 = vld [vmem:[%s0 + $0x38] sm:$0xff]
    %v38 = vld [vmem:[%s0 + $0x40] sm:$0xff]
    %v39 = vld [vmem:[%s0 + $0x48] sm:$0xff]
    %v40 = vld [vmem:[%s0 + $0x50] sm:$0xff]
    %v41 = vld [vmem:[%s0 + $0x58] sm:$0xff]
    %v42 = vld [vmem:[%s0 + $0x60] sm:$0xff]
    %v43 = vld [vmem:[%s0 + $0x68] sm:$0xff]
    %v44 = vld [vmem:[%s0 + $0x70] sm:$0xff]
    %v45 = vld [vmem:[%s0 + $0x78] sm:$0xff]
    %v46 = vld [vmem:[%s0 + $0x80] sm:$0xff]
    %v47 = vld [vmem:[%s0 + $0x88] sm:$0xff]
    %v48 = vld [vmem:[%s0 + $0x90] sm:$0xff]
    %v49 = vld [vmem:[%s0 + $0x98] sm:$0xff]
    %v50 = vld [vmem:[%s0 + $0xa0] sm:$0xff]
    %v51 = vld [vmem:[%s0 + $0xa8] sm:$0xff]
    %v52 = vld [vmem:[%s0 + $0xb0] sm:$0xff]
    %v53 = vld [vmem:[%s0 + $0xb8] sm:$0xff]
    %v54 = vld [vmem:[%s0 + $0xc0] sm:$0xff]
    %v55 = vld [vmem:[%s0 + $0xc8] sm:$0xff]
    %v56 = vld [vmem:[%s0 + $0xd0] sm:$0xff]
    %v57 = vld [vmem:[%s0 + $0xd8] sm:$0xff]
    %v58 = vld [vmem:[%s0 + $0xe0] sm:$0xff]
    %v59 = vld [vmem:[%s0 + $0xe8] sm:$0xff]
    %v60 = vld [vmem:[%s0 + $0xf0] sm:$0xff]
    %v61 = vld [vmem:[%s0 + $0xf8] sm:$0xff]
    %v62 = vld [vmem:[%s0 + $0x100] sm:$0xff]
    %v63 = vld [vmem:[%s0 + $0x108] sm:$0xff]
    %v64 = vld [vmem:[%s0 + $0x110] sm:$0xff]
    %v65 = vld [vmem:[%s0 + $0x118] sm:$0xff]
    %v66 = vld [vmem:[%s0 + $0x120] sm:$0xff]
    %v67 = vld [vmem:[%s0 + $0x128] sm:$0xff]
    %v68 = vld [vmem:[%s0 + $0x130] sm:$0xff]
    %v69 = vld [vmem:[%s0 + $0x138] sm:$0xf]
    %v70 = vld [vmem:[%s0 + $0x13c] sm:$0xff]
    %v71 = vld [vmem:[%s0 + $0x144] sm:$0xff]
    %v72 = vld [vmem:[%s0 + $0x14c] sm:$0xff]
    %v73 = vld [vmem:[%s0 + $0x154] sm:$0xff]
    %v74 = vld [vmem:[%s0 + $0x15c] sm:$0xff]
    %v75 = vld [vmem:[%s0 + $0x164] sm:$0xff]
    %v76 = vld [vmem:[%s0 + $0x16c] sm:$0xff]
    %v77 = vld [vmem:[%s0 + $0x174] sm:$0xff]
    %v78 = vld [vmem:[%s0 + $0x17c] sm:$0xff]
    %v79 = vld [vmem:[%s0 + $0x184] sm:$0xff]
    %v80 = vld [vmem:[%s0 + $0x18c] sm:$0xff]
    %v81 = vld [vmem:[%s0 + $0x194] sm:$0xff]
    %v82 = vld [vmem:[%s0 + $0x19c] sm:$0xff]
    %v83 = vld [vmem:[%s0 + $0x1a4] sm:$0xff]
    %v84 = vld [vmem:[%s0 + $0x1ac] sm:$0xff]
    %v85 = vld [vmem:[%s0 + $0x1b4] sm:$0xff]
    %v86 = vld [vmem:[%s0 + $0x1bc] sm:$0xff]
    %v87 = vld [vmem:[%s0 + $0x1c4] sm:$0xff]
    %v88 = vld [vmem:[%s0 + $0x1cc] sm:$0xff]
    %v89 = vld [vmem:[%s0 + $0x1d4] sm:$0xff]
    %v90 = vld [vmem:[%s0 + $0x1dc] sm:$0xff]
    %v91 = vld [vmem:[%s0 + $0x1e4] sm:$0xff]
    %v92 = vld [vmem:[%s0 + $0x1ec] sm:$0xff]
    %v93 = vld [vmem:[%s0 + $0x1f4] sm:$0xff]
    %v94 = vld [vmem:[%s0 + $0x1fc] sm:$0xff]
    %v95 = vld [vmem:[%s0 + $0x204] sm:$0xff]
    %v96 = vld [vmem:[%s0 + $0x20c] sm:$0xff]
    %v97 = vld [vmem:[%s0 + $0x214] sm:$0xff]
    %v98 = vld [vmem:[%s0 + $0x21c] sm:$0xff]
    %v99 = vld [vmem:[%s0 + $0x224] sm:$0xff]
    %v100 = vld [vmem:[%s0 + $0x22c] sm:$0xff]
    %v101 = vld [vmem:[%s0 + $0x234] sm:$0xff]
    %v102 = vld [vmem:[%s0 + $0x23c] sm:$0xff]
    %v103 = vld [vmem:[%s0 + $0x244] sm:$0xff]
    %v104 = vld [vmem:[%s0 + $0x24c] sm:$0xff]
    %v105 = vld [vmem:[%s0 + $0x254] sm:$0xff]
    %v106 = vld [vmem:[%s0 + $0x25c] sm:$0xff]
    %v107 = vld [vmem:[%s0 + $0x264] sm:$0xff]
    %v108 = vld [vmem:[%s0 + $0x26c] sm:$0xff]
    %v109 = vld [vmem:[%s0 + $0x274] sm:$0xf]
    %v110 = vld [vmem:[%s1] sm:$0xf]
    %v111 = vld [vmem:[%s1 + $0x4] sm:$0xf]
    %v112 = vld [vmem:[%s1 + $0x8] sm:$0xf]
    %v113 = vld [vmem:[%s1 + $0xc] sm:$0xf]
    %v114 = vld [vmem:[%s1 + $0x10] sm:$0xf]
    %v115 = vld [vmem:[%s1 + $0x14] sm:$0xf]
    %v116 = vld [vmem:[%s1 + $0x18] sm:$0xf]
    %v117 = vld [vmem:[%s1 + $0x1c] sm:$0xf]
    %v118 = vld [vmem:[%s1 + $0x20] sm:$0xf]
    %v119 = vld [vmem:[%s1 + $0x24] sm:$0xf]
    %v120 = vld [vmem:[%s1 + $0x28] sm:$0xf]
    %v121 = vld [vmem:[%s1 + $0x2c] sm:$0xf]
    %v122 = vld [vmem:[%s1 + $0x30] sm:$0xf]
    %v123 = vld [vmem:[%s1 + $0x34] sm:$0xf]
    %v124 = vld [vmem:[%s1 + $0x38] sm:$0xf]
    %v125 = vld [vmem:[%s1 + $0x3c] sm:$0xf]
    %v126 = vld [vmem:[%s1 + $0x40] sm:$0xf]
    %v127 = vld [vmem:[%s1 + $0x44] sm:$0xf]
    %v128 = vld [vmem:[%s1 + $0x48] sm:$0xf]
    %v129 = vld [vmem:[%s1 + $0x4c] sm:$0xf]
    %v130 = vld [vmem:[%s1 + $0x50] sm:$0xf]
    %v131 = vld [vmem:[%s1 + $0x54] sm:$0xf]
    %v132 = vld [vmem:[%s1 + $0x58] sm:$0xf]
    %v133 = vld [vmem:[%s1 + $0x5c] sm:$0xf]
    %v134 = vld [vmem:[%s1 + $0x60] sm:$0xf]
    %v135 = vld [vmem:[%s1 + $0x64] sm:$0xf]
    %v136 = vld [vmem:[%s1 + $0x68] sm:$0xf]
    %v137 = vld [vmem:[%s1 + $0x6c] sm:$0xf]
    %v138 = vld [vmem:[%s1 + $0x70] sm:$0xf]
    %v139 = vld [vmem:[%s1 + $0x74] sm:$0xf]
    %v140 = vld [vmem:[%s1 + $0x78] sm:$0xf]
    %v141 = vld [vmem:[%s1 + $0x7c] sm:$0xf]
    %v142 = vld [vmem:[%s1 + $0x80] sm:$0xf]
    %v143 = vld [vmem:[%s1 + $0x84] sm:$0xf]
    %v144 = vld [vmem:[%s1 + $0x88] sm:$0xf]
    %v145 = vld [vmem:[%s1 + $0x8c] sm:$0xf]
    %v146 = vld [vmem:[%s1 + $0x90] sm:$0xf]
    %v147 = vld [vmem:[%s1 + $0x94] sm:$0xf]
    %v148 = vld [vmem:[%s1 + $0x98] sm:$0xf]
    %v149 = vld [vmem:[%s1 + $0x9c] sm:$0xf]
    %v150 = vld [vmem:[%s1 + $0xa0] sm:$0xf]
    %v151 = vld [vmem:[%s1 + $0xa4] sm:$0xf]
    %v152 = vld [vmem:[%s1 + $0xa8] sm:$0xf]
    %v153 = vld [vmem:[%s1 + $0xac] sm:$0xf]
    %v154 = vld [vmem:[%s1 + $0xb0] sm:$0xf]
    %v155 = vld [vmem:[%s1 + $0xb4] sm:$0xf]
    %v156 = vld [vmem:[%s1 + $0xb8] sm:$0xf]
    %v157 = vld [vmem:[%s1 + $0xbc] sm:$0xf]
    %v158 = vld [vmem:[%s1 + $0xc0] sm:$0xf]
    %v159 = vld [vmem:[%s1 + $0xc4] sm:$0xf]
    %v160 = vld [vmem:[%s1 + $0xc8] sm:$0xf]
    %v161 = vld [vmem:[%s1 + $0xcc] sm:$0xf]
    %v162 = vld [vmem:[%s1 + $0xd0] sm:$0xf]
    %v163 = vld [vmem:[%s1 + $0xd4] sm:$0xf]
    %v164 = vld [vmem:[%s1 + $0xd8] sm:$0xf]
    %v165 = vld [vmem:[%s1 + $0xdc] sm:$0xf]
    %v166 = vld [vmem:[%s1 + $0xe0] sm:$0xf]
    %v167 = vld [vmem:[%s1 + $0xe4] sm:$0xf]
    %v168 = vld [vmem:[%s1 + $0xe8] sm:$0xf]
    %v169 = vld [vmem:[%s1 + $0xec] sm:$0xf]
    %v170 = vld [vmem:[%s1 + $0xf0] sm:$0xf]
    %v171 = vld [vmem:[%s1 + $0xf4] sm:$0xf]
    %v172 = vld [vmem:[%s1 + $0xf8] sm:$0xf]
    %v173 = vld [vmem:[%s1 + $0xfc] sm:$0xf]
    %v174 = vld [vmem:[%s1 + $0x100] sm:$0xf]
    %v175 = vld [vmem:[%s1 + $0x104] sm:$0xf]
    %v176 = vld [vmem:[%s1 + $0x108] sm:$0xf]
    %v177 = vld [vmem:[%s1 + $0x10c] sm:$0xf]
    %v178 = vld [vmem:[%s1 + $0x110] sm:$0xf]
    %v179 = vld [vmem:[%s1 + $0x114] sm:$0xf]
    %v180 = vld [vmem:[%s1 + $0x118] sm:$0xf]
    %v181 = vld [vmem:[%s1 + $0x11c] sm:$0xf]
    %v182 = vld [vmem:[%s1 + $0x120] sm:$0xf]
    %v183 = vld [vmem:[%s1 + $0x124] sm:$0xf]
    %v184 = vld [vmem:[%s1 + $0x128] sm:$0xf]
    %v185 = vld [vmem:[%s1 + $0x12c] sm:$0xf]
    %v186 = vld [vmem:[%s1 + $0x130] sm:$0xf]
    %v187 = vld [vmem:[%s1 + $0x134] sm:$0xf]
    %v188 = vld [vmem:[%s1 + $0x138] sm:$0xf]
    %v189 = vld [vmem:[%s1 + $0x13c] sm:$0xf]
    %v190 = vld [vmem:[%s1 + $0x140] sm:$0xf]
    %v191 = vld [vmem:[%s1 + $0x144] sm:$0xf]
    %v192 = vld [vmem:[%s1 + $0x148] sm:$0xf]
    %v193 = vld [vmem:[%s1 + $0x14c] sm:$0xf]
    %v194 = vld [vmem:[%s1 + $0x150] sm:$0xf]
    %v195 = vld [vmem:[%s1 + $0x154] sm:$0xf]
    %v196 = vld [vmem:[%s1 + $0x158] sm:$0xf]
    %v197 = vld [vmem:[%s1 + $0x15c] sm:$0xf]
    %v198 = vld [vmem:[%s1 + $0x160] sm:$0xf]
    %v199 = vld [vmem:[%s1 + $0x164] sm:$0xf]
    %v200 = vld [vmem:[%s1 + $0x168] sm:$0xf]
    %v201 = vld [vmem:[%s1 + $0x16c] sm:$0xf]
    %v202 = vld [vmem:[%s1 + $0x170] sm:$0xf]
    %v203 = vld [vmem:[%s1 + $0x174] sm:$0xf]
    %v204 = vld [vmem:[%s1 + $0x178] sm:$0xf]
    %v205 = vld [vmem:[%s1 + $0x17c] sm:$0xf]
    %v206 = vld [vmem:[%s1 + $0x180] sm:$0xf]
    %v207 = vld [vmem:[%s1 + $0x184] sm:$0xf]
    %v208 = vld [vmem:[%s1 + $0x188] sm:$0xf]
    %v209 = vld [vmem:[%s1 + $0x18c] sm:$0xf]
    %v210 = vld [vmem:[%s1 + $0x190] sm:$0xf]
    %v211 = vld [vmem:[%s1 + $0x194] sm:$0xf]
    %v212 = vld [vmem:[%s1 + $0x198] sm:$0xf]
    %v213 = vld [vmem:[%s1 + $0x19c] sm:$0xf]
    %v214 = vld [vmem:[%s1 + $0x1a0] sm:$0xf]
    %v215 = vld [vmem:[%s1 + $0x1a4] sm:$0xf]
    %v216 = vld [vmem:[%s1 + $0x1a8] sm:$0xf]
    %v217 = vld [vmem:[%s1 + $0x1ac] sm:$0xf]
    %v218 = vld [vmem:[%s1 + $0x1b0] sm:$0xf]
    %v219 = vld [vmem:[%s1 + $0x1b4] sm:$0xf]
    %v220 = vld [vmem:[%s1 + $0x1b8] sm:$0xf]
    %v221 = vld [vmem:[%s1 + $0x1bc] sm:$0xf]
    %v222 = vld [vmem:[%s1 + $0x1c0] sm:$0xf]
    %v223 = vld [vmem:[%s1 + $0x1c4] sm:$0xf]
    %v224 = vld [vmem:[%s1 + $0x1c8] sm:$0xf]
    %v225 = vld [vmem:[%s1 + $0x1cc] sm:$0xf]
    %v226 = vld [vmem:[%s1 + $0x1d0] sm:$0xf]
    %v227 = vld [vmem:[%s1 + $0x1d4] sm:$0xf]
    %v228 = vld [vmem:[%s1 + $0x1d8] sm:$0xf]
    %v229 = vld [vmem:[%s1 + $0x1dc] sm:$0xf]
    %v230 = vld [vmem:[%s1 + $0x1e0] sm:$0xf]
    %v231 = vld [vmem:[%s1 + $0x1e4] sm:$0xf]
    %v232 = vld [vmem:[%s1 + $0x1e8] sm:$0xf]
    %v233 = vld [vmem:[%s1 + $0x1ec] sm:$0xf]
    %v234 = vld [vmem:[%s1 + $0x1f0] sm:$0xf]
    %v235 = vld [vmem:[%s1 + $0x1f4] sm:$0xf]
    %v236 = vld [vmem:[%s1 + $0x1f8] sm:$0xf]
    %v237 = vld [vmem:[%s1 + $0x1fc] sm:$0xf]
    %v238 = vld [vmem:[%s1 + $0x200] sm:$0xf]
    %v239 = vld [vmem:[%s1 + $0x204] sm:$0xf]
    %v240 = vld [vmem:[%s1 + $0x208] sm:$0xf]
    %v241 = vld [vmem:[%s1 + $0x20c] sm:$0xf]
    %v242 = vld [vmem:[%s1 + $0x210] sm:$0xf]
    %v243 = vld [vmem:[%s1 + $0x214] sm:$0xf]
    %v244 = vld [vmem:[%s1 + $0x218] sm:$0xf]
    %v245 = vld [vmem:[%s1 + $0x21c] sm:$0xf]
    %v246 = vld [vmem:[%s1 + $0x220] sm:$0xf]
    %v247 = vld [vmem:[%s1 + $0x224] sm:$0xf]
    %v248 = vld [vmem:[%s1 + $0x228] sm:$0xf]
    %v249 = vld [vmem:[%s1 + $0x22c] sm:$0xf]
    %v250 = vld [vmem:[%s1 + $0x230] sm:$0xf]
    %v251 = vld [vmem:[%s1 + $0x234] sm:$0xf]
    %v252 = vld [vmem:[%s1 + $0x238] sm:$0xf]
    %v253 = vld [vmem:[%s1 + $0x23c] sm:$0xf]
    %v254 = vld [vmem:[%s1 + $0x240] sm:$0xf]
    %v255 = vld [vmem:[%s1 + $0x244] sm:$0xf]
    %v256 = vld [vmem:[%s1 + $0x248] sm:$0xf]
    %v257 = vld [vmem:[%s1 + $0x24c] sm:$0xf]
    %v258 = vld [vmem:[%s1 + $0x250] sm:$0xf]
    %v259 = vld [vmem:[%s1 + $0x254] sm:$0xf]
    %v260 = vld [vmem:[%s1 + $0x258] sm:$0xf]
    %v261 = vld [vmem:[%s1 + $0x25c] sm:$0xf]
    %v262 = vld [vmem:[%s1 + $0x260] sm:$0xf]
    %v263 = vld [vmem:[%s1 + $0x264] sm:$0xf]
    %v264 = vld [vmem:[%s1 + $0x268] sm:$0xf]
    %v265 = vld [vmem:[%s1 + $0x26c] sm:$0xf]
    %v266 = vld [vmem:[%s1 + $0x270] sm:$0xf]
    %v267 = vld [vmem:[%s1 + $0x274] sm:$0xf]
    %v268 = vld [vmem:[%s1 + $0x278] sm:$0xf]
    %v269 = vld [vmem:[%s1 + $0x27c] sm:$0xf]
    %v270 = vld [vmem:[%s1 + $0x280] sm:$0xf]
    %v271 = vld [vmem:[%s1 + $0x284] sm:$0xf]
    %v272 = vld [vmem:[%s1 + $0x288] sm:$0xf]
    %v273 = vld [vmem:[%s1 + $0x28c] sm:$0xf]
    %v274 = vld [vmem:[%s1 + $0x290] sm:$0xf]
    %v275 = vld [vmem:[%s1 + $0x294] sm:$0xf]
    %v276 = vld [vmem:[%s1 + $0x298] sm:$0xf]
    %v277 = vld [vmem:[%s1 + $0x29c] sm:$0xf]
    %v278 = vld [vmem:[%s1 + $0x2a0] sm:$0xf]
    %v279 = vld [vmem:[%s1 + $0x2a4] sm:$0xf]
    %v280 = vld [vmem:[%s1 + $0x2a8] sm:$0xf]
    %v281 = vld [vmem:[%s1 + $0x2ac] sm:$0xf]
    %v282 = vld [vmem:[%s1 + $0x2b0] sm:$0xf]
    %v283 = vld [vmem:[%s1 + $0x2b4] sm:$0xf]
    %v284 = vld [vmem:[%s1 + $0x2b8] sm:$0xf]
    %v285 = vld [vmem:[%s1 + $0x2bc] sm:$0xf]
    %v286 = vld [vmem:[%s1 + $0x2c0] sm:$0xf]
    %v287 = vld [vmem:[%s1 + $0x2c4] sm:$0xf]
    %v288 = vld [vmem:[%s1 + $0x2c8] sm:$0xf]
    %v289 = vld [vmem:[%s1 + $0x2cc] sm:$0xf]
    %v290 = vld [vmem:[%s1 + $0x2d0] sm:$0xf]
    %v291 = vld [vmem:[%s1 + $0x2d4] sm:$0xf]
    %v292 = vld [vmem:[%s1 + $0x2d8] sm:$0xf]
    %v293 = vld [vmem:[%s1 + $0x2dc] sm:$0xf]
    %v294 = vld [vmem:[%s1 + $0x2e0] sm:$0xf]
    %v295 = vld [vmem:[%s1 + $0x2e4] sm:$0xf]
    %v296 = vld [vmem:[%s1 + $0x2e8] sm:$0xf]
    %v297 = vld [vmem:[%s1 + $0x2ec] sm:$0xf]
    %v298 = vld [vmem:[%s1 + $0x2f0] sm:$0xf]
    %v299 = vld [vmem:[%s1 + $0x2f4] sm:$0xf]
    %v300 = vld [vmem:[%s1 + $0x2f8] sm:$0xf]
    %v301 = vld [vmem:[%s1 + $0x2fc] sm:$0xf]
    %v302 = vld [vmem:[%s1 + $0x300] sm:$0xf]
    %v303 = vld [vmem:[%s1 + $0x304] sm:$0xf]
    %v304 = vld [vmem:[%s1 + $0x308] sm:$0xf]
    %v305 = vld [vmem:[%s1 + $0x30c] sm:$0xf]
    %v306 = vld [vmem:[%s1 + $0x310] sm:$0xf]
    %v307 = vld [vmem:[%s1 + $0x314] sm:$0xf]
    %v308 = vld [vmem:[%s1 + $0x318] sm:$0xf]
    %v309 = vld [vmem:[%s1 + $0x31c] sm:$0xf]
    %v310 = vld [vmem:[%s1 + $0x320] sm:$0xf]
    %v311 = vld [vmem:[%s1 + $0x324] sm:$0xf]
    %v312 = vld [vmem:[%s1 + $0x328] sm:$0xf]
    %v313 = vld [vmem:[%s1 + $0x32c] sm:$0xf]
    %v314 = vld [vmem:[%s1 + $0x330] sm:$0xf]
    %v315 = vld [vmem:[%s1 + $0x334] sm:$0xf]
    %v316 = vld [vmem:[%s1 + $0x338] sm:$0xf]
    %v317 = vld [vmem:[%s1 + $0x33c] sm:$0xf]
    %v318 = vld [vmem:[%s1 + $0x340] sm:$0xf]
    %v319 = vld [vmem:[%s1 + $0x344] sm:$0xf]
    %v320 = vld [vmem:[%s1 + $0x348] sm:$0xf]
    %v321 = vld [vmem:[%s1 + $0x34c] sm:$0xf]
    %v322 = vld [vmem:[%s1 + $0x350] sm:$0xf]
    %v323 = vld [vmem:[%s1 + $0x354] sm:$0xf]
    %v324 = vld [vmem:[%s1 + $0x358] sm:$0xf]
    %v325 = vld [vmem:[%s1 + $0x35c] sm:$0xf]
    %v326 = vld [vmem:[%s1 + $0x360] sm:$0xf]
    %v327 = vld [vmem:[%s1 + $0x364] sm:$0xf]
    %v328 = vld [vmem:[%s1 + $0x368] sm:$0xf]
    %v329 = vld [vmem:[%s1 + $0x36c] sm:$0xf]
    %v330 = vld [vmem:[%s1 + $0x370] sm:$0xf]
    %v331 = vld [vmem:[%s1 + $0x374] sm:$0xf]
    %v332 = vld [vmem:[%s1 + $0x378] sm:$0xf]
    %v333 = vld [vmem:[%s1 + $0x37c] sm:$0xf]
    %v334 = vld [vmem:[%s1 + $0x380] sm:$0xf]
    %v335 = vld [vmem:[%s1 + $0x384] sm:$0xf]
    %v336 = vld [vmem:[%s1 + $0x388] sm:$0xf]
    %v337 = vld [vmem:[%s1 + $0x38c] sm:$0xf]
    %v338 = vld [vmem:[%s1 + $0x390] sm:$0xf]
    %v339 = vld [vmem:[%s1 + $0x394] sm:$0xf]
    %v340 = vld [vmem:[%s1 + $0x398] sm:$0xf]
    %v341 = vld [vmem:[%s1 + $0x39c] sm:$0xf]
    %v342 = vld [vmem:[%s1 + $0x3a0] sm:$0xf]
    %v343 = vld [vmem:[%s1 + $0x3a4] sm:$0xf]
    %v344 = vld [vmem:[%s1 + $0x3a8] sm:$0xf]
    %v345 = vld [vmem:[%s1 + $0x3ac] sm:$0xf]
    %v346 = vld [vmem:[%s1 + $0x3b0] sm:$0xf]
    %v347 = vld [vmem:[%s1 + $0x3b4] sm:$0xf]
    %v348 = vld [vmem:[%s1 + $0x3b8] sm:$0xf]
    %v349 = vld [vmem:[%s1 + $0x3bc] sm:$0xf]
    %v350 = vld [vmem:[%s1 + $0x3c0] sm:$0xf]
    %v351 = vld [vmem:[%s1 + $0x3c4] sm:$0xf]
    %v352 = vld [vmem:[%s1 + $0x3c8] sm:$0xf]
    %v353 = vld [vmem:[%s1 + $0x3cc] sm:$0xf]
    %v354 = vld [vmem:[%s1 + $0x3d0] sm:$0xf]
    %v355 = vld [vmem:[%s1 + $0x3d4] sm:$0xf]
    %v356 = vld [vmem:[%s1 + $0x3d8] sm:$0xf]
    %v357 = vld [vmem:[%s1 + $0x3dc] sm:$0xf]
    %v358 = vld [vmem:[%s1 + $0x3e0] sm:$0xf]
    %v359 = vld [vmem:[%s1 + $0x3e4] sm:$0xf]
    %v360 = vld [vmem:[%s1 + $0x3e8] sm:$0xf]
    %v361 = vld [vmem:[%s1 + $0x3ec] sm:$0xf]
    %v362 = vld [vmem:[%s1 + $0x3f0] sm:$0xf]
    %v363 = vld [vmem:[%s1 + $0x3f4] sm:$0xf]
    %v364 = vld [vmem:[%s1 + $0x3f8] sm:$0xf]
    %v365 = vld [vmem:[%s1 + $0x3fc] sm:$0xf]
    %v366 = vld [vmem:[%s1 + $0x400] sm:$0xf]
    %v367 = vld [vmem:[%s1 + $0x404] sm:$0xf]
    %v368 = vld [vmem:[%s1 + $0x408] sm:$0xf]
    %v369 = vld [vmem:[%s1 + $0x40c] sm:$0xf]
    %v370 = vld [vmem:[%s1 + $0x410] sm:$0xf]
    %v371 = vld [vmem:[%s1 + $0x414] sm:$0xf]
    %v372 = vld [vmem:[%s1 + $0x418] sm:$0xf]
    %v373 = vld [vmem:[%s1 + $0x41c] sm:$0xf]
    %v374 = vld [vmem:[%s1 + $0x420] sm:$0xf]
    %v375 = vld [vmem:[%s1 + $0x424] sm:$0xf]
    %v376 = vld [vmem:[%s1 + $0x428] sm:$0xf]
    %v377 = vld [vmem:[%s1 + $0x42c] sm:$0xf]
    %v378 = vld [vmem:[%s1 + $0x430] sm:$0xf]
    %v379 = vld [vmem:[%s1 + $0x434] sm:$0xf]
    %v380 = vld [vmem:[%s1 + $0x438] sm:$0xf]
    %v381 = vld [vmem:[%s1 + $0x43c] sm:$0xf]
    %v382 = vld [vmem:[%s1 + $0x440] sm:$0xf]
    %v383 = vld [vmem:[%s1 + $0x444] sm:$0xf]
    %v384 = vld [vmem:[%s1 + $0x448] sm:$0xf]
    %v385 = vld [vmem:[%s1 + $0x44c] sm:$0xf]
    %v386 = vld [vmem:[%s1 + $0x450] sm:$0xf]
    %v387 = vld [vmem:[%s1 + $0x454] sm:$0xf]
    %v388 = vld [vmem:[%s1 + $0x458] sm:$0xf]
    %v389 = vld [vmem:[%s1 + $0x45c] sm:$0xf]
    %v390 = vld [vmem:[%s1 + $0x460] sm:$0xf]
    %v391 = vld [vmem:[%s1 + $0x464] sm:$0xf]
    %v392 = vld [vmem:[%s1 + $0x468] sm:$0xf]
    %v393 = vld [vmem:[%s1 + $0x46c] sm:$0xf]
    %v394 = vld [vmem:[%s1 + $0x470] sm:$0xf]
    %v395 = vld [vmem:[%s1 + $0x474] sm:$0xf]
    %v396 = vld [vmem:[%s1 + $0x478] sm:$0xf]
    %v397 = vld [vmem:[%s1 + $0x47c] sm:$0xf]
    %v398 = vld [vmem:[%s1 + $0x480] sm:$0xf]
    %v399 = vld [vmem:[%s1 + $0x484] sm:$0xf]
    %v400 = vld [vmem:[%s1 + $0x488] sm:$0xf]
    %v401 = vld [vmem:[%s1 + $0x48c] sm:$0xf]
    %v402 = vld [vmem:[%s1 + $0x490] sm:$0xf]
    %v403 = vld [vmem:[%s1 + $0x494] sm:$0xf]
    %v404 = vld [vmem:[%s1 + $0x498] sm:$0xf]
    %v405 = vld [vmem:[%s1 + $0x49c] sm:$0xf]
    %v406 = vld [vmem:[%s1 + $0x4a0] sm:$0xf]
    %v407 = vld [vmem:[%s1 + $0x4a4] sm:$0xf]
    %v408 = vld [vmem:[%s1 + $0x4a8] sm:$0xf]
    %v409 = vld [vmem:[%s1 + $0x4ac] sm:$0xf]
    %v410 = vld [vmem:[%s1 + $0x4b0] sm:$0xf]
    %v411 = vld [vmem:[%s1 + $0x4b4] sm:$0xf]
    %v412 = vld [vmem:[%s1 + $0x4b8] sm:$0xf]
    %v413 = vld [vmem:[%s1 + $0x4bc] sm:$0xf]
    %v414 = vld [vmem:[%s1 + $0x4c0] sm:$0xf]
    %v415 = vld [vmem:[%s1 + $0x4c4] sm:$0xf]
    %v416 = vld [vmem:[%s1 + $0x4c8] sm:$0xf]
    %v417 = vld [vmem:[%s1 + $0x4cc] sm:$0xf]
    %v418 = vld [vmem:[%s1 + $0x4d0] sm:$0xf]
    %v419 = vld [vmem:[%s1 + $0x4d4] sm:$0xf]
    %v420 = vld [vmem:[%s1 + $0x4d8] sm:$0xf]
    %v421 = vld [vmem:[%s1 + $0x4dc] sm:$0xf]
    %v422 = vld [vmem:[%s1 + $0x4e0] sm:$0xf]
    %v423 = vld [vmem:[%s1 + $0x4e4] sm:$0xf]
    %v424 = vld [vmem:[%s1 + $0x4e8] sm:$0xf]
    %v425 = vld [vmem:[%s1 + $0x4ec] sm:$0xf]
    %v426 = vld [vmem:[%s1 + $0x4f0] sm:$0xf]
    %v427 = vld [vmem:[%s1 + $0x4f4] sm:$0xf]
    %v428 = vld [vmem:[%s1 + $0x4f8] sm:$0xf]
    %v429 = vld [vmem:[%s1 + $0x4fc] sm:$0xf]
    %v430 = vld [vmem:[%s1 + $0x500] sm:$0xf]
    %v431 = vld [vmem:[%s1 + $0x504] sm:$0xf]
    %v432 = vld [vmem:[%s1 + $0x508] sm:$0xf]
    %v433 = vld [vmem:[%s1 + $0x50c] sm:$0xf]
    %v434 = vld [vmem:[%s1 + $0x510] sm:$0xf]
    %v435 = vld [vmem:[%s1 + $0x514] sm:$0xf]
    %v436 = vld [vmem:[%s1 + $0x518] sm:$0xf]
    %v437 = vld [vmem:[%s1 + $0x51c] sm:$0xf]
    %v438 = vld [vmem:[%s1 + $0x520] sm:$0xf]
    %v439 = vld [vmem:[%s1 + $0x524] sm:$0xf]
    %v440 = vld [vmem:[%s1 + $0x528] sm:$0xf]
    %v441 = vld [vmem:[%s1 + $0x52c] sm:$0xf]
    %v442 = vld [vmem:[%s1 + $0x530] sm:$0xf]
    %v443 = vld [vmem:[%s1 + $0x534] sm:$0xf]
    %v444 = vld [vmem:[%s1 + $0x538] sm:$0xf]
    %v445 = vld [vmem:[%s1 + $0x53c] sm:$0xf]
    %v446 = vld [vmem:[%s1 + $0x540] sm:$0xf]
    %v447 = vld [vmem:[%s1 + $0x544] sm:$0xf]
    %v448 = vld [vmem:[%s1 + $0x548] sm:$0xf]
    %v449 = vld [vmem:[%s1 + $0x54c] sm:$0xf]
    %v450 = vld [vmem:[%s1 + $0x550] sm:$0xf]
    %v451 = vld [vmem:[%s1 + $0x554] sm:$0xf]
    %v452 = vld [vmem:[%s1 + $0x558] sm:$0xf]
    %v453 = vld [vmem:[%s1 + $0x55c] sm:$0xf]
    %v454 = vld [vmem:[%s1 + $0x560] sm:$0xf]
    %v455 = vld [vmem:[%s1 + $0x564] sm:$0xf]
    %v456 = vld [vmem:[%s1 + $0x568] sm:$0xf]
    %v457 = vld [vmem:[%s1 + $0x56c] sm:$0xf]
    %v458 = vld [vmem:[%s1 + $0x570] sm:$0xf]
    %v459 = vld [vmem:[%s1 + $0x574] sm:$0xf]
    %v460 = vld [vmem:[%s1 + $0x578] sm:$0xf]
    %v461 = vld [vmem:[%s1 + $0x57c] sm:$0xf]
    %v462 = vld [vmem:[%s1 + $0x580] sm:$0xf]
    %v463 = vld [vmem:[%s1 + $0x584] sm:$0xf]
    %v464 = vld [vmem:[%s1 + $0x588] sm:$0xf]
    %v465 = vld [vmem:[%s1 + $0x58c] sm:$0xf]
    %v466 = vld [vmem:[%s1 + $0x590] sm:$0xf]
    %v467 = vld [vmem:[%s1 + $0x594] sm:$0xf]
    %v468 = vld [vmem:[%s1 + $0x598] sm:$0xf]
    %v469 = vld [vmem:[%s1 + $0x59c] sm:$0xf]
    %v470 = vld [vmem:[%s1 + $0x5a0] sm:$0xf]
    %v471 = vld [vmem:[%s1 + $0x5a4] sm:$0xf]
    %v472 = vld [vmem:[%s1 + $0x5a8] sm:$0xf]
    %v473 = vld [vmem:[%s1 + $0x5ac] sm:$0xf]
    %v474 = vld [vmem:[%s1 + $0x5b0] sm:$0xf]
    %v475 = vld [vmem:[%s1 + $0x5b4] sm:$0xf]
    %v476 = vld [vmem:[%s1 + $0x5b8] sm:$0xf]
    %v477 = vld [vmem:[%s1 + $0x5bc] sm:$0xf]
    %v478 = vld [vmem:[%s1 + $0x5c0] sm:$0xf]
    %v479 = vld [vmem:[%s1 + $0x5c4] sm:$0xf]
    %v480 = vld [vmem:[%s1 + $0x5c8] sm:$0xf]
    %v481 = vld [vmem:[%s1 + $0x5cc] sm:$0xf]
    %v482 = vld [vmem:[%s1 + $0x5d0] sm:$0xf]
    %v483 = vld [vmem:[%s1 + $0x5d4] sm:$0xf]
    %v484 = vld [vmem:[%s1 + $0x5d8] sm:$0xf]
    %v485 = vld [vmem:[%s1 + $0x5dc] sm:$0xf]
    %v486 = vld [vmem:[%s1 + $0x5e0] sm:$0xf]
    %v487 = vld [vmem:[%s1 + $0x5e4] sm:$0xf]
    %v488 = vld [vmem:[%s1 + $0x5e8] sm:$0xf]
    %v489 = vld [vmem:[%s1 + $0x5ec] sm:$0xf]
    %v490 = vld [vmem:[%s1 + $0x5f0] sm:$0xf]
    %v491 = vld [vmem:[%s1 + $0x5f4] sm:$0xf]
    %v492 = vld [vmem:[%s1 + $0x5f8] sm:$0xf]
    %v493 = vld [vmem:[%s1 + $0x5fc] sm:$0xf]
    %v494 = vld [vmem:[%s1 + $0x600] sm:$0xf]
    %v495 = vld [vmem:[%s1 + $0x604] sm:$0xf]
    %v496 = vld [vmem:[%s1 + $0x608] sm:$0xf]
    %v497 = vld [vmem:[%s1 + $0x60c] sm:$0xf]
    %v498 = vld [vmem:[%s1 + $0x610] sm:$0xf]
    %v499 = vld [vmem:[%s1 + $0x614] sm:$0xf]
    %v500 = vld [vmem:[%s1 + $0x618] sm:$0xf]
    %v501 = vld [vmem:[%s1 + $0x61c] sm:$0xf]
    %v502 = vld [vmem:[%s1 + $0x620] sm:$0xf]
    %v503 = vld [vmem:[%s1 + $0x624] sm:$0xf]
    %v504 = vld [vmem:[%s1 + $0x628] sm:$0xf]
    %v505 = vld [vmem:[%s1 + $0x62c] sm:$0xf]
    %v506 = vld [vmem:[%s1 + $0x630] sm:$0xf]
    %v507 = vld [vmem:[%s1 + $0x634] sm:$0xf]
    %v508 = vld [vmem:[%s1 + $0x638] sm:$0xf]
    %v509 = vld [vmem:[%s1 + $0x63c] sm:$0xf]
    %v510 = vld [vmem:[%s1 + $0x640] sm:$0xf]
    %v511 = vld [vmem:[%s1 + $0x644] sm:$0xf]
    %v512 = vld [vmem:[%s1 + $0x648] sm:$0xf]
    %v513 = vld [vmem:[%s1 + $0x64c] sm:$0xf]
    %v514 = vld [vmem:[%s1 + $0x650] sm:$0xf]
    %v515 = vld [vmem:[%s1 + $0x654] sm:$0xf]
    %v516 = vld [vmem:[%s1 + $0x658] sm:$0xf]
    %v517 = vld [vmem:[%s1 + $0x65c] sm:$0xf]
    %v518 = vld [vmem:[%s1 + $0x660] sm:$0xf]
    %v519 = vld [vmem:[%s1 + $0x664] sm:$0xf]
    %v520 = vld [vmem:[%s1 + $0x668] sm:$0xf]
    %v521 = vld [vmem:[%s1 + $0x66c] sm:$0xf]
    %v522 = vld [vmem:[%s1 + $0x670] sm:$0xf]
    %v523 = vld [vmem:[%s1 + $0x674] sm:$0xf]
    %v524 = vld [vmem:[%s1 + $0x678] sm:$0xf]
    %v525 = vld [vmem:[%s1 + $0x67c] sm:$0xf]
    %v526 = vld [vmem:[%s1 + $0x680] sm:$0xf]
    %v527 = vld [vmem:[%s1 + $0x684] sm:$0xf]
    %v528 = vld [vmem:[%s1 + $0x688] sm:$0xf]
    %v529 = vld [vmem:[%s1 + $0x68c] sm:$0xf]
    %v530 = vld [vmem:[%s1 + $0x690] sm:$0xf]
    %v531 = vld [vmem:[%s1 + $0x694] sm:$0xf]
    %v532 = vld [vmem:[%s1 + $0x698] sm:$0xf]
    %v533 = vld [vmem:[%s1 + $0x69c] sm:$0xf]
    %v534 = vld [vmem:[%s1 + $0x6a0] sm:$0xf]
    %v535 = vld [vmem:[%s1 + $0x6a4] sm:$0xf]
    %v536 = vld [vmem:[%s1 + $0x6a8] sm:$0xf]
    %v537 = vld [vmem:[%s1 + $0x6ac] sm:$0xf]
    %v538 = vld [vmem:[%s1 + $0x6b0] sm:$0xf]
    %v539 = vld [vmem:[%s1 + $0x6b4] sm:$0xf]
    %v540 = vld [vmem:[%s1 + $0x6b8] sm:$0xf]
    %v541 = vld [vmem:[%s1 + $0x6bc] sm:$0xf]
    %v542 = vld [vmem:[%s1 + $0x6c0] sm:$0xf]
    %v543 = vld [vmem:[%s1 + $0x6c4] sm:$0xf]
    %v544 = vld [vmem:[%s1 + $0x6c8] sm:$0xf]
    %v545 = vld [vmem:[%s1 + $0x6cc] sm:$0xf]
    %v546 = vld [vmem:[%s1 + $0x6d0] sm:$0xf]
    %v547 = vld [vmem:[%s1 + $0x6d4] sm:$0xf]
    %v548 = vld [vmem:[%s1 + $0x6d8] sm:$0xf]
    %v549 = vld [vmem:[%s1 + $0x6dc] sm:$0xf]
    %v550 = vld [vmem:[%s1 + $0x6e0] sm:$0xf]
    %v551 = vld [vmem:[%s1 + $0x6e4] sm:$0xf]
    %v552 = vld [vmem:[%s1 + $0x6e8] sm:$0xf]
    %v553 = vld [vmem:[%s1 + $0x6ec] sm:$0xf]
    %v554 = vld [vmem:[%s1 + $0x6f0] sm:$0xf]
    %v555 = vld [vmem:[%s1 + $0x6f4] sm:$0xf]
    %v556 = vld [vmem:[%s1 + $0x6f8] sm:$0xf]
    %v557 = vld [vmem:[%s1 + $0x6fc] sm:$0xf]
    %v558 = vld [vmem:[%s1 + $0x700] sm:$0xf]
    %v559 = vld [vmem:[%s1 + $0x704] sm:$0xf]
    %v560 = vld [vmem:[%s1 + $0x708] sm:$0xf]
    %v561 = vld [vmem:[%s1 + $0x70c] sm:$0xf]
    %v562 = vld [vmem:[%s1 + $0x710] sm:$0xf]
    %v563 = vld [vmem:[%s1 + $0x714] sm:$0xf]
    %v564 = vld [vmem:[%s1 + $0x718] sm:$0xf]
    %v565 = vld [vmem:[%s1 + $0x71c] sm:$0xf]
    %v566 = vld [vmem:[%s1 + $0x720] sm:$0xf]
    %v567 = vld [vmem:[%s1 + $0x724] sm:$0xf]
    %v568 = vld [vmem:[%s1 + $0x728] sm:$0xf]
    %v569 = vld [vmem:[%s1 + $0x72c] sm:$0xf]
    %v570 = vld [vmem:[%s1 + $0x730] sm:$0xf]
    %v571 = vld [vmem:[%s1 + $0x734] sm:$0xf]
    %v572 = vld [vmem:[%s1 + $0x738] sm:$0xf]
    %v573 = vld [vmem:[%s1 + $0x73c] sm:$0xf]
    %v574 = vld [vmem:[%s1 + $0x740] sm:$0xf]
    %v575 = vld [vmem:[%s1 + $0x744] sm:$0xf]
    %v576 = vld [vmem:[%s1 + $0x748] sm:$0xf]
    %v577 = vld [vmem:[%s1 + $0x74c] sm:$0xf]
    %v578 = vld [vmem:[%s1 + $0x750] sm:$0xf]
    %v579 = vld [vmem:[%s1 + $0x754] sm:$0xf]
    %v580 = vld [vmem:[%s1 + $0x758] sm:$0xf]
    %v581 = vld [vmem:[%s1 + $0x75c] sm:$0xf]
    %v582 = vld [vmem:[%s1 + $0x760] sm:$0xf]
    %v583 = vld [vmem:[%s1 + $0x764] sm:$0xf]
    %v584 = vld [vmem:[%s1 + $0x768] sm:$0xf]
    %v585 = vld [vmem:[%s1 + $0x76c] sm:$0xf]
    %v586 = vld [vmem:[%s1 + $0x770] sm:$0xf]
    %v587 = vld [vmem:[%s1 + $0x774] sm:$0xf]
    %v588 = vld [vmem:[%s1 + $0x778] sm:$0xf]
    %v589 = vld [vmem:[%s1 + $0x77c] sm:$0xf]
    %v590 = vld [vmem:[%s1 + $0x780] sm:$0xf]
    %v591 = vld [vmem:[%s1 + $0x784] sm:$0xf]
    %v592 = vld [vmem:[%s1 + $0x788] sm:$0xf]
    %v593 = vld [vmem:[%s1 + $0x78c] sm:$0xf]
    %v594 = vld [vmem:[%s1 + $0x790] sm:$0xf]
    %v595 = vld [vmem:[%s1 + $0x794] sm:$0xf]
    %v596 = vld [vmem:[%s1 + $0x798] sm:$0xf]
    %v597 = vld [vmem:[%s1 + $0x79c] sm:$0xf]
    %v598 = vld [vmem:[%s1 + $0x7a0] sm:$0xf]
    %v599 = vld [vmem:[%s1 + $0x7a4] sm:$0xf]
    %v600 = vld [vmem:[%s1 + $0x7a8] sm:$0xf]
    %v601 = vld [vmem:[%s1 + $0x7ac] sm:$0xf]
    %v602 = vld [vmem:[%s1 + $0x7b0] sm:$0xf]
    %v603 = vld [vmem:[%s1 + $0x7b4] sm:$0xf]
    %v604 = vld [vmem:[%s1 + $0x7b8] sm:$0xf]
    %v605 = vld [vmem:[%s1 + $0x7bc] sm:$0xf]
    %v606 = vld [vmem:[%s1 + $0x7c0] sm:$0xf]
    %v607 = vld [vmem:[%s1 + $0x7c4] sm:$0xf]
    %v608 = vld [vmem:[%s1 + $0x7c8] sm:$0xf]
    %v609 = vld [vmem:[%s1 + $0x7cc] sm:$0xf]
    %v610 = vld [vmem:[%s1 + $0x7d0] sm:$0xf]
    %v611 = vld [vmem:[%s1 + $0x7d4] sm:$0xf]
    %v612 = vld [vmem:[%s1 + $0x7d8] sm:$0xf]
    %v613 = vld [vmem:[%s1 + $0x7dc] sm:$0xf]
    %v614 = vld [vmem:[%s1 + $0x7e0] sm:$0xf]
    %v615 = vld [vmem:[%s1 + $0x7e4] sm:$0xf]
    %v616 = vld [vmem:[%s1 + $0x7e8] sm:$0xf]
    %v617 = vld [vmem:[%s1 + $0x7ec] sm:$0xf]
    %v618 = vld [vmem:[%s1 + $0x7f0] sm:$0xf]
    %v619 = vld [vmem:[%s1 + $0x7f4] sm:$0xf]
    %v620 = vld [vmem:[%s1 + $0x7f8] sm:$0xf]
    %v621 = vld [vmem:[%s1 + $0x7fc] sm:$0xf]
    %v622 = vld [vmem:[%s1 + $0x800] sm:$0xf]
    %v623 = vld [vmem:[%s1 + $0x804] sm:$0xf]
    %v624 = vld [vmem:[%s1 + $0x808] sm:$0xf]
    %v625 = vld [vmem:[%s1 + $0x80c] sm:$0xf]
    %v626 = vld [vmem:[%s1 + $0x810] sm:$0xf]
    %v627 = vld [vmem:[%s1 + $0x814] sm:$0xf]
    %v628 = vld [vmem:[%s1 + $0x818] sm:$0xf]
    %v629 = vld [vmem:[%s1 + $0x81c] sm:$0xf]
    %v630 = vld [vmem:[%s1 + $0x820] sm:$0xf]
    %v631 = vld [vmem:[%s1 + $0x824] sm:$0xf]
    %v632 = vld [vmem:[%s1 + $0x828] sm:$0xf]
    %v633 = vld [vmem:[%s1 + $0x82c] sm:$0xf]
    %v634 = vld [vmem:[%s1 + $0x830] sm:$0xf]
    %v635 = vld [vmem:[%s1 + $0x834] sm:$0xf]
    %v636 = vld [vmem:[%s1 + $0x838] sm:$0xf]
    %v637 = vld [vmem:[%s1 + $0x83c] sm:$0xf]
    %v638 = vld [vmem:[%s1 + $0x840] sm:$0xf]
    %v639 = vld [vmem:[%s1 + $0x844] sm:$0xf]
    %v640 = vld [vmem:[%s1 + $0x848] sm:$0xf]
    %v641 = vld [vmem:[%s1 + $0x84c] sm:$0xf]
    %v642 = vld [vmem:[%s1 + $0x850] sm:$0xf]
    %v643 = vld [vmem:[%s1 + $0x854] sm:$0xf]
    %v644 = vld [vmem:[%s1 + $0x858] sm:$0xf]
    %v645 = vld [vmem:[%s1 + $0x85c] sm:$0xf]
    %v646 = vld [vmem:[%s1 + $0x860] sm:$0xf]
    %v647 = vld [vmem:[%s1 + $0x864] sm:$0xf]
    %v648 = vld [vmem:[%s1 + $0x868] sm:$0xf]
    %v649 = vld [vmem:[%s1 + $0x86c] sm:$0xf]
    %v650 = vld [vmem:[%s1 + $0x870] sm:$0xf]
    %v651 = vld [vmem:[%s1 + $0x874] sm:$0xf]
    %v652 = vld [vmem:[%s1 + $0x878] sm:$0xf]
    %v653 = vld [vmem:[%s1 + $0x87c] sm:$0xf]
    %v654 = vld [vmem:[%s1 + $0x880] sm:$0xf]
    %v655 = vld [vmem:[%s1 + $0x884] sm:$0xf]
    %v656 = vld [vmem:[%s1 + $0x888] sm:$0xf]
    %v657 = vld [vmem:[%s1 + $0x88c] sm:$0xf]
    %v658 = vld [vmem:[%s1 + $0x890] sm:$0xf]
    %v659 = vld [vmem:[%s1 + $0x894] sm:$0xf]
    %v660 = vld [vmem:[%s1 + $0x898] sm:$0xf]
    %v661 = vld [vmem:[%s1 + $0x89c] sm:$0xf]
    %v662 = vld [vmem:[%s1 + $0x8a0] sm:$0xf]
    %v663 = vld [vmem:[%s1 + $0x8a4] sm:$0xf]
    %v664 = vld [vmem:[%s1 + $0x8a8] sm:$0xf]
    %v665 = vld [vmem:[%s1 + $0x8ac] sm:$0xf]
    %v666 = vld [vmem:[%s1 + $0x8b0] sm:$0xf]
    %v667 = vld [vmem:[%s1 + $0x8b4] sm:$0xf]
    %v668 = vld [vmem:[%s1 + $0x8b8] sm:$0xf]
    %v669 = vld [vmem:[%s1 + $0x8bc] sm:$0xf]
    %v670 = vld [vmem:[%s1 + $0x8c0] sm:$0xf]
    %v671 = vld [vmem:[%s1 + $0x8c4] sm:$0xf]
    %v672 = vld [vmem:[%s1 + $0x8c8] sm:$0xf]
    %v673 = vld [vmem:[%s1 + $0x8cc] sm:$0xf]
    %v674 = vld [vmem:[%s1 + $0x8d0] sm:$0xf]
    %v675 = vld [vmem:[%s1 + $0x8d4] sm:$0xf]
    %v676 = vld [vmem:[%s1 + $0x8d8] sm:$0xf]
    %v677 = vld [vmem:[%s1 + $0x8dc] sm:$0xf]
    %v678 = vld [vmem:[%s1 + $0x8e0] sm:$0xf]
    %v679 = vld [vmem:[%s1 + $0x8e4] sm:$0xf]
    %v680 = vld [vmem:[%s1 + $0x8e8] sm:$0xf]
    %v681 = vld [vmem:[%s1 + $0x8ec] sm:$0xf]
    %v682 = vld [vmem:[%s1 + $0x8f0] sm:$0xf]
    %v683 = vld [vmem:[%s1 + $0x8f4] sm:$0xf]
    %v684 = vld [vmem:[%s1 + $0x8f8] sm:$0xf]
    %v685 = vld [vmem:[%s1 + $0x8fc] sm:$0xf]
    %v686 = vld [vmem:[%s1 + $0x900] sm:$0xf]
    %v687 = vld [vmem:[%s1 + $0x904] sm:$0xf]
    %v688 = vld [vmem:[%s1 + $0x908] sm:$0xf]
    %v689 = vld [vmem:[%s1 + $0x90c] sm:$0xf]
    %v690 = vld [vmem:[%s1 + $0x910] sm:$0xf]
    %v691 = vld [vmem:[%s1 + $0x914] sm:$0xf]
    %v692 = vld [vmem:[%s1 + $0x918] sm:$0xf]
    %v693 = vld [vmem:[%s1 + $0x91c] sm:$0xf]
    %v694 = vld [vmem:[%s1 + $0x920] sm:$0xf]
    %v695 = vld [vmem:[%s1 + $0x924] sm:$0xf]
    %v696 = vld [vmem:[%s1 + $0x928] sm:$0xf]
    %v697 = vld [vmem:[%s1 + $0x92c] sm:$0xf]
    %v698 = vld [vmem:[%s1 + $0x930] sm:$0xf]
    %v699 = vld [vmem:[%s1 + $0x934] sm:$0xf]
    %v700 = vld [vmem:[%s1 + $0x938] sm:$0xf]
    %v701 = vld [vmem:[%s1 + $0x93c] sm:$0xf]
    %v702 = vld [vmem:[%s1 + $0x940] sm:$0xf]
    %v703 = vld [vmem:[%s1 + $0x944] sm:$0xf]
    %v704 = vld [vmem:[%s1 + $0x948] sm:$0xf]
    %v705 = vld [vmem:[%s1 + $0x94c] sm:$0xf]
    %v706 = vld [vmem:[%s1 + $0x950] sm:$0xf]
    %v707 = vld [vmem:[%s1 + $0x954] sm:$0xf]
    %v708 = vld [vmem:[%s1 + $0x958] sm:$0xf]
    %v709 = vld [vmem:[%s1 + $0x95c] sm:$0xf]
    %v710 = vld [vmem:[%s1 + $0x960] sm:$0xf]
    %v711 = vld [vmem:[%s1 + $0x964] sm:$0xf]
    %v712 = vld [vmem:[%s1 + $0x968] sm:$0xf]
    %v713 = vld [vmem:[%s1 + $0x96c] sm:$0xf]
    %v714 = vld [vmem:[%s1 + $0x970] sm:$0xf]
    %v715 = vld [vmem:[%s1 + $0x974] sm:$0xf]
    %v716 = vld [vmem:[%s1 + $0x978] sm:$0xf]
    %v717 = vld [vmem:[%s1 + $0x97c] sm:$0xf]
    %v718 = vld [vmem:[%s1 + $0x980] sm:$0xf]
    %v719 = vld [vmem:[%s1 + $0x984] sm:$0xf]
    %v720 = vld [vmem:[%s1 + $0x988] sm:$0xf]
    %v721 = vld [vmem:[%s1 + $0x98c] sm:$0xf]
    %v722 = vld [vmem:[%s1 + $0x990] sm:$0xf]
    %v723 = vld [vmem:[%s1 + $0x994] sm:$0xf]
    %v724 = vld [vmem:[%s1 + $0x998] sm:$0xf]
    %v725 = vld [vmem:[%s1 + $0x99c] sm:$0xf]
    %v726 = vld [vmem:[%s1 + $0x9a0] sm:$0xf]
    %v727 = vld [vmem:[%s1 + $0x9a4] sm:$0xf]
    %v728 = vld [vmem:[%s1 + $0x9a8] sm:$0xf]
    %v729 = vld [vmem:[%s1 + $0x9ac] sm:$0xf]
    %v730 = vld [vmem:[%s1 + $0x9b0] sm:$0xf]
    %v731 = vld [vmem:[%s1 + $0x9b4] sm:$0xf]
    %v732 = vld [vmem:[%s1 + $0x9b8] sm:$0xf]
    %v733 = vld [vmem:[%s1 + $0x9bc] sm:$0xf]
    %v734 = vld [vmem:[%s1 + $0x9c0] sm:$0xf]
    %v735 = vld [vmem:[%s1 + $0x9c4] sm:$0xf]
    %v736 = vld [vmem:[%s1 + $0x9c8] sm:$0xf]
    %v737 = vld [vmem:[%s1 + $0x9cc] sm:$0xf]
    %v738 = vld [vmem:[%s1 + $0x9d0] sm:$0xf]
    %v739 = vld [vmem:[%s1 + $0x9d4] sm:$0xf]
    %v740 = vld [vmem:[%s1 + $0x9d8] sm:$0xf]
    %v741 = vld [vmem:[%s1 + $0x9dc] sm:$0xf]
    %v742 = vld [vmem:[%s1 + $0x9e0] sm:$0xf]
    %v743 = vld [vmem:[%s1 + $0x9e4] sm:$0xf]
    %v744 = vld [vmem:[%s1 + $0x9e8] sm:$0xf]
    %v745 = vld [vmem:[%s1 + $0x9ec] sm:$0xf]
    %v746 = vld [vmem:[%s1 + $0x9f0] sm:$0xf]
    %v747 = vld [vmem:[%s1 + $0x9f4] sm:$0xf]
    %v748 = vld [vmem:[%s1 + $0x9f8] sm:$0xf]
    %v749 = vld [vmem:[%s1 + $0x9fc] sm:$0xf]
    %v750 = vld [vmem:[%s1 + $0xa00] sm:$0xf]
    %v751 = vld [vmem:[%s1 + $0xa04] sm:$0xf]
    %v752 = vld [vmem:[%s1 + $0xa08] sm:$0xf]
    %v753 = vld [vmem:[%s1 + $0xa0c] sm:$0xf]
    %v754 = vld [vmem:[%s1 + $0xa10] sm:$0xf]
    %v755 = vld [vmem:[%s1 + $0xa14] sm:$0xf]
    %v756 = vld [vmem:[%s1 + $0xa18] sm:$0xf]
    %v757 = vld [vmem:[%s1 + $0xa1c] sm:$0xf]
    %v758 = vld [vmem:[%s1 + $0xa20] sm:$0xf]
    %v759 = vld [vmem:[%s1 + $0xa24] sm:$0xf]
    %v760 = vld [vmem:[%s1 + $0xa28] sm:$0xf]
    %v761 = vld [vmem:[%s1 + $0xa2c] sm:$0xf]
    %v762 = vld [vmem:[%s1 + $0xa30] sm:$0xf]
    %v763 = vld [vmem:[%s1 + $0xa34] sm:$0xf]
    %v764 = vld [vmem:[%s1 + $0xa38] sm:$0xf]
    %v765 = vld [vmem:[%s1 + $0xa3c] sm:$0xf]
    %v766 = vld [vmem:[%s1 + $0xa40] sm:$0xf]
    %v767 = vld [vmem:[%s1 + $0xa44] sm:$0xf]
    %v768 = vld [vmem:[%s1 + $0xa48] sm:$0xf]
    %v769 = vld [vmem:[%s1 + $0xa4c] sm:$0xf]
    %v770 = vld [vmem:[%s1 + $0xa50] sm:$0xf]
    %v771 = vld [vmem:[%s1 + $0xa54] sm:$0xf]
    %v772 = vld [vmem:[%s1 + $0xa58] sm:$0xf]
    %v773 = vld [vmem:[%s1 + $0xa5c] sm:$0xf]
    %v774 = vld [vmem:[%s1 + $0xa60] sm:$0xf]
    %v775 = vld [vmem:[%s1 + $0xa64] sm:$0xf]
    %v776 = vld [vmem:[%s1 + $0xa68] sm:$0xf]
    %v777 = vld [vmem:[%s1 + $0xa6c] sm:$0xf]
    %v778 = vld [vmem:[%s1 + $0xa70] sm:$0xf]
    %v779 = vld [vmem:[%s1 + $0xa74] sm:$0xf]
    %v780 = vld [vmem:[%s1 + $0xa78] sm:$0xf]
    %v781 = vld [vmem:[%s1 + $0xa7c] sm:$0xf]
    %v782 = vld [vmem:[%s1 + $0xa80] sm:$0xf]
    %v783 = vld [vmem:[%s1 + $0xa84] sm:$0xf]
    %v784 = vld [vmem:[%s1 + $0xa88] sm:$0xf]
    %v785 = vld [vmem:[%s1 + $0xa8c] sm:$0xf]
    %v786 = vld [vmem:[%s1 + $0xa90] sm:$0xf]
    %v787 = vld [vmem:[%s1 + $0xa94] sm:$0xf]
    %v788 = vld [vmem:[%s1 + $0xa98] sm:$0xf]
    %v789 = vld [vmem:[%s1 + $0xa9c] sm:$0xf]
    %v790 = vld [vmem:[%s1 + $0xaa0] sm:$0xf]
    %v791 = vld [vmem:[%s1 + $0xaa4] sm:$0xf]
    %v792 = vld [vmem:[%s1 + $0xaa8] sm:$0xf]
    %v793 = vld [vmem:[%s1 + $0xaac] sm:$0xf]
    %v794 = vld [vmem:[%s1 + $0xab0] sm:$0xf]
    %v795 = vld [vmem:[%s1 + $0xab4] sm:$0xf]
    %v796 = vld [vmem:[%s1 + $0xab8] sm:$0xf]
    %v797 = vld [vmem:[%s1 + $0xabc] sm:$0xf]
    %v798 = vld [vmem:[%s1 + $0xac0] sm:$0xf]
    %v799 = vld [vmem:[%s1 + $0xac4] sm:$0xf]
    %v800 = vld [vmem:[%s1 + $0xac8] sm:$0xf]
    %v801 = vld [vmem:[%s1 + $0xacc] sm:$0xf]
    %v802 = vld [vmem:[%s1 + $0xad0] sm:$0xf]
    %v803 = vld [vmem:[%s1 + $0xad4] sm:$0xf]
    %v804 = vld [vmem:[%s1 + $0xad8] sm:$0xf]
    %v805 = vld [vmem:[%s1 + $0xadc] sm:$0xf]
    %v806 = vld [vmem:[%s1 + $0xae0] sm:$0xf]
    %v807 = vld [vmem:[%s1 + $0xae4] sm:$0xf]
    %v808 = vld [vmem:[%s1 + $0xae8] sm:$0xf]
    %v809 = vld [vmem:[%s1 + $0xaec] sm:$0xf]
    %v810 = vld [vmem:[%s1 + $0xaf0] sm:$0xf]
    %v811 = vld [vmem:[%s1 + $0xaf4] sm:$0xf]
    %v812 = vld [vmem:[%s1 + $0xaf8] sm:$0xf]
    %v813 = vld [vmem:[%s1 + $0xafc] sm:$0xf]
    %v814 = vld [vmem:[%s1 + $0xb00] sm:$0xf]
    %v815 = vld [vmem:[%s1 + $0xb04] sm:$0xf]
    %v816 = vld [vmem:[%s1 + $0xb08] sm:$0xf]
    %v817 = vld [vmem:[%s1 + $0xb0c] sm:$0xf]
    %v818 = vld [vmem:[%s1 + $0xb10] sm:$0xf]
    %v819 = vld [vmem:[%s1 + $0xb14] sm:$0xf]
    %v820 = vld [vmem:[%s1 + $0xb18] sm:$0xf]
    %v821 = vld [vmem:[%s1 + $0xb1c] sm:$0xf]
    %v822 = vld [vmem:[%s1 + $0xb20] sm:$0xf]
    %v823 = vld [vmem:[%s1 + $0xb24] sm:$0xf]
    %v824 = vld [vmem:[%s1 + $0xb28] sm:$0xf]
    %v825 = vld [vmem:[%s1 + $0xb2c] sm:$0xf]
    %v826 = vld [vmem:[%s1 + $0xb30] sm:$0xf]
    %v827 = vld [vmem:[%s1 + $0xb34] sm:$0xf]
    %v828 = vld [vmem:[%s1 + $0xb38] sm:$0xf]
    %v829 = vld [vmem:[%s1 + $0xb3c] sm:$0xf]
    %v830 = vld [vmem:[%s1 + $0xb40] sm:$0xf]
    %v831 = vld [vmem:[%s1 + $0xb44] sm:$0xf]
    %v832 = vld [vmem:[%s1 + $0xb48] sm:$0xf]
    %v833 = vld [vmem:[%s1 + $0xb4c] sm:$0xf]
    %v834 = vld [vmem:[%s1 + $0xb50] sm:$0xf]
    %v835 = vld [vmem:[%s1 + $0xb54] sm:$0xf]
    %v836 = vld [vmem:[%s1 + $0xb58] sm:$0xf]
    %v837 = vld [vmem:[%s1 + $0xb5c] sm:$0xf]
    %v838 = vld [vmem:[%s1 + $0xb60] sm:$0xf]
    %v839 = vld [vmem:[%s1 + $0xb64] sm:$0xf]
    %v840 = vld [vmem:[%s1 + $0xb68] sm:$0xf]
    %v841 = vld [vmem:[%s1 + $0xb6c] sm:$0xf]
    %v842 = vld [vmem:[%s1 + $0xb70] sm:$0xf]
    %v843 = vld [vmem:[%s1 + $0xb74] sm:$0xf]
    %v844 = vld [vmem:[%s1 + $0xb78] sm:$0xf]
    %v845 = vld [vmem:[%s1 + $0xb7c] sm:$0xf]
    %v846 = vld [vmem:[%s1 + $0xb80] sm:$0xf]
    %v847 = vld [vmem:[%s1 + $0xb84] sm:$0xf]
    %v848 = vld [vmem:[%s1 + $0xb88] sm:$0xf]
    %v849 = vld [vmem:[%s1 + $0xb8c] sm:$0xf]
    %v850 = vld [vmem:[%s1 + $0xb90] sm:$0xf]
    %v851 = vld [vmem:[%s1 + $0xb94] sm:$0xf]
    %v852 = vld [vmem:[%s1 + $0xb98] sm:$0xf]
    %v853 = vld [vmem:[%s1 + $0xb9c] sm:$0xf]
    %v854 = vld [vmem:[%s1 + $0xba0] sm:$0xf]
    %v855 = vld [vmem:[%s1 + $0xba4] sm:$0xf]
    %v856 = vld [vmem:[%s1 + $0xba8] sm:$0xf]
    %v857 = vld [vmem:[%s1 + $0xbac] sm:$0xf]
    %v858 = vld [vmem:[%s1 + $0xbb0] sm:$0xf]
    %v859 = vld [vmem:[%s1 + $0xbb4] sm:$0xf]
    %v860 = vld [vmem:[%s1 + $0xbb8] sm:$0xf]
    %v861 = vld [vmem:[%s1 + $0xbbc] sm:$0xf]
    %v862 = vld [vmem:[%s1 + $0xbc0] sm:$0xf]
    %v863 = vld [vmem:[%s1 + $0xbc4] sm:$0xf]
    %v864 = vld [vmem:[%s1 + $0xbc8] sm:$0xf]
    %v865 = vld [vmem:[%s1 + $0xbcc] sm:$0xf]
    %v866 = vld [vmem:[%s1 + $0xbd0] sm:$0xf]
    %v867 = vld [vmem:[%s1 + $0xbd4] sm:$0xf]
    %v868 = vld [vmem:[%s1 + $0xbd8] sm:$0xf]
    %v869 = vld [vmem:[%s1 + $0xbdc] sm:$0xf]
    %v870 = vld [vmem:[%s1 + $0xbe0] sm:$0xf]
    %v871 = vld [vmem:[%s1 + $0xbe4] sm:$0xf]
    %v872 = vld [vmem:[%s1 + $0xbe8] sm:$0xf]
    %v873 = vld [vmem:[%s1 + $0xbec] sm:$0xf]
    %v874 = vld [vmem:[%s1 + $0xbf0] sm:$0xf]
    %v875 = vld [vmem:[%s1 + $0xbf4] sm:$0xf]
    %v876 = vld [vmem:[%s1 + $0xbf8] sm:$0xf]
    %v877 = vld [vmem:[%s1 + $0xbfc] sm:$0xf]
    %v878 = vld [vmem:[%s1 + $0xc00] sm:$0xf]
    %v879 = vld [vmem:[%s1 + $0xc04] sm:$0xf]
    %v880 = vld [vmem:[%s1 + $0xc08] sm:$0xf]
    %v881 = vld [vmem:[%s1 + $0xc0c] sm:$0xf]
    %v882 = vld [vmem:[%s1 + $0xc10] sm:$0xf]
    %v883 = vld [vmem:[%s1 + $0xc14] sm:$0xf]
    %v884 = vld [vmem:[%s1 + $0xc18] sm:$0xf]
    %v885 = vld [vmem:[%s1 + $0xc1c] sm:$0xf]
    %v886 = vld [vmem:[%s1 + $0xc20] sm:$0xf]
    %v887 = vld [vmem:[%s1 + $0xc24] sm:$0xf]
    %v888 = vld [vmem:[%s1 + $0xc28] sm:$0xf]
    %v889 = vld [vmem:[%s1 + $0xc2c] sm:$0xf]
    %v890 = vld [vmem:[%s1 + $0xc30] sm:$0xf]
    %v891 = vld [vmem:[%s1 + $0xc34] sm:$0xf]
    %v892 = vld [vmem:[%s1 + $0xc38] sm:$0xf]
    %v893 = vld [vmem:[%s1 + $0xc3c] sm:$0xf]
    %v894 = vld [vmem:[%s1 + $0xc40] sm:$0xf]
    %v895 = vld [vmem:[%s1 + $0xc44] sm:$0xf]
    %v896 = vld [vmem:[%s1 + $0xc48] sm:$0xf]
    %v897 = vld [vmem:[%s1 + $0xc4c] sm:$0xf]
    %v898 = vld [vmem:[%s1 + $0xc50] sm:$0xf]
    %v899 = vld [vmem:[%s1 + $0xc54] sm:$0xf]
    %v900 = vld [vmem:[%s1 + $0xc58] sm:$0xf]
    %v901 = vld [vmem:[%s1 + $0xc5c] sm:$0xf]
    %v902 = vld [vmem:[%s1 + $0xc60] sm:$0xf]
    %v903 = vld [vmem:[%s1 + $0xc64] sm:$0xf]
    %v904 = vld [vmem:[%s1 + $0xc68] sm:$0xf]
    %v905 = vld [vmem:[%s1 + $0xc6c] sm:$0xf]
    %v906 = vld [vmem:[%s1 + $0xc70] sm:$0xf]
    %v907 = vld [vmem:[%s1 + $0xc74] sm:$0xf]
    %v908 = vld [vmem:[%s1 + $0xc78] sm:$0xf]
    %v909 = vld [vmem:[%s1 + $0xc7c] sm:$0xf]
    %v910 = vld [vmem:[%s1 + $0xc80] sm:$0xf]
    %v911 = vld [vmem:[%s1 + $0xc84] sm:$0xf]
    %v912 = vld [vmem:[%s1 + $0xc88] sm:$0xf]
    %v913 = vld [vmem:[%s1 + $0xc8c] sm:$0xf]
    %v914 = vld [vmem:[%s1 + $0xc90] sm:$0xf]
    %v915 = vld [vmem:[%s1 + $0xc94] sm:$0xf]
    %v916 = vld [vmem:[%s1 + $0xc98] sm:$0xf]
    %v917 = vld [vmem:[%s1 + $0xc9c] sm:$0xf]
    %v918 = vld [vmem:[%s1 + $0xca0] sm:$0xf]
    %v919 = vld [vmem:[%s1 + $0xca4] sm:$0xf]
    %v920 = vld [vmem:[%s1 + $0xca8] sm:$0xf]
    %v921 = vld [vmem:[%s1 + $0xcac] sm:$0xf]
    %v922 = vld [vmem:[%s1 + $0xcb0] sm:$0xf]
    %v923 = vld [vmem:[%s1 + $0xcb4] sm:$0xf]
    %v924 = vld [vmem:[%s1 + $0xcb8] sm:$0xf]
    %v925 = vld [vmem:[%s1 + $0xcbc] sm:$0xf]
    %v926 = vld [vmem:[%s1 + $0xcc0] sm:$0xf]
    %v927 = vld [vmem:[%s1 + $0xcc4] sm:$0xf]
    %v928 = vld [vmem:[%s1 + $0xcc8] sm:$0xf]
    %v929 = vld [vmem:[%s1 + $0xccc] sm:$0xf]
    %v930 = vld [vmem:[%s1 + $0xcd0] sm:$0xf]
    %v931 = vld [vmem:[%s1 + $0xcd4] sm:$0xf]
    %v932 = vld [vmem:[%s1 + $0xcd8] sm:$0xf]
    %v933 = vld [vmem:[%s1 + $0xcdc] sm:$0xf]
    %v934 = vld [vmem:[%s1 + $0xce0] sm:$0xf]
    %v935 = vld [vmem:[%s1 + $0xce4] sm:$0xf]
    %v936 = vld [vmem:[%s1 + $0xce8] sm:$0xf]
    %v937 = vld [vmem:[%s1 + $0xcec] sm:$0xf]
    %v938 = vld [vmem:[%s1 + $0xcf0] sm:$0xf]
    %v939 = vld [vmem:[%s1 + $0xcf4] sm:$0xf]
    %v940 = vld [vmem:[%s1 + $0xcf8] sm:$0xf]
    %v941 = vld [vmem:[%s1 + $0xcfc] sm:$0xf]
    %v942 = vld [vmem:[%s1 + $0xd00] sm:$0xf]
    %v943 = vld [vmem:[%s1 + $0xd04] sm:$0xf]
    %v944 = vld [vmem:[%s1 + $0xd08] sm:$0xf]
    %v945 = vld [vmem:[%s1 + $0xd0c] sm:$0xf]
    %v946 = vld [vmem:[%s1 + $0xd10] sm:$0xf]
    %v947 = vld [vmem:[%s1 + $0xd14] sm:$0xf]
    %v948 = vld [vmem:[%s1 + $0xd18] sm:$0xf]
    %v949 = vld [vmem:[%s1 + $0xd1c] sm:$0xf]
    %v950 = vld [vmem:[%s1 + $0xd20] sm:$0xf]
    %v951 = vld [vmem:[%s1 + $0xd24] sm:$0xf]
    %v952 = vld [vmem:[%s1 + $0xd28] sm:$0xf]
    %v953 = vld [vmem:[%s1 + $0xd2c] sm:$0xf]
    %v954 = vld [vmem:[%s1 + $0xd30] sm:$0xf]
    %v955 = vld [vmem:[%s1 + $0xd34] sm:$0xf]
    %v956 = vld [vmem:[%s1 + $0xd38] sm:$0xf]
    %v957 = vld [vmem:[%s1 + $0xd3c] sm:$0xf]
    %v958 = vld [vmem:[%s1 + $0xd40] sm:$0xf]
    %v959 = vld [vmem:[%s1 + $0xd44] sm:$0xf]
    %v960 = vld [vmem:[%s1 + $0xd48] sm:$0xf]
    %v961 = vld [vmem:[%s1 + $0xd4c] sm:$0xf]
    %v962 = vld [vmem:[%s1 + $0xd50] sm:$0xf]
    %v963 = vld [vmem:[%s1 + $0xd54] sm:$0xf]
    %v964 = vld [vmem:[%s1 + $0xd58] sm:$0xf]
    %v965 = vld [vmem:[%s1 + $0xd5c] sm:$0xf]
    %v966 = vld [vmem:[%s1 + $0xd60] sm:$0xf]
    %v967 = vld [vmem:[%s1 + $0xd64] sm:$0xf]
    %v968 = vld [vmem:[%s1 + $0xd68] sm:$0xf]
    %v969 = vld [vmem:[%s1 + $0xd6c] sm:$0xf]
    %v970 = vld [vmem:[%s1 + $0xd70] sm:$0xf]
    %v971 = vld [vmem:[%s1 + $0xd74] sm:$0xf]
    %v972 = vld [vmem:[%s1 + $0xd78] sm:$0xf]
    %v973 = vld [vmem:[%s1 + $0xd7c] sm:$0xf]
    %v974 = vld [vmem:[%s1 + $0xd80] sm:$0xf]
    %v975 = vld [vmem:[%s1 + $0xd84] sm:$0xf]
    %v976 = vld [vmem:[%s1 + $0xd88] sm:$0xf]
    %v977 = vld [vmem:[%s1 + $0xd8c] sm:$0xf]
    %v978 = vld [vmem:[%s1 + $0xd90] sm:$0xf]
    %v979 = vld [vmem:[%s1 + $0xd94] sm:$0xf]
    %v980 = vld [vmem:[%s1 + $0xd98] sm:$0xf]
    %v981 = vld [vmem:[%s1 + $0xd9c] sm:$0xf]
    %v982 = vld [vmem:[%s1 + $0xda0] sm:$0xf]
    %v983 = vld [vmem:[%s1 + $0xda4] sm:$0xf]
    %v984 = vld [vmem:[%s1 + $0xda8] sm:$0xf]
    %v985 = vld [vmem:[%s1 + $0xdac] sm:$0xf]
    %v986 = vld [vmem:[%s1 + $0xdb0] sm:$0xf]
    %v987 = vld [vmem:[%s1 + $0xdb4] sm:$0xf]
    %v988 = vld [vmem:[%s1 + $0xdb8] sm:$0xf]
    %v989 = vld [vmem:[%s1 + $0xdbc] sm:$0xf]
    %v990 = vld [vmem:[%s1 + $0xdc0] sm:$0xf]
    %v991 = vld [vmem:[%s1 + $0xdc4] sm:$0xf]
    %v992 = vld [vmem:[%s1 + $0xdc8] sm:$0xf]
    %v993 = vld [vmem:[%s1 + $0xdcc] sm:$0xf]
    %v994 = vld [vmem:[%s1 + $0xdd0] sm:$0xf]
    %v995 = vld [vmem:[%s1 + $0xdd4] sm:$0xf]
    %v996 = vld [vmem:[%s1 + $0xdd8] sm:$0xf]
    %v997 = vld [vmem:[%s1 + $0xddc] sm:$0xf]
    %v998 = vld [vmem:[%s1 + $0xde0] sm:$0xf]
    %v999 = vld [vmem:[%s1 + $0xde4] sm:$0xf]
    %v1000 = vld [vmem:[%s1 + $0xde8] sm:$0xf]
    %v1001 = vld [vmem:[%s1 + $0xdec] sm:$0xf]
    %v1002 = vld [vmem:[%s1 + $0xdf0] sm:$0xf]
    %v1003 = vld [vmem:[%s1 + $0xdf4] sm:$0xf]
    %v1004 = vld [vmem:[%s1 + $0xdf8] sm:$0xf]
    %v1005 = vld [vmem:[%s1 + $0xdfc] sm:$0xf]
    %v1006 = vld [vmem:[%s1 + $0xe00] sm:$0xf]
    %v1007 = vld [vmem:[%s1 + $0xe04] sm:$0xf]
    %v1008 = vld [vmem:[%s1 + $0xe08] sm:$0xf]
    %v1009 = vld [vmem:[%s1 + $0xe0c] sm:$0xf]
    %v1010 = vld [vmem:[%s1 + $0xe10] sm:$0xf]
    %v1011 = vld [vmem:[%s1 + $0xe14] sm:$0xf]
    %v1012 = vld [vmem:[%s1 + $0xe18] sm:$0xf]
    %v1013 = vld [vmem:[%s1 + $0xe1c] sm:$0xf]
    %v1014 = vld [vmem:[%s1 + $0xe20] sm:$0xf]
    %v1015 = vld [vmem:[%s1 + $0xe24] sm:$0xf]
    %v1016 = vld [vmem:[%s1 + $0xe28] sm:$0xf]
    %v1017 = vld [vmem:[%s1 + $0xe2c] sm:$0xf]
    %v1018 = vld [vmem:[%s1 + $0xe30] sm:$0xf]
    %v1019 = vld [vmem:[%s1 + $0xe34] sm:$0xf]
    %v1020 = vld [vmem:[%s1 + $0xe38] sm:$0xf]
    %v1021 = vld [vmem:[%s1 + $0xe3c] sm:$0xf]
    %v1022 = vld [vmem:[%s1 + $0xe40] sm:$0xf]
    %v1023 = vld [vmem:[%s1 + $0xe44] sm:$0xf]
    %v1024 = vld [vmem:[%s1 + $0xe48] sm:$0xf]
    %v1025 = vld [vmem:[%s1 + $0xe4c] sm:$0xf]
    %v1026 = vld [vmem:[%s1 + $0xe50] sm:$0xf]
    %v1027 = vld [vmem:[%s1 + $0xe54] sm:$0xf]
    %v1028 = vld [vmem:[%s1 + $0xe58] sm:$0xf]
    %v1029 = vld [vmem:[%s1 + $0xe5c] sm:$0xf]
    %v1030 = vld [vmem:[%s1 + $0xe60] sm:$0xf]
    %v1031 = vld [vmem:[%s1 + $0xe64] sm:$0xf]
    %v1032 = vld [vmem:[%s1 + $0xe68] sm:$0xf]
    %v1033 = vld [vmem:[%s1 + $0xe6c] sm:$0xf]
    %v1034 = vld [vmem:[%s1 + $0xe70] sm:$0xf]
    %v1035 = vld [vmem:[%s1 + $0xe74] sm:$0xf]
    %v1036 = vld [vmem:[%s1 + $0xe78] sm:$0xf]
    %v1037 = vld [vmem:[%s1 + $0xe7c] sm:$0xf]
    %v1038 = vld [vmem:[%s1 + $0xe80] sm:$0xf]
    %v1039 = vld [vmem:[%s1 + $0xe84] sm:$0xf]
    %v1040 = vld [vmem:[%s1 + $0xe88] sm:$0xf]
    %v1041 = vld [vmem:[%s1 + $0xe8c] sm:$0xf]
    %v1042 = vld [vmem:[%s1 + $0xe90] sm:$0xf]
    %v1043 = vld [vmem:[%s1 + $0xe94] sm:$0xf]
    %v1044 = vld [vmem:[%s1 + $0xe98] sm:$0xf]
    %v1045 = vld [vmem:[%s1 + $0xe9c] sm:$0xf]
    %v1046 = vld [vmem:[%s1 + $0xea0] sm:$0xf]
    %v1047 = vld [vmem:[%s1 + $0xea4] sm:$0xf]
    %v1048 = vld [vmem:[%s1 + $0xea8] sm:$0xf]
    %v1049 = vld [vmem:[%s1 + $0xeac] sm:$0xf]
    %v1050 = vld [vmem:[%s1 + $0xeb0] sm:$0xf]
    %v1051 = vld [vmem:[%s1 + $0xeb4] sm:$0xf]
    %v1052 = vld [vmem:[%s1 + $0xeb8] sm:$0xf]
    %v1053 = vld [vmem:[%s1 + $0xebc] sm:$0xf]
    %v1054 = vld [vmem:[%s1 + $0xec0] sm:$0xf]
    %v1055 = vld [vmem:[%s1 + $0xec4] sm:$0xf]
    %v1056 = vld [vmem:[%s1 + $0xec8] sm:$0xf]
    %v1057 = vld [vmem:[%s1 + $0xecc] sm:$0xf]
    %v1058 = vld [vmem:[%s1 + $0xed0] sm:$0xf]
    %v1059 = vld [vmem:[%s1 + $0xed4] sm:$0xf]
    %v1060 = vld [vmem:[%s1 + $0xed8] sm:$0xf]
    %v1061 = vld [vmem:[%s1 + $0xedc] sm:$0xf]
    %v1062 = vld [vmem:[%s1 + $0xee0] sm:$0xf]
    %v1063 = vld [vmem:[%s1 + $0xee4] sm:$0xf]
    %v1064 = vld [vmem:[%s1 + $0xee8] sm:$0xf]
    %v1065 = vld [vmem:[%s1 + $0xeec] sm:$0xf]
    %v1066 = vld [vmem:[%s1 + $0xef0] sm:$0xf]
    %v1067 = vld [vmem:[%s1 + $0xef4] sm:$0xf]
    %v1068 = vld [vmem:[%s1 + $0xef8] sm:$0xf]
    %v1069 = vld [vmem:[%s1 + $0xefc] sm:$0xf]
    %v1070 = vld [vmem:[%s1 + $0xf00] sm:$0xf]
    %v1071 = vld [vmem:[%s1 + $0xf04] sm:$0xf]
    %v1072 = vld [vmem:[%s1 + $0xf08] sm:$0xf]
    %v1073 = vld [vmem:[%s1 + $0xf0c] sm:$0xf]
    %v1074 = vld [vmem:[%s1 + $0xf10] sm:$0xf]
    %v1075 = vld [vmem:[%s1 + $0xf14] sm:$0xf]
    %v1076 = vld [vmem:[%s1 + $0xf18] sm:$0xf]
    %v1077 = vld [vmem:[%s1 + $0xf1c] sm:$0xf]
    %v1078 = vld [vmem:[%s1 + $0xf20] sm:$0xf]
    %v1079 = vld [vmem:[%s1 + $0xf24] sm:$0xf]
    %v1080 = vld [vmem:[%s1 + $0xf28] sm:$0xf]
    %v1081 = vld [vmem:[%s1 + $0xf2c] sm:$0xf]
    %v1082 = vld [vmem:[%s1 + $0xf30] sm:$0xf]
    %v1083 = vld [vmem:[%s1 + $0xf34] sm:$0xf]
    %v1084 = vld [vmem:[%s1 + $0xf38] sm:$0xf]
    %v1085 = vld [vmem:[%s1 + $0xf3c] sm:$0xf]
    %v1086 = vld [vmem:[%s1 + $0xf40] sm:$0xf]
    %v1087 = vld [vmem:[%s1 + $0xf44] sm:$0xf]
    %v1088 = vld [vmem:[%s1 + $0xf48] sm:$0xf]
    %v1089 = vld [vmem:[%s1 + $0xf4c] sm:$0xf]
    %v1090 = vld [vmem:[%s1 + $0xf50] sm:$0xf]
    %v1091 = vld [vmem:[%s1 + $0xf54] sm:$0xf]
    %v1092 = vld [vmem:[%s1 + $0xf58] sm:$0xf]
    %v1093 = vld [vmem:[%s1 + $0xf5c] sm:$0xf]
    %v1094 = vld [vmem:[%s1 + $0xf60] sm:$0xf]
    %v1095 = vld [vmem:[%s1 + $0xf64] sm:$0xf]
    %v1096 = vld [vmem:[%s1 + $0xf68] sm:$0xf]
    %v1097 = vld [vmem:[%s1 + $0xf6c] sm:$0xf]
    %v1098 = vld [vmem:[%s1 + $0xf70] sm:$0xf]
    %v1099 = vld [vmem:[%s1 + $0xf74] sm:$0xf]
    %v1100 = vld [vmem:[%s1 + $0xf78] sm:$0xf]
    %v1101 = vld [vmem:[%s1 + $0xf7c] sm:$0xf]
    %v1102 = vld [vmem:[%s1 + $0xf80] sm:$0xf]
    %v1103 = vld [vmem:[%s1 + $0xf84] sm:$0xf]
    %v1104 = vld [vmem:[%s1 + $0xf88] sm:$0xf]
    %v1105 = vld [vmem:[%s1 + $0xf8c] sm:$0xf]
    %v1106 = vld [vmem:[%s1 + $0xf90] sm:$0xf]
    %v1107 = vld [vmem:[%s1 + $0xf94] sm:$0xf]
    %v1108 = vld [vmem:[%s1 + $0xf98] sm:$0xf]
    %v1109 = vld [vmem:[%s1 + $0xf9c] sm:$0xf]
    %v1110 = vld [vmem:[%s1 + $0xfa0] sm:$0xf]
    %v1111 = vld [vmem:[%s1 + $0xfa4] sm:$0xf]
    %v1112 = vld [vmem:[%s1 + $0xfa8] sm:$0xf]
    %v1113 = vld [vmem:[%s1 + $0xfac] sm:$0xf]
    %v1114 = vld [vmem:[%s1 + $0xfb0] sm:$0xf]
    %v1115 = vld [vmem:[%s1 + $0xfb4] sm:$0xf]
    %v1116 = vld [vmem:[%s1 + $0xfb8] sm:$0xf]
    %v1117 = vld [vmem:[%s1 + $0xfbc] sm:$0xf]
    %v1118 = vld [vmem:[%s1 + $0xfc0] sm:$0xf]
    %v1119 = vld [vmem:[%s1 + $0xfc4] sm:$0xf]
    %v1120 = vld [vmem:[%s1 + $0xfc8] sm:$0xf]
    %v1121 = vld [vmem:[%s1 + $0xfcc] sm:$0xf]
    %v1122 = vld [vmem:[%s1 + $0xfd0] sm:$0xf]
    %v1123 = vld [vmem:[%s1 + $0xfd4] sm:$0xf]
    %v1124 = vld [vmem:[%s1 + $0xfd8] sm:$0xf]
    %v1125 = vld [vmem:[%s1 + $0xfdc] sm:$0xf]
    %v1126 = vld [vmem:[%s1 + $0xfe0] sm:$0xf]
    %v1127 = vld [vmem:[%s1 + $0xfe4] sm:$0xf]
    %v1128 = vld [vmem:[%s1 + $0xfe8] sm:$0xf]
    %v1129 = vld [vmem:[%s1 + $0xfec] sm:$0xf]
    %v1130 = vld [vmem:[%s1 + $0xff0] sm:$0xf]
    %v1131 = vld [vmem:[%s1 + $0xff4] sm:$0xf]
    %v1132 = vld [vmem:[%s1 + $0xff8] sm:$0xf]
    %v1133 = vld [vmem:[%s1 + $0xffc] sm:$0xf]
    %v1134 = vld [vmem:[%s1 + $0x1000] sm:$0xf]
    %v1135 = vld [vmem:[%s1 + $0x1004] sm:$0xf]
    %v1136 = vld [vmem:[%s1 + $0x1008] sm:$0xf]
    %v1137 = vld [vmem:[%s1 + $0x100c] sm:$0xf]
    %v1138 = vld [vmem:[%s1 + $0x1010] sm:$0xf]
    %v1139 = vld [vmem:[%s1 + $0x1014] sm:$0xf]
    %v1140 = vld [vmem:[%s1 + $0x1018] sm:$0xf]
    %v1141 = vld [vmem:[%s1 + $0x101c] sm:$0xf]
    %v1142 = vld [vmem:[%s1 + $0x1020] sm:$0xf]
    %v1143 = vld [vmem:[%s1 + $0x1024] sm:$0xf]
    %v1144 = vld [vmem:[%s1 + $0x1028] sm:$0xf]
    %v1145 = vld [vmem:[%s1 + $0x102c] sm:$0xf]
    %v1146 = vld [vmem:[%s1 + $0x1030] sm:$0xf]
    %v1147 = vld [vmem:[%s1 + $0x1034] sm:$0xf]
    %v1148 = vld [vmem:[%s1 + $0x1038] sm:$0xf]
    %v1149 = vld [vmem:[%s1 + $0x103c] sm:$0xf]
    %v1150 = vld [vmem:[%s1 + $0x1040] sm:$0xf]
    %v1151 = vld [vmem:[%s1 + $0x1044] sm:$0xf]
    %v1152 = vld [vmem:[%s1 + $0x1048] sm:$0xf]
    %v1153 = vld [vmem:[%s1 + $0x104c] sm:$0xf]
    %v1154 = vld [vmem:[%s1 + $0x1050] sm:$0xf]
    %v1155 = vld [vmem:[%s1 + $0x1054] sm:$0xf]
    %v1156 = vld [vmem:[%s1 + $0x1058] sm:$0xf]
    %v1157 = vld [vmem:[%s1 + $0x105c] sm:$0xf]
    %v1158 = vld [vmem:[%s1 + $0x1060] sm:$0xf]
    %v1159 = vld [vmem:[%s1 + $0x1064] sm:$0xf]
    %v1160 = vld [vmem:[%s1 + $0x1068] sm:$0xf]
    %v1161 = vld [vmem:[%s1 + $0x106c] sm:$0xf]
    %v1162 = vld [vmem:[%s1 + $0x1070] sm:$0xf]
    %v1163 = vld [vmem:[%s1 + $0x1074] sm:$0xf]
    %v1164 = vld [vmem:[%s1 + $0x1078] sm:$0xf]
    %v1165 = vld [vmem:[%s1 + $0x107c] sm:$0xf]
    %v1166 = vld [vmem:[%s1 + $0x1080] sm:$0xf]
    %v1167 = vld [vmem:[%s1 + $0x1084] sm:$0xf]
    %v1168 = vld [vmem:[%s1 + $0x1088] sm:$0xf]
    %v1169 = vld [vmem:[%s1 + $0x108c] sm:$0xf]
    %v1170 = vld [vmem:[%s1 + $0x1090] sm:$0xf]
    %v1171 = vld [vmem:[%s1 + $0x1094] sm:$0xf]
    %v1172 = vld [vmem:[%s1 + $0x1098] sm:$0xf]
    %v1173 = vld [vmem:[%s1 + $0x109c] sm:$0xf]
    %v1174 = vld [vmem:[%s1 + $0x10a0] sm:$0xf]
    %v1175 = vld [vmem:[%s1 + $0x10a4] sm:$0xf]
    %v1176 = vld [vmem:[%s1 + $0x10a8] sm:$0xf]
    %v1177 = vld [vmem:[%s1 + $0x10ac] sm:$0xf]
    %v1178 = vld [vmem:[%s1 + $0x10b0] sm:$0xf]
    %v1179 = vld [vmem:[%s1 + $0x10b4] sm:$0xf]
    %v1180 = vld [vmem:[%s1 + $0x10b8] sm:$0xf]
    %v1181 = vld [vmem:[%s1 + $0x10bc] sm:$0xf]
    %v1182 = vld [vmem:[%s1 + $0x10c0] sm:$0xf]
    %v1183 = vld [vmem:[%s1 + $0x10c4] sm:$0xf]
    %v1184 = vld [vmem:[%s1 + $0x10c8] sm:$0xf]
    %v1185 = vld [vmem:[%s1 + $0x10cc] sm:$0xf]
    %v1186 = vld [vmem:[%s1 + $0x10d0] sm:$0xf]
    %v1187 = vld [vmem:[%s1 + $0x10d4] sm:$0xf]
    %v1188 = vld [vmem:[%s1 + $0x10d8] sm:$0xf]
    %v1189 = vld [vmem:[%s1 + $0x10dc] sm:$0xf]
    %v1190 = vld [vmem:[%s1 + $0x10e0] sm:$0xf]
    %v1191 = vld [vmem:[%s1 + $0x10e4] sm:$0xf]
    %v1192 = vld [vmem:[%s1 + $0x10e8] sm:$0xf]
    %v1193 = vld [vmem:[%s1 + $0x10ec] sm:$0xf]
    %v1194 = vld [vmem:[%s1 + $0x10f0] sm:$0xf]
    %v1195 = vld [vmem:[%s1 + $0x10f4] sm:$0xf]
    %v1196 = vld [vmem:[%s1 + $0x10f8] sm:$0xf]
    %v1197 = vld [vmem:[%s1 + $0x10fc] sm:$0xf]
    %v1198 = vld [vmem:[%s1 + $0x1100] sm:$0xf]
    %v1199 = vld [vmem:[%s1 + $0x1104] sm:$0xf]
    %v1200 = vld [vmem:[%s1 + $0x1108] sm:$0xf]
    %v1201 = vld [vmem:[%s1 + $0x110c] sm:$0xf]
    %v1202 = vld [vmem:[%s1 + $0x1110] sm:$0xf]
    %v1203 = vld [vmem:[%s1 + $0x1114] sm:$0xf]
    %v1204 = vld [vmem:[%s1 + $0x1118] sm:$0xf]
    %v1205 = vld [vmem:[%s1 + $0x111c] sm:$0xf]
    %v1206 = vld [vmem:[%s1 + $0x1120] sm:$0xf]
    %v1207 = vld [vmem:[%s1 + $0x1124] sm:$0xf]
    %v1208 = vld [vmem:[%s1 + $0x1128] sm:$0xf]
    %v1209 = vld [vmem:[%s1 + $0x112c] sm:$0xf]
    %v1210 = vld [vmem:[%s1 + $0x1130] sm:$0xf]
    %v1211 = vld [vmem:[%s1 + $0x1134] sm:$0xf]
    %v1212 = vld [vmem:[%s1 + $0x1138] sm:$0xf]
    %v1213 = vld [vmem:[%s1 + $0x113c] sm:$0xf]
    %v1214 = vld [vmem:[%s1 + $0x1140] sm:$0xf]
    %v1215 = vld [vmem:[%s1 + $0x1144] sm:$0xf]
    %v1216 = vld [vmem:[%s1 + $0x1148] sm:$0xf]
    %v1217 = vld [vmem:[%s1 + $0x114c] sm:$0xf]
    %v1218 = vld [vmem:[%s1 + $0x1150] sm:$0xf]
    %v1219 = vld [vmem:[%s1 + $0x1154] sm:$0xf]
    %v1220 = vld [vmem:[%s1 + $0x1158] sm:$0xf]
    %v1221 = vld [vmem:[%s1 + $0x115c] sm:$0xf]
    %v1222 = vld [vmem:[%s1 + $0x1160] sm:$0xf]
    %v1223 = vld [vmem:[%s1 + $0x1164] sm:$0xf]
    %v1224 = vld [vmem:[%s1 + $0x1168] sm:$0xf]
    %v1225 = vld [vmem:[%s1 + $0x116c] sm:$0xf]
    %v1226 = vld [vmem:[%s1 + $0x1170] sm:$0xf]
    %v1227 = vld [vmem:[%s1 + $0x1174] sm:$0xf]
    %v1228 = vld [vmem:[%s1 + $0x1178] sm:$0xf]
    %v1229 = vld [vmem:[%s1 + $0x117c] sm:$0xf]
    %v1230 = vld [vmem:[%s1 + $0x1180] sm:$0xf]
    %v1231 = vld [vmem:[%s1 + $0x1184] sm:$0xf]
    %v1232 = vld [vmem:[%s1 + $0x1188] sm:$0xf]
    %v1233 = vld [vmem:[%s1 + $0x118c] sm:$0xf]
    %v1234 = vld [vmem:[%s1 + $0x1190] sm:$0xf]
    %v1235 = vld [vmem:[%s1 + $0x1194] sm:$0xf]
    %v1236 = vld [vmem:[%s1 + $0x1198] sm:$0xf]
    %v1237 = vld [vmem:[%s1 + $0x119c] sm:$0xf]
    %v1238 = vld [vmem:[%s1 + $0x11a0] sm:$0xf]
    %v1239 = vld [vmem:[%s1 + $0x11a4] sm:$0xf]
    %v1240 = vld [vmem:[%s1 + $0x11a8] sm:$0xf]
    %v1241 = vld [vmem:[%s1 + $0x11ac] sm:$0xf]
    %v1242 = vld [vmem:[%s1 + $0x11b0] sm:$0xf]
    %v1243 = vld [vmem:[%s1 + $0x11b4] sm:$0xf]
    %v1244 = vld [vmem:[%s1 + $0x11b8] sm:$0xf]
    %v1245 = vld [vmem:[%s1 + $0x11bc] sm:$0xf]
    %v1246 = vld [vmem:[%s1 + $0x11c0] sm:$0xf]
    %v1247 = vld [vmem:[%s1 + $0x11c4] sm:$0xf]
    %v1248 = vld [vmem:[%s1 + $0x11c8] sm:$0xf]
    %v1249 = vld [vmem:[%s1 + $0x11cc] sm:$0xf]
    %v1250 = vld [vmem:[%s1 + $0x11d0] sm:$0xf]
    %v1251 = vld [vmem:[%s1 + $0x11d4] sm:$0xf]
    %v1252 = vld [vmem:[%s1 + $0x11d8] sm:$0xf]
    %v1253 = vld [vmem:[%s1 + $0x11dc] sm:$0xf]
    %v1254 = vld [vmem:[%s1 + $0x11e0] sm:$0xf]
    %v1255 = vld [vmem:[%s1 + $0x11e4] sm:$0xf]
    %v1256 = vld [vmem:[%s1 + $0x11e8] sm:$0xf]
    %v1257 = vld [vmem:[%s1 + $0x11ec] sm:$0xf]
    %v1258 = vld [vmem:[%s1 + $0x11f0] sm:$0xf]
    %v1259 = vld [vmem:[%s1 + $0x11f4] sm:$0xf]
    %v1260 = vld [vmem:[%s1 + $0x11f8] sm:$0xf]
    %v1261 = vld [vmem:[%s1 + $0x11fc] sm:$0xf]
    %v1262 = vld [vmem:[%s1 + $0x1200] sm:$0xf]
    %v1263 = vld [vmem:[%s1 + $0x1204] sm:$0xf]
    %v1264 = vld [vmem:[%s1 + $0x1208] sm:$0xf]
    %v1265 = vld [vmem:[%s1 + $0x120c] sm:$0xf]
    %v1266 = vld [vmem:[%s1 + $0x1210] sm:$0xf]
    %v1267 = vld [vmem:[%s1 + $0x1214] sm:$0xf]
    %v1268 = vld [vmem:[%s1 + $0x1218] sm:$0xf]
    %v1269 = vld [vmem:[%s1 + $0x121c] sm:$0xf]
    %v1270 = vld [vmem:[%s1 + $0x1220] sm:$0xf]
    %v1271 = vld [vmem:[%s1 + $0x1224] sm:$0xf]
    %v1272 = vld [vmem:[%s1 + $0x1228] sm:$0xf]
    %v1273 = vld [vmem:[%s1 + $0x122c] sm:$0xf]
    %v1274 = vld [vmem:[%s1 + $0x1230] sm:$0xf]
    %v1275 = vld [vmem:[%s1 + $0x1234] sm:$0xf]
    %v1276 = vld [vmem:[%s1 + $0x1238] sm:$0xf]
    %v1277 = vld [vmem:[%s1 + $0x123c] sm:$0xf]
    %v1278 = vld [vmem:[%s1 + $0x1240] sm:$0xf]
    %v1279 = vld [vmem:[%s1 + $0x1244] sm:$0xf]
    %v1280 = vld [vmem:[%s1 + $0x1248] sm:$0xf]
    %v1281 = vld [vmem:[%s1 + $0x124c] sm:$0xf]
    %v1282 = vld [vmem:[%s1 + $0x1250] sm:$0xf]
    %v1283 = vld [vmem:[%s1 + $0x1254] sm:$0xf]
    %v1284 = vld [vmem:[%s1 + $0x1258] sm:$0xf]
    %v1285 = vld [vmem:[%s1 + $0x125c] sm:$0xf]
    %v1286 = vld [vmem:[%s1 + $0x1260] sm:$0xf]
    %v1287 = vld [vmem:[%s1 + $0x1264] sm:$0xf]
    %v1288 = vld [vmem:[%s1 + $0x1268] sm:$0xf]
    %v1289 = vld [vmem:[%s1 + $0x126c] sm:$0xf]
    %v1290 = vld [vmem:[%s1 + $0x1270] sm:$0xf]
    %v1291 = vld [vmem:[%s1 + $0x1274] sm:$0xf]
    %v1292 = vld [vmem:[%s1 + $0x1278] sm:$0xf]
    %v1293 = vld [vmem:[%s1 + $0x127c] sm:$0xf]
    %v1294 = vld [vmem:[%s1 + $0x1280] sm:$0xf]
    %v1295 = vld [vmem:[%s1 + $0x1284] sm:$0xf]
    %v1296 = vld [vmem:[%s1 + $0x1288] sm:$0xf]
    %v1297 = vld [vmem:[%s1 + $0x128c] sm:$0xf]
    %v1298 = vld [vmem:[%s1 + $0x1290] sm:$0xf]
    %v1299 = vld [vmem:[%s1 + $0x1294] sm:$0xf]
    %v1300 = vld [vmem:[%s1 + $0x1298] sm:$0xf]
    %v1301 = vld [vmem:[%s1 + $0x129c] sm:$0xf]
    %v1302 = vld [vmem:[%s1 + $0x12a0] sm:$0xf]
    %v1303 = vld [vmem:[%s1 + $0x12a4] sm:$0xf]
    %v1304 = vld [vmem:[%s1 + $0x12a8] sm:$0xf]
    %v1305 = vld [vmem:[%s1 + $0x12ac] sm:$0xf]
    %v1306 = vld [vmem:[%s1 + $0x12b0] sm:$0xf]
    %v1307 = vld [vmem:[%s1 + $0x12b4] sm:$0xf]
    %v1308 = vld [vmem:[%s1 + $0x12b8] sm:$0xf]
    %v1309 = vld [vmem:[%s1 + $0x12bc] sm:$0xf]
    %v1310 = vld [vmem:[%s1 + $0x12c0] sm:$0xf]
    %v1311 = vld [vmem:[%s1 + $0x12c4] sm:$0xf]
    %v1312 = vld [vmem:[%s1 + $0x12c8] sm:$0xf]
    %v1313 = vld [vmem:[%s1 + $0x12cc] sm:$0xf]
    %v1314 = vld [vmem:[%s1 + $0x12d0] sm:$0xf]
    %v1315 = vld [vmem:[%s1 + $0x12d4] sm:$0xf]
    %v1316 = vld [vmem:[%s1 + $0x12d8] sm:$0xf]
    %v1317 = vld [vmem:[%s1 + $0x12dc] sm:$0xf]
    %v1318 = vld [vmem:[%s1 + $0x12e0] sm:$0xf]
    %v1319 = vld [vmem:[%s1 + $0x12e4] sm:$0xf]
    %v1320 = vld [vmem:[%s1 + $0x12e8] sm:$0xf]
    %v1321 = vld [vmem:[%s1 + $0x12ec] sm:$0xf]
    %v1322 = vld [vmem:[%s1 + $0x12f0] sm:$0xf]
    %v1323 = vld [vmem:[%s1 + $0x12f4] sm:$0xf]
    %v1324 = vld [vmem:[%s1 + $0x12f8] sm:$0xf]
    %v1325 = vld [vmem:[%s1 + $0x12fc] sm:$0xf]
    %v1326 = vld [vmem:[%s1 + $0x1300] sm:$0xf]
    %v1327 = vld [vmem:[%s1 + $0x1304] sm:$0xf]
    %v1328 = vld [vmem:[%s1 + $0x1308] sm:$0xf]
    %v1329 = vld [vmem:[%s1 + $0x130c] sm:$0xf]
    %v1330 = vld [vmem:[%s1 + $0x1310] sm:$0xf]
    %v1331 = vld [vmem:[%s1 + $0x1314] sm:$0xf]
    %v1332 = vld [vmem:[%s1 + $0x1318] sm:$0xf]
    %v1333 = vld [vmem:[%s1 + $0x131c] sm:$0xf]
    %v1334 = vld [vmem:[%s1 + $0x1320] sm:$0xf]
    %v1335 = vld [vmem:[%s1 + $0x1324] sm:$0xf]
    %v1336 = vld [vmem:[%s1 + $0x1328] sm:$0xf]
    %v1337 = vld [vmem:[%s1 + $0x132c] sm:$0xf]
    %v1338 = vld [vmem:[%s1 + $0x1330] sm:$0xf]
    %v1339 = vld [vmem:[%s1 + $0x1334] sm:$0xf]
    %v1340 = vld [vmem:[%s1 + $0x1338] sm:$0xf]
    %v1341 = vld [vmem:[%s1 + $0x133c] sm:$0xf]
    %v1342 = vld [vmem:[%s1 + $0x1340] sm:$0xf]
    %v1343 = vld [vmem:[%s1 + $0x1344] sm:$0xf]
    %v1344 = vld [vmem:[%s1 + $0x1348] sm:$0xf]
    %v1345 = vld [vmem:[%s1 + $0x134c] sm:$0xf]
    %v1346 = vld [vmem:[%s1 + $0x1350] sm:$0xf]
    %v1347 = vld [vmem:[%s1 + $0x1354] sm:$0xf]
    %v1348 = vld [vmem:[%s1 + $0x1358] sm:$0xf]
    %v1349 = vld [vmem:[%s1 + $0x135c] sm:$0xf]
    %v1350 = vld [vmem:[%s1 + $0x1360] sm:$0xf]
    %v1351 = vld [vmem:[%s1 + $0x1364] sm:$0xf]
    %v1352 = vld [vmem:[%s1 + $0x1368] sm:$0xf]
    %v1353 = vld [vmem:[%s1 + $0x136c] sm:$0xf]
    %v1354 = vld [vmem:[%s1 + $0x1370] sm:$0xf]
    %v1355 = vld [vmem:[%s1 + $0x1374] sm:$0xf]
    %v1356 = vld [vmem:[%s1 + $0x1378] sm:$0xf]
    %v1357 = vld [vmem:[%s1 + $0x137c] sm:$0xf]
    %v1358 = vld [vmem:[%s1 + $0x1380] sm:$0xf]
    %v1359 = vld [vmem:[%s1 + $0x1384] sm:$0xf]
    %v1360 = vld [vmem:[%s2] sm:$0x1]
    %v1362 = vlaneseq
    %v1363 = vshrl.u32 %v1362, 7
    %v1364 = vsub.s32 0, %v1363
    %v1365 = vrot.slane %v1360, %v1364
    %v1447 = vunpack.c.l.b16 %v30
    %v1448 = vunpack.c.h.b16 %v30
    %v1449 = vunpack.c.l.b16 %v31
    %v1450 = vunpack.c.h.b16 %v31
    %v1451 = vunpack.c.l.b16 %v32
    %v1452 = vunpack.c.h.b16 %v32
    %v1453 = vunpack.c.l.b16 %v33
    %v1454 = vunpack.c.h.b16 %v33
    %v1455 = vunpack.c.l.b16 %v34
    %v1456 = vunpack.c.h.b16 %v34
    %v1457 = vunpack.c.l.b16 %v35
    %v1458 = vunpack.c.h.b16 %v35
    %v1459 = vunpack.c.l.b16 %v36
    %v1460 = vunpack.c.h.b16 %v36
    %v1461 = vunpack.c.l.b16 %v37
    %v1462 = vunpack.c.h.b16 %v37
    %v1463 = vunpack.c.l.b16 %v38
    %v1464 = vunpack.c.h.b16 %v38
    %v1465 = vunpack.c.l.b16 %v39
    %v1466 = vunpack.c.h.b16 %v39
    %v1467 = vunpack.c.l.b16 %v40
    %v1468 = vunpack.c.h.b16 %v40
    %v1469 = vunpack.c.l.b16 %v41
    %v1470 = vunpack.c.h.b16 %v41
    %v1471 = vunpack.c.l.b16 %v42
    %v1472 = vunpack.c.h.b16 %v42
    %v1473 = vunpack.c.l.b16 %v43
    %v1474 = vunpack.c.h.b16 %v43
    %v1475 = vunpack.c.l.b16 %v44
    %v1476 = vunpack.c.h.b16 %v44
    %v1477 = vunpack.c.l.b16 %v45
    %v1478 = vunpack.c.h.b16 %v45
    %v1479 = vunpack.c.l.b16 %v46
    %v1480 = vunpack.c.h.b16 %v46
    %v1481 = vunpack.c.l.b16 %v47
    %v1482 = vunpack.c.h.b16 %v47
    %v1483 = vunpack.c.l.b16 %v48
    %v1484 = vunpack.c.h.b16 %v48
    %v1485 = vunpack.c.l.b16 %v49
    %v1486 = vunpack.c.h.b16 %v49
    %v1487 = vunpack.c.l.b16 %v50
    %v1488 = vunpack.c.h.b16 %v50
    %v1489 = vunpack.c.l.b16 %v51
    %v1490 = vunpack.c.h.b16 %v51
    %v1491 = vunpack.c.l.b16 %v52
    %v1492 = vunpack.c.h.b16 %v52
    %v1493 = vunpack.c.l.b16 %v53
    %v1494 = vunpack.c.h.b16 %v53
    %v1495 = vunpack.c.l.b16 %v54
    %v1496 = vunpack.c.h.b16 %v54
    %v1497 = vunpack.c.l.b16 %v55
    %v1498 = vunpack.c.h.b16 %v55
    %v1499 = vunpack.c.l.b16 %v56
    %v1500 = vunpack.c.h.b16 %v56
    %v1501 = vunpack.c.l.b16 %v57
    %v1502 = vunpack.c.h.b16 %v57
    %v1503 = vunpack.c.l.b16 %v58
    %v1504 = vunpack.c.h.b16 %v58
    %v1505 = vunpack.c.l.b16 %v59
    %v1506 = vunpack.c.h.b16 %v59
    %v1507 = vunpack.c.l.b16 %v60
    %v1508 = vunpack.c.h.b16 %v60
    %v1509 = vunpack.c.l.b16 %v61
    %v1510 = vunpack.c.h.b16 %v61
    %v1511 = vunpack.c.l.b16 %v62
    %v1512 = vunpack.c.h.b16 %v62
    %v1513 = vunpack.c.l.b16 %v63
    %v1514 = vunpack.c.h.b16 %v63
    %v1515 = vunpack.c.l.b16 %v64
    %v1516 = vunpack.c.h.b16 %v64
    %v1517 = vunpack.c.l.b16 %v65
    %v1518 = vunpack.c.h.b16 %v65
    %v1519 = vunpack.c.l.b16 %v66
    %v1520 = vunpack.c.h.b16 %v66
    %v1521 = vunpack.c.l.b16 %v67
    %v1522 = vunpack.c.h.b16 %v67
    %v1523 = vunpack.c.l.b16 %v68
    %v1524 = vunpack.c.h.b16 %v68
    %v1525 = vunpack.c.l.b16 %v69
    %v1526 = vunpack.c.l.b16 %v70
    %v1527 = vunpack.c.h.b16 %v70
    %v1528 = vunpack.c.l.b16 %v71
    %v1529 = vunpack.c.h.b16 %v71
    %v1530 = vunpack.c.l.b16 %v72
    %v1531 = vunpack.c.h.b16 %v72
    %v1532 = vunpack.c.l.b16 %v73
    %v1533 = vunpack.c.h.b16 %v73
    %v1534 = vunpack.c.l.b16 %v74
    %v1535 = vunpack.c.h.b16 %v74
    %v1536 = vunpack.c.l.b16 %v75
    %v1537 = vunpack.c.h.b16 %v75
    %v1538 = vunpack.c.l.b16 %v76
    %v1539 = vunpack.c.h.b16 %v76
    %v1540 = vunpack.c.l.b16 %v77
    %v1541 = vunpack.c.h.b16 %v77
    %v1542 = vunpack.c.l.b16 %v78
    %v1543 = vunpack.c.h.b16 %v78
    %v1544 = vunpack.c.l.b16 %v79
    %v1545 = vunpack.c.h.b16 %v79
    %v1546 = vunpack.c.l.b16 %v80
    %v1547 = vunpack.c.h.b16 %v80
    %v1548 = vunpack.c.l.b16 %v81
    %v1549 = vunpack.c.h.b16 %v81
    %v1550 = vunpack.c.l.b16 %v82
    %v1551 = vunpack.c.h.b16 %v82
    %v1552 = vunpack.c.l.b16 %v83
    %v1553 = vunpack.c.h.b16 %v83
    %v1554 = vunpack.c.l.b16 %v84
    %v1555 = vunpack.c.h.b16 %v84
    %v1556 = vunpack.c.l.b16 %v85
    %v1557 = vunpack.c.h.b16 %v85
    %v1558 = vunpack.c.l.b16 %v86
    %v1559 = vunpack.c.h.b16 %v86
    %v1560 = vunpack.c.l.b16 %v87
    %v1561 = vunpack.c.h.b16 %v87
    %v1562 = vunpack.c.l.b16 %v88
    %v1563 = vunpack.c.h.b16 %v88
    %v1564 = vunpack.c.l.b16 %v89
    %v1565 = vunpack.c.h.b16 %v89
    %v1566 = vunpack.c.l.b16 %v90
    %v1567 = vunpack.c.h.b16 %v90
    %v1568 = vunpack.c.l.b16 %v91
    %v1569 = vunpack.c.h.b16 %v91
    %v1570 = vunpack.c.l.b16 %v92
    %v1571 = vunpack.c.h.b16 %v92
    %v1572 = vunpack.c.l.b16 %v93
    %v1573 = vunpack.c.h.b16 %v93
    %v1574 = vunpack.c.l.b16 %v94
    %v1575 = vunpack.c.h.b16 %v94
    %v1576 = vunpack.c.l.b16 %v95
    %v1577 = vunpack.c.h.b16 %v95
    %v1578 = vunpack.c.l.b16 %v96
    %v1579 = vunpack.c.h.b16 %v96
    %v1580 = vunpack.c.l.b16 %v97
    %v1581 = vunpack.c.h.b16 %v97
    %v1582 = vunpack.c.l.b16 %v98
    %v1583 = vunpack.c.h.b16 %v98
    %v1584 = vunpack.c.l.b16 %v99
    %v1585 = vunpack.c.h.b16 %v99
    %v1586 = vunpack.c.l.b16 %v100
    %v1587 = vunpack.c.h.b16 %v100
    %v1588 = vunpack.c.l.b16 %v101
    %v1589 = vunpack.c.h.b16 %v101
    %v1590 = vunpack.c.l.b16 %v102
    %v1591 = vunpack.c.h.b16 %v102
    %v1592 = vunpack.c.l.b16 %v103
    %v1593 = vunpack.c.h.b16 %v103
    %v1594 = vunpack.c.l.b16 %v104
    %v1595 = vunpack.c.h.b16 %v104
    %v1596 = vunpack.c.l.b16 %v105
    %v1597 = vunpack.c.h.b16 %v105
    %v1598 = vunpack.c.l.b16 %v106
    %v1599 = vunpack.c.h.b16 %v106
    %v1600 = vunpack.c.l.b16 %v107
    %v1601 = vunpack.c.h.b16 %v107
    %v1602 = vunpack.c.l.b16 %v108
    %v1603 = vunpack.c.h.b16 %v108
    %v1604 = vunpack.c.l.b16 %v109
    %v1605 = vpack.c.b16 %v1526, %v1447
    %v1606 = vpack.c.b16 %v1527, %v1448
    %v1607 = vpack.c.b16 %v1528, %v1449
    %v1608 = vpack.c.b16 %v1529, %v1450
    %v1609 = vpack.c.b16 %v1530, %v1451
    %v1610 = vpack.c.b16 %v1531, %v1452
    %v1611 = vpack.c.b16 %v1532, %v1453
    %v1612 = vpack.c.b16 %v1533, %v1454
    %v1613 = vpack.c.b16 %v1534, %v1455
    %v1614 = vpack.c.b16 %v1535, %v1456
    %v1615 = vpack.c.b16 %v1536, %v1457
    %v1616 = vpack.c.b16 %v1537, %v1458
    %v1617 = vpack.c.b16 %v1538, %v1459
    %v1618 = vpack.c.b16 %v1539, %v1460
    %v1619 = vpack.c.b16 %v1540, %v1461
    %v1620 = vpack.c.b16 %v1541, %v1462
    %v1621 = vpack.c.b16 %v1542, %v1463
    %v1622 = vpack.c.b16 %v1543, %v1464
    %v1623 = vpack.c.b16 %v1544, %v1465
    %v1624 = vpack.c.b16 %v1545, %v1466
    %v1625 = vpack.c.b16 %v1546, %v1467
    %v1626 = vpack.c.b16 %v1547, %v1468
    %v1627 = vpack.c.b16 %v1548, %v1469
    %v1628 = vpack.c.b16 %v1549, %v1470
    %v1629 = vpack.c.b16 %v1550, %v1471
    %v1630 = vpack.c.b16 %v1551, %v1472
    %v1631 = vpack.c.b16 %v1552, %v1473
    %v1632 = vpack.c.b16 %v1553, %v1474
    %v1633 = vpack.c.b16 %v1554, %v1475
    %v1634 = vpack.c.b16 %v1555, %v1476
    %v1635 = vpack.c.b16 %v1556, %v1477
    %v1636 = vpack.c.b16 %v1557, %v1478
    %v1637 = vpack.c.b16 %v1558, %v1479
    %v1638 = vpack.c.b16 %v1559, %v1480
    %v1639 = vpack.c.b16 %v1560, %v1481
    %v1640 = vpack.c.b16 %v1561, %v1482
    %v1641 = vpack.c.b16 %v1562, %v1483
    %v1642 = vpack.c.b16 %v1563, %v1484
    %v1643 = vpack.c.b16 %v1564, %v1485
    %v1644 = vpack.c.b16 %v1565, %v1486
    %v1645 = vpack.c.b16 %v1566, %v1487
    %v1646 = vpack.c.b16 %v1567, %v1488
    %v1647 = vpack.c.b16 %v1568, %v1489
    %v1648 = vpack.c.b16 %v1569, %v1490
    %v1649 = vpack.c.b16 %v1570, %v1491
    %v1650 = vpack.c.b16 %v1571, %v1492
    %v1651 = vpack.c.b16 %v1572, %v1493
    %v1652 = vpack.c.b16 %v1573, %v1494
    %v1653 = vpack.c.b16 %v1574, %v1495
    %v1654 = vpack.c.b16 %v1575, %v1496
    %v1655 = vpack.c.b16 %v1576, %v1497
    %v1656 = vpack.c.b16 %v1577, %v1498
    %v1657 = vpack.c.b16 %v1578, %v1499
    %v1658 = vpack.c.b16 %v1579, %v1500
    %v1659 = vpack.c.b16 %v1580, %v1501
    %v1660 = vpack.c.b16 %v1581, %v1502
    %v1661 = vpack.c.b16 %v1582, %v1503
    %v1662 = vpack.c.b16 %v1583, %v1504
    %v1663 = vpack.c.b16 %v1584, %v1505
    %v1664 = vpack.c.b16 %v1585, %v1506
    %v1665 = vpack.c.b16 %v1586, %v1507
    %v1666 = vpack.c.b16 %v1587, %v1508
    %v1667 = vpack.c.b16 %v1588, %v1509
    %v1668 = vpack.c.b16 %v1589, %v1510
    %v1669 = vpack.c.b16 %v1590, %v1511
    %v1670 = vpack.c.b16 %v1591, %v1512
    %v1671 = vpack.c.b16 %v1592, %v1513
    %v1672 = vpack.c.b16 %v1593, %v1514
    %v1673 = vpack.c.b16 %v1594, %v1515
    %v1674 = vpack.c.b16 %v1595, %v1516
    %v1675 = vpack.c.b16 %v1596, %v1517
    %v1676 = vpack.c.b16 %v1597, %v1518
    %v1677 = vpack.c.b16 %v1598, %v1519
    %v1678 = vpack.c.b16 %v1599, %v1520
    %v1679 = vpack.c.b16 %v1600, %v1521
    %v1680 = vpack.c.b16 %v1601, %v1522
    %v1681 = vpack.c.b16 %v1602, %v1523
    %v1682 = vpack.c.b16 %v1603, %v1524
    %v1683 = vpack.c.b16 %v1604, %v1525
    %v3012 = vunpack.c.l.b16 %v110
    %v3013 = vunpack.c.l.b16 %v111
    %v3014 = vunpack.c.l.b16 %v112
    %v3015 = vunpack.c.l.b16 %v113
    %v3016 = vunpack.c.l.b16 %v114
    %v3017 = vunpack.c.l.b16 %v115
    %v3018 = vunpack.c.l.b16 %v116
    %v3019 = vunpack.c.l.b16 %v117
    %v3020 = vunpack.c.l.b16 %v118
    %v3021 = vunpack.c.l.b16 %v119
    %v3022 = vunpack.c.l.b16 %v120
    %v3023 = vunpack.c.l.b16 %v121
    %v3024 = vunpack.c.l.b16 %v122
    %v3025 = vunpack.c.l.b16 %v123
    %v3026 = vunpack.c.l.b16 %v124
    %v3027 = vunpack.c.l.b16 %v125
    %v3028 = vunpack.c.l.b16 %v126
    %v3029 = vunpack.c.l.b16 %v127
    %v3030 = vunpack.c.l.b16 %v128
    %v3031 = vunpack.c.l.b16 %v129
    %v3032 = vunpack.c.l.b16 %v130
    %v3033 = vunpack.c.l.b16 %v131
    %v3034 = vunpack.c.l.b16 %v132
    %v3035 = vunpack.c.l.b16 %v133
    %v3036 = vunpack.c.l.b16 %v134
    %v3037 = vunpack.c.l.b16 %v135
    %v3038 = vunpack.c.l.b16 %v136
    %v3039 = vunpack.c.l.b16 %v137
    %v3040 = vunpack.c.l.b16 %v138
    %v3041 = vunpack.c.l.b16 %v139
    %v3042 = vunpack.c.l.b16 %v140
    %v3043 = vunpack.c.l.b16 %v141
    %v3044 = vunpack.c.l.b16 %v142
    %v3045 = vunpack.c.l.b16 %v143
    %v3046 = vunpack.c.l.b16 %v144
    %v3047 = vunpack.c.l.b16 %v145
    %v3048 = vunpack.c.l.b16 %v146
    %v3049 = vunpack.c.l.b16 %v147
    %v3050 = vunpack.c.l.b16 %v148
    %v3051 = vunpack.c.l.b16 %v149
    %v3052 = vunpack.c.l.b16 %v150
    %v3053 = vunpack.c.l.b16 %v151
    %v3054 = vunpack.c.l.b16 %v152
    %v3055 = vunpack.c.l.b16 %v153
    %v3056 = vunpack.c.l.b16 %v154
    %v3057 = vunpack.c.l.b16 %v155
    %v3058 = vunpack.c.l.b16 %v156
    %v3059 = vunpack.c.l.b16 %v157
    %v3060 = vunpack.c.l.b16 %v158
    %v3061 = vunpack.c.l.b16 %v159
    %v3062 = vunpack.c.l.b16 %v160
    %v3063 = vunpack.c.l.b16 %v161
    %v3064 = vunpack.c.l.b16 %v162
    %v3065 = vunpack.c.l.b16 %v163
    %v3066 = vunpack.c.l.b16 %v164
    %v3067 = vunpack.c.l.b16 %v165
    %v3068 = vunpack.c.l.b16 %v166
    %v3069 = vunpack.c.l.b16 %v167
    %v3070 = vunpack.c.l.b16 %v168
    %v3071 = vunpack.c.l.b16 %v169
    %v3072 = vunpack.c.l.b16 %v170
    %v3073 = vunpack.c.l.b16 %v171
    %v3074 = vunpack.c.l.b16 %v172
    %v3075 = vunpack.c.l.b16 %v173
    %v3076 = vunpack.c.l.b16 %v174
    %v3077 = vunpack.c.l.b16 %v175
    %v3078 = vunpack.c.l.b16 %v176
    %v3079 = vunpack.c.l.b16 %v177
    %v3080 = vunpack.c.l.b16 %v178
    %v3081 = vunpack.c.l.b16 %v179
    %v3082 = vunpack.c.l.b16 %v180
    %v3083 = vunpack.c.l.b16 %v181
    %v3084 = vunpack.c.l.b16 %v182
    %v3085 = vunpack.c.l.b16 %v183
    %v3086 = vunpack.c.l.b16 %v184
    %v3087 = vunpack.c.l.b16 %v185
    %v3088 = vunpack.c.l.b16 %v186
    %v3089 = vunpack.c.l.b16 %v187
    %v3090 = vunpack.c.l.b16 %v188
    %v3091 = vunpack.c.l.b16 %v189
    %v3092 = vunpack.c.l.b16 %v190
    %v3093 = vunpack.c.l.b16 %v191
    %v3094 = vunpack.c.l.b16 %v192
    %v3095 = vunpack.c.l.b16 %v193
    %v3096 = vunpack.c.l.b16 %v194
    %v3097 = vunpack.c.l.b16 %v195
    %v3098 = vunpack.c.l.b16 %v196
    %v3099 = vunpack.c.l.b16 %v197
    %v3100 = vunpack.c.l.b16 %v198
    %v3101 = vunpack.c.l.b16 %v199
    %v3102 = vunpack.c.l.b16 %v200
    %v3103 = vunpack.c.l.b16 %v201
    %v3104 = vunpack.c.l.b16 %v202
    %v3105 = vunpack.c.l.b16 %v203
    %v3106 = vunpack.c.l.b16 %v204
    %v3107 = vunpack.c.l.b16 %v205
    %v3108 = vunpack.c.l.b16 %v206
    %v3109 = vunpack.c.l.b16 %v207
    %v3110 = vunpack.c.l.b16 %v208
    %v3111 = vunpack.c.l.b16 %v209
    %v3112 = vunpack.c.l.b16 %v210
    %v3113 = vunpack.c.l.b16 %v211
    %v3114 = vunpack.c.l.b16 %v212
    %v3115 = vunpack.c.l.b16 %v213
    %v3116 = vunpack.c.l.b16 %v214
    %v3117 = vunpack.c.l.b16 %v215
    %v3118 = vunpack.c.l.b16 %v216
    %v3119 = vunpack.c.l.b16 %v217
    %v3120 = vunpack.c.l.b16 %v218
    %v3121 = vunpack.c.l.b16 %v219
    %v3122 = vunpack.c.l.b16 %v220
    %v3123 = vunpack.c.l.b16 %v221
    %v3124 = vunpack.c.l.b16 %v222
    %v3125 = vunpack.c.l.b16 %v223
    %v3126 = vunpack.c.l.b16 %v224
    %v3127 = vunpack.c.l.b16 %v225
    %v3128 = vunpack.c.l.b16 %v226
    %v3129 = vunpack.c.l.b16 %v227
    %v3130 = vunpack.c.l.b16 %v228
    %v3131 = vunpack.c.l.b16 %v229
    %v3132 = vunpack.c.l.b16 %v230
    %v3133 = vunpack.c.l.b16 %v231
    %v3134 = vunpack.c.l.b16 %v232
    %v3135 = vunpack.c.l.b16 %v233
    %v3136 = vunpack.c.l.b16 %v234
    %v3137 = vunpack.c.l.b16 %v235
    %v3138 = vunpack.c.l.b16 %v236
    %v3139 = vunpack.c.l.b16 %v237
    %v3140 = vunpack.c.l.b16 %v238
    %v3141 = vunpack.c.l.b16 %v239
    %v3142 = vunpack.c.l.b16 %v240
    %v3143 = vunpack.c.l.b16 %v241
    %v3144 = vunpack.c.l.b16 %v242
    %v3145 = vunpack.c.l.b16 %v243
    %v3146 = vunpack.c.l.b16 %v244
    %v3147 = vunpack.c.l.b16 %v245
    %v3148 = vunpack.c.l.b16 %v246
    %v3149 = vunpack.c.l.b16 %v247
    %v3150 = vunpack.c.l.b16 %v248
    %v3151 = vunpack.c.l.b16 %v249
    %v3152 = vunpack.c.l.b16 %v250
    %v3153 = vunpack.c.l.b16 %v251
    %v3154 = vunpack.c.l.b16 %v252
    %v3155 = vunpack.c.l.b16 %v253
    %v3156 = vunpack.c.l.b16 %v254
    %v3157 = vunpack.c.l.b16 %v255
    %v3158 = vunpack.c.l.b16 %v256
    %v3159 = vunpack.c.l.b16 %v257
    %v3160 = vunpack.c.l.b16 %v258
    %v3161 = vunpack.c.l.b16 %v259
    %v3162 = vunpack.c.l.b16 %v260
    %v3163 = vunpack.c.l.b16 %v261
    %v3164 = vunpack.c.l.b16 %v262
    %v3165 = vunpack.c.l.b16 %v263
    %v3166 = vunpack.c.l.b16 %v264
    %v3167 = vunpack.c.l.b16 %v265
    %v3168 = vunpack.c.l.b16 %v266
    %v3169 = vunpack.c.l.b16 %v267
    %v3170 = vunpack.c.l.b16 %v268
    %v3171 = vunpack.c.l.b16 %v269
    %v3172 = vunpack.c.l.b16 %v270
    %v3173 = vunpack.c.l.b16 %v271
    %v3174 = vunpack.c.l.b16 %v272
    %v3175 = vunpack.c.l.b16 %v273
    %v3176 = vunpack.c.l.b16 %v274
    %v3177 = vunpack.c.l.b16 %v275
    %v3178 = vunpack.c.l.b16 %v276
    %v3179 = vunpack.c.l.b16 %v277
    %v3180 = vunpack.c.l.b16 %v278
    %v3181 = vunpack.c.l.b16 %v279
    %v3182 = vunpack.c.l.b16 %v280
    %v3183 = vunpack.c.l.b16 %v281
    %v3184 = vunpack.c.l.b16 %v282
    %v3185 = vunpack.c.l.b16 %v283
    %v3186 = vunpack.c.l.b16 %v284
    %v3187 = vunpack.c.l.b16 %v285
    %v3188 = vunpack.c.l.b16 %v286
    %v3189 = vunpack.c.l.b16 %v287
    %v3190 = vunpack.c.l.b16 %v288
    %v3191 = vunpack.c.l.b16 %v289
    %v3192 = vunpack.c.l.b16 %v290
    %v3193 = vunpack.c.l.b16 %v291
    %v3194 = vunpack.c.l.b16 %v292
    %v3195 = vunpack.c.l.b16 %v293
    %v3196 = vunpack.c.l.b16 %v294
    %v3197 = vunpack.c.l.b16 %v295
    %v3198 = vunpack.c.l.b16 %v296
    %v3199 = vunpack.c.l.b16 %v297
    %v3200 = vunpack.c.l.b16 %v298
    %v3201 = vunpack.c.l.b16 %v299
    %v3202 = vunpack.c.l.b16 %v300
    %v3203 = vunpack.c.l.b16 %v301
    %v3204 = vunpack.c.l.b16 %v302
    %v3205 = vunpack.c.l.b16 %v303
    %v3206 = vunpack.c.l.b16 %v304
    %v3207 = vunpack.c.l.b16 %v305
    %v3208 = vunpack.c.l.b16 %v306
    %v3209 = vunpack.c.l.b16 %v307
    %v3210 = vunpack.c.l.b16 %v308
    %v3211 = vunpack.c.l.b16 %v309
    %v3212 = vunpack.c.l.b16 %v310
    %v3213 = vunpack.c.l.b16 %v311
    %v3214 = vunpack.c.l.b16 %v312
    %v3215 = vunpack.c.l.b16 %v313
    %v3216 = vunpack.c.l.b16 %v314
    %v3217 = vunpack.c.l.b16 %v315
    %v3218 = vunpack.c.l.b16 %v316
    %v3219 = vunpack.c.l.b16 %v317
    %v3220 = vunpack.c.l.b16 %v318
    %v3221 = vunpack.c.l.b16 %v319
    %v3222 = vunpack.c.l.b16 %v320
    %v3223 = vunpack.c.l.b16 %v321
    %v3224 = vunpack.c.l.b16 %v322
    %v3225 = vunpack.c.l.b16 %v323
    %v3226 = vunpack.c.l.b16 %v324
    %v3227 = vunpack.c.l.b16 %v325
    %v3228 = vunpack.c.l.b16 %v326
    %v3229 = vunpack.c.l.b16 %v327
    %v3230 = vunpack.c.l.b16 %v328
    %v3231 = vunpack.c.l.b16 %v329
    %v3232 = vunpack.c.l.b16 %v330
    %v3233 = vunpack.c.l.b16 %v331
    %v3234 = vunpack.c.l.b16 %v332
    %v3235 = vunpack.c.l.b16 %v333
    %v3236 = vunpack.c.l.b16 %v334
    %v3237 = vunpack.c.l.b16 %v335
    %v3238 = vunpack.c.l.b16 %v336
    %v3239 = vunpack.c.l.b16 %v337
    %v3240 = vunpack.c.l.b16 %v338
    %v3241 = vunpack.c.l.b16 %v339
    %v3242 = vunpack.c.l.b16 %v340
    %v3243 = vunpack.c.l.b16 %v341
    %v3244 = vunpack.c.l.b16 %v342
    %v3245 = vunpack.c.l.b16 %v343
    %v3246 = vunpack.c.l.b16 %v344
    %v3247 = vunpack.c.l.b16 %v345
    %v3248 = vunpack.c.l.b16 %v346
    %v3249 = vunpack.c.l.b16 %v347
    %v3250 = vunpack.c.l.b16 %v348
    %v3251 = vunpack.c.l.b16 %v349
    %v3252 = vunpack.c.l.b16 %v350
    %v3253 = vunpack.c.l.b16 %v351
    %v3254 = vunpack.c.l.b16 %v352
    %v3255 = vunpack.c.l.b16 %v353
    %v3256 = vunpack.c.l.b16 %v354
    %v3257 = vunpack.c.l.b16 %v355
    %v3258 = vunpack.c.l.b16 %v356
    %v3259 = vunpack.c.l.b16 %v357
    %v3260 = vunpack.c.l.b16 %v358
    %v3261 = vunpack.c.l.b16 %v359
    %v3262 = vunpack.c.l.b16 %v360
    %v3263 = vunpack.c.l.b16 %v361
    %v3264 = vunpack.c.l.b16 %v362
    %v3265 = vunpack.c.l.b16 %v363
    %v3266 = vunpack.c.l.b16 %v364
    %v3267 = vunpack.c.l.b16 %v365
    %v3268 = vunpack.c.l.b16 %v366
    %v3269 = vunpack.c.l.b16 %v367
    %v3270 = vunpack.c.l.b16 %v368
    %v3271 = vunpack.c.l.b16 %v369
    %v3272 = vunpack.c.l.b16 %v370
    %v3273 = vunpack.c.l.b16 %v371
    %v3274 = vunpack.c.l.b16 %v372
    %v3275 = vunpack.c.l.b16 %v373
    %v3276 = vunpack.c.l.b16 %v374
    %v3277 = vunpack.c.l.b16 %v375
    %v3278 = vunpack.c.l.b16 %v376
    %v3279 = vunpack.c.l.b16 %v377
    %v3280 = vunpack.c.l.b16 %v378
    %v3281 = vunpack.c.l.b16 %v379
    %v3282 = vunpack.c.l.b16 %v380
    %v3283 = vunpack.c.l.b16 %v381
    %v3284 = vunpack.c.l.b16 %v382
    %v3285 = vunpack.c.l.b16 %v383
    %v3286 = vunpack.c.l.b16 %v384
    %v3287 = vunpack.c.l.b16 %v385
    %v3288 = vunpack.c.l.b16 %v386
    %v3289 = vunpack.c.l.b16 %v387
    %v3290 = vunpack.c.l.b16 %v388
    %v3291 = vunpack.c.l.b16 %v389
    %v3292 = vunpack.c.l.b16 %v390
    %v3293 = vunpack.c.l.b16 %v391
    %v3294 = vunpack.c.l.b16 %v392
    %v3295 = vunpack.c.l.b16 %v393
    %v3296 = vunpack.c.l.b16 %v394
    %v3297 = vunpack.c.l.b16 %v395
    %v3298 = vunpack.c.l.b16 %v396
    %v3299 = vunpack.c.l.b16 %v397
    %v3300 = vunpack.c.l.b16 %v398
    %v3301 = vunpack.c.l.b16 %v399
    %v3302 = vunpack.c.l.b16 %v400
    %v3303 = vunpack.c.l.b16 %v401
    %v3304 = vunpack.c.l.b16 %v402
    %v3305 = vunpack.c.l.b16 %v403
    %v3306 = vunpack.c.l.b16 %v404
    %v3307 = vunpack.c.l.b16 %v405
    %v3308 = vunpack.c.l.b16 %v406
    %v3309 = vunpack.c.l.b16 %v407
    %v3310 = vunpack.c.l.b16 %v408
    %v3311 = vunpack.c.l.b16 %v409
    %v3312 = vunpack.c.l.b16 %v410
    %v3313 = vunpack.c.l.b16 %v411
    %v3314 = vunpack.c.l.b16 %v412
    %v3315 = vunpack.c.l.b16 %v413
    %v3316 = vunpack.c.l.b16 %v414
    %v3317 = vunpack.c.l.b16 %v415
    %v3318 = vunpack.c.l.b16 %v416
    %v3319 = vunpack.c.l.b16 %v417
    %v3320 = vunpack.c.l.b16 %v418
    %v3321 = vunpack.c.l.b16 %v419
    %v3322 = vunpack.c.l.b16 %v420
    %v3323 = vunpack.c.l.b16 %v421
    %v3324 = vunpack.c.l.b16 %v422
    %v3325 = vunpack.c.l.b16 %v423
    %v3326 = vunpack.c.l.b16 %v424
    %v3327 = vunpack.c.l.b16 %v425
    %v3328 = vunpack.c.l.b16 %v426
    %v3329 = vunpack.c.l.b16 %v427
    %v3330 = vunpack.c.l.b16 %v428
    %v3331 = vunpack.c.l.b16 %v429
    %v3332 = vunpack.c.l.b16 %v430
    %v3333 = vunpack.c.l.b16 %v431
    %v3334 = vunpack.c.l.b16 %v432
    %v3335 = vunpack.c.l.b16 %v433
    %v3336 = vunpack.c.l.b16 %v434
    %v3337 = vunpack.c.l.b16 %v435
    %v3338 = vunpack.c.l.b16 %v436
    %v3339 = vunpack.c.l.b16 %v437
    %v3340 = vunpack.c.l.b16 %v438
    %v3341 = vunpack.c.l.b16 %v439
    %v3342 = vunpack.c.l.b16 %v440
    %v3343 = vunpack.c.l.b16 %v441
    %v3344 = vunpack.c.l.b16 %v442
    %v3345 = vunpack.c.l.b16 %v443
    %v3346 = vunpack.c.l.b16 %v444
    %v3347 = vunpack.c.l.b16 %v445
    %v3348 = vunpack.c.l.b16 %v446
    %v3349 = vunpack.c.l.b16 %v447
    %v3350 = vunpack.c.l.b16 %v448
    %v3351 = vunpack.c.l.b16 %v449
    %v3352 = vunpack.c.l.b16 %v450
    %v3353 = vunpack.c.l.b16 %v451
    %v3354 = vunpack.c.l.b16 %v452
    %v3355 = vunpack.c.l.b16 %v453
    %v3356 = vunpack.c.l.b16 %v454
    %v3357 = vunpack.c.l.b16 %v455
    %v3358 = vunpack.c.l.b16 %v456
    %v3359 = vunpack.c.l.b16 %v457
    %v3360 = vunpack.c.l.b16 %v458
    %v3361 = vunpack.c.l.b16 %v459
    %v3362 = vunpack.c.l.b16 %v460
    %v3363 = vunpack.c.l.b16 %v461
    %v3364 = vunpack.c.l.b16 %v462
    %v3365 = vunpack.c.l.b16 %v463
    %v3366 = vunpack.c.l.b16 %v464
    %v3367 = vunpack.c.l.b16 %v465
    %v3368 = vunpack.c.l.b16 %v466
    %v3369 = vunpack.c.l.b16 %v467
    %v3370 = vunpack.c.l.b16 %v468
    %v3371 = vunpack.c.l.b16 %v469
    %v3372 = vunpack.c.l.b16 %v470
    %v3373 = vunpack.c.l.b16 %v471
    %v3374 = vunpack.c.l.b16 %v472
    %v3375 = vunpack.c.l.b16 %v473
    %v3376 = vunpack.c.l.b16 %v474
    %v3377 = vunpack.c.l.b16 %v475
    %v3378 = vunpack.c.l.b16 %v476
    %v3379 = vunpack.c.l.b16 %v477
    %v3380 = vunpack.c.l.b16 %v478
    %v3381 = vunpack.c.l.b16 %v479
    %v3382 = vunpack.c.l.b16 %v480
    %v3383 = vunpack.c.l.b16 %v481
    %v3384 = vunpack.c.l.b16 %v482
    %v3385 = vunpack.c.l.b16 %v483
    %v3386 = vunpack.c.l.b16 %v484
    %v3387 = vunpack.c.l.b16 %v485
    %v3388 = vunpack.c.l.b16 %v486
    %v3389 = vunpack.c.l.b16 %v487
    %v3390 = vunpack.c.l.b16 %v488
    %v3391 = vunpack.c.l.b16 %v489
    %v3392 = vunpack.c.l.b16 %v490
    %v3393 = vunpack.c.l.b16 %v491
    %v3394 = vunpack.c.l.b16 %v492
    %v3395 = vunpack.c.l.b16 %v493
    %v3396 = vunpack.c.l.b16 %v494
    %v3397 = vunpack.c.l.b16 %v495
    %v3398 = vunpack.c.l.b16 %v496
    %v3399 = vunpack.c.l.b16 %v497
    %v3400 = vunpack.c.l.b16 %v498
    %v3401 = vunpack.c.l.b16 %v499
    %v3402 = vunpack.c.l.b16 %v500
    %v3403 = vunpack.c.l.b16 %v501
    %v3404 = vunpack.c.l.b16 %v502
    %v3405 = vunpack.c.l.b16 %v503
    %v3406 = vunpack.c.l.b16 %v504
    %v3407 = vunpack.c.l.b16 %v505
    %v3408 = vunpack.c.l.b16 %v506
    %v3409 = vunpack.c.l.b16 %v507
    %v3410 = vunpack.c.l.b16 %v508
    %v3411 = vunpack.c.l.b16 %v509
    %v3412 = vunpack.c.l.b16 %v510
    %v3413 = vunpack.c.l.b16 %v511
    %v3414 = vunpack.c.l.b16 %v512
    %v3415 = vunpack.c.l.b16 %v513
    %v3416 = vunpack.c.l.b16 %v514
    %v3417 = vunpack.c.l.b16 %v515
    %v3418 = vunpack.c.l.b16 %v516
    %v3419 = vunpack.c.l.b16 %v517
    %v3420 = vunpack.c.l.b16 %v518
    %v3421 = vunpack.c.l.b16 %v519
    %v3422 = vunpack.c.l.b16 %v520
    %v3423 = vunpack.c.l.b16 %v521
    %v3424 = vunpack.c.l.b16 %v522
    %v3425 = vunpack.c.l.b16 %v523
    %v3426 = vunpack.c.l.b16 %v524
    %v3427 = vunpack.c.l.b16 %v525
    %v3428 = vunpack.c.l.b16 %v526
    %v3429 = vunpack.c.l.b16 %v527
    %v3430 = vunpack.c.l.b16 %v528
    %v3431 = vunpack.c.l.b16 %v529
    %v3432 = vunpack.c.l.b16 %v530
    %v3433 = vunpack.c.l.b16 %v531
    %v3434 = vunpack.c.l.b16 %v532
    %v3435 = vunpack.c.l.b16 %v533
    %v3436 = vunpack.c.l.b16 %v534
    %v3437 = vunpack.c.l.b16 %v535
    %v3438 = vunpack.c.l.b16 %v536
    %v3439 = vunpack.c.l.b16 %v537
    %v3440 = vunpack.c.l.b16 %v538
    %v3441 = vunpack.c.l.b16 %v539
    %v3442 = vunpack.c.l.b16 %v540
    %v3443 = vunpack.c.l.b16 %v541
    %v3444 = vunpack.c.l.b16 %v542
    %v3445 = vunpack.c.l.b16 %v543
    %v3446 = vunpack.c.l.b16 %v544
    %v3447 = vunpack.c.l.b16 %v545
    %v3448 = vunpack.c.l.b16 %v546
    %v3449 = vunpack.c.l.b16 %v547
    %v3450 = vunpack.c.l.b16 %v548
    %v3451 = vunpack.c.l.b16 %v549
    %v3452 = vunpack.c.l.b16 %v550
    %v3453 = vunpack.c.l.b16 %v551
    %v3454 = vunpack.c.l.b16 %v552
    %v3455 = vunpack.c.l.b16 %v553
    %v3456 = vunpack.c.l.b16 %v554
    %v3457 = vunpack.c.l.b16 %v555
    %v3458 = vunpack.c.l.b16 %v556
    %v3459 = vunpack.c.l.b16 %v557
    %v3460 = vunpack.c.l.b16 %v558
    %v3461 = vunpack.c.l.b16 %v559
    %v3462 = vunpack.c.l.b16 %v560
    %v3463 = vunpack.c.l.b16 %v561
    %v3464 = vunpack.c.l.b16 %v562
    %v3465 = vunpack.c.l.b16 %v563
    %v3466 = vunpack.c.l.b16 %v564
    %v3467 = vunpack.c.l.b16 %v565
    %v3468 = vunpack.c.l.b16 %v566
    %v3469 = vunpack.c.l.b16 %v567
    %v3470 = vunpack.c.l.b16 %v568
    %v3471 = vunpack.c.l.b16 %v569
    %v3472 = vunpack.c.l.b16 %v570
    %v3473 = vunpack.c.l.b16 %v571
    %v3474 = vunpack.c.l.b16 %v572
    %v3475 = vunpack.c.l.b16 %v573
    %v3476 = vunpack.c.l.b16 %v574
    %v3477 = vunpack.c.l.b16 %v575
    %v3478 = vunpack.c.l.b16 %v576
    %v3479 = vunpack.c.l.b16 %v577
    %v3480 = vunpack.c.l.b16 %v578
    %v3481 = vunpack.c.l.b16 %v579
    %v3482 = vunpack.c.l.b16 %v580
    %v3483 = vunpack.c.l.b16 %v581
    %v3484 = vunpack.c.l.b16 %v582
    %v3485 = vunpack.c.l.b16 %v583
    %v3486 = vunpack.c.l.b16 %v584
    %v3487 = vunpack.c.l.b16 %v585
    %v3488 = vunpack.c.l.b16 %v586
    %v3489 = vunpack.c.l.b16 %v587
    %v3490 = vunpack.c.l.b16 %v588
    %v3491 = vunpack.c.l.b16 %v589
    %v3492 = vunpack.c.l.b16 %v590
    %v3493 = vunpack.c.l.b16 %v591
    %v3494 = vunpack.c.l.b16 %v592
    %v3495 = vunpack.c.l.b16 %v593
    %v3496 = vunpack.c.l.b16 %v594
    %v3497 = vunpack.c.l.b16 %v595
    %v3498 = vunpack.c.l.b16 %v596
    %v3499 = vunpack.c.l.b16 %v597
    %v3500 = vunpack.c.l.b16 %v598
    %v3501 = vunpack.c.l.b16 %v599
    %v3502 = vunpack.c.l.b16 %v600
    %v3503 = vunpack.c.l.b16 %v601
    %v3504 = vunpack.c.l.b16 %v602
    %v3505 = vunpack.c.l.b16 %v603
    %v3506 = vunpack.c.l.b16 %v604
    %v3507 = vunpack.c.l.b16 %v605
    %v3508 = vunpack.c.l.b16 %v606
    %v3509 = vunpack.c.l.b16 %v607
    %v3510 = vunpack.c.l.b16 %v608
    %v3511 = vunpack.c.l.b16 %v609
    %v3512 = vunpack.c.l.b16 %v610
    %v3513 = vunpack.c.l.b16 %v611
    %v3514 = vunpack.c.l.b16 %v612
    %v3515 = vunpack.c.l.b16 %v613
    %v3516 = vunpack.c.l.b16 %v614
    %v3517 = vunpack.c.l.b16 %v615
    %v3518 = vunpack.c.l.b16 %v616
    %v3519 = vunpack.c.l.b16 %v617
    %v3520 = vunpack.c.l.b16 %v618
    %v3521 = vunpack.c.l.b16 %v619
    %v3522 = vunpack.c.l.b16 %v620
    %v3523 = vunpack.c.l.b16 %v621
    %v3524 = vunpack.c.l.b16 %v622
    %v3525 = vunpack.c.l.b16 %v623
    %v3526 = vunpack.c.l.b16 %v624
    %v3527 = vunpack.c.l.b16 %v625
    %v3528 = vunpack.c.l.b16 %v626
    %v3529 = vunpack.c.l.b16 %v627
    %v3530 = vunpack.c.l.b16 %v628
    %v3531 = vunpack.c.l.b16 %v629
    %v3532 = vunpack.c.l.b16 %v630
    %v3533 = vunpack.c.l.b16 %v631
    %v3534 = vunpack.c.l.b16 %v632
    %v3535 = vunpack.c.l.b16 %v633
    %v3536 = vunpack.c.l.b16 %v634
    %v3537 = vunpack.c.l.b16 %v635
    %v3538 = vunpack.c.l.b16 %v636
    %v3539 = vunpack.c.l.b16 %v637
    %v3540 = vunpack.c.l.b16 %v638
    %v3541 = vunpack.c.l.b16 %v639
    %v3542 = vunpack.c.l.b16 %v640
    %v3543 = vunpack.c.l.b16 %v641
    %v3544 = vunpack.c.l.b16 %v642
    %v3545 = vunpack.c.l.b16 %v643
    %v3546 = vunpack.c.l.b16 %v644
    %v3547 = vunpack.c.l.b16 %v645
    %v3548 = vunpack.c.l.b16 %v646
    %v3549 = vunpack.c.l.b16 %v647
    %v3550 = vunpack.c.l.b16 %v648
    %v3551 = vunpack.c.l.b16 %v649
    %v3552 = vunpack.c.l.b16 %v650
    %v3553 = vunpack.c.l.b16 %v651
    %v3554 = vunpack.c.l.b16 %v652
    %v3555 = vunpack.c.l.b16 %v653
    %v3556 = vunpack.c.l.b16 %v654
    %v3557 = vunpack.c.l.b16 %v655
    %v3558 = vunpack.c.l.b16 %v656
    %v3559 = vunpack.c.l.b16 %v657
    %v3560 = vunpack.c.l.b16 %v658
    %v3561 = vunpack.c.l.b16 %v659
    %v3562 = vunpack.c.l.b16 %v660
    %v3563 = vunpack.c.l.b16 %v661
    %v3564 = vunpack.c.l.b16 %v662
    %v3565 = vunpack.c.l.b16 %v663
    %v3566 = vunpack.c.l.b16 %v664
    %v3567 = vunpack.c.l.b16 %v665
    %v3568 = vunpack.c.l.b16 %v666
    %v3569 = vunpack.c.l.b16 %v667
    %v3570 = vunpack.c.l.b16 %v668
    %v3571 = vunpack.c.l.b16 %v669
    %v3572 = vunpack.c.l.b16 %v670
    %v3573 = vunpack.c.l.b16 %v671
    %v3574 = vunpack.c.l.b16 %v672
    %v3575 = vunpack.c.l.b16 %v673
    %v3576 = vunpack.c.l.b16 %v674
    %v3577 = vunpack.c.l.b16 %v675
    %v3578 = vunpack.c.l.b16 %v676
    %v3579 = vunpack.c.l.b16 %v677
    %v3580 = vunpack.c.l.b16 %v678
    %v3581 = vunpack.c.l.b16 %v679
    %v3582 = vunpack.c.l.b16 %v680
    %v3583 = vunpack.c.l.b16 %v681
    %v3584 = vunpack.c.l.b16 %v682
    %v3585 = vunpack.c.l.b16 %v683
    %v3586 = vunpack.c.l.b16 %v684
    %v3587 = vunpack.c.l.b16 %v685
    %v3588 = vunpack.c.l.b16 %v686
    %v3589 = vunpack.c.l.b16 %v687
    %v3590 = vunpack.c.l.b16 %v688
    %v3591 = vunpack.c.l.b16 %v689
    %v3592 = vunpack.c.l.b16 %v690
    %v3593 = vunpack.c.l.b16 %v691
    %v3594 = vunpack.c.l.b16 %v692
    %v3595 = vunpack.c.l.b16 %v693
    %v3596 = vunpack.c.l.b16 %v694
    %v3597 = vunpack.c.l.b16 %v695
    %v3598 = vunpack.c.l.b16 %v696
    %v3599 = vunpack.c.l.b16 %v697
    %v3600 = vunpack.c.l.b16 %v698
    %v3601 = vunpack.c.l.b16 %v699
    %v3602 = vunpack.c.l.b16 %v700
    %v3603 = vunpack.c.l.b16 %v701
    %v3604 = vunpack.c.l.b16 %v702
    %v3605 = vunpack.c.l.b16 %v703
    %v3606 = vunpack.c.l.b16 %v704
    %v3607 = vunpack.c.l.b16 %v705
    %v3608 = vunpack.c.l.b16 %v706
    %v3609 = vunpack.c.l.b16 %v707
    %v3610 = vunpack.c.l.b16 %v708
    %v3611 = vunpack.c.l.b16 %v709
    %v3612 = vunpack.c.l.b16 %v710
    %v3613 = vunpack.c.l.b16 %v711
    %v3614 = vunpack.c.l.b16 %v712
    %v3615 = vunpack.c.l.b16 %v713
    %v3616 = vunpack.c.l.b16 %v714
    %v3617 = vunpack.c.l.b16 %v715
    %v3618 = vunpack.c.l.b16 %v716
    %v3619 = vunpack.c.l.b16 %v717
    %v3620 = vunpack.c.l.b16 %v718
    %v3621 = vunpack.c.l.b16 %v719
    %v3622 = vunpack.c.l.b16 %v720
    %v3623 = vunpack.c.l.b16 %v721
    %v3624 = vunpack.c.l.b16 %v722
    %v3625 = vunpack.c.l.b16 %v723
    %v3626 = vunpack.c.l.b16 %v724
    %v3627 = vunpack.c.l.b16 %v725
    %v3628 = vunpack.c.l.b16 %v726
    %v3629 = vunpack.c.l.b16 %v727
    %v3630 = vunpack.c.l.b16 %v728
    %v3631 = vunpack.c.l.b16 %v729
    %v3632 = vunpack.c.l.b16 %v730
    %v3633 = vunpack.c.l.b16 %v731
    %v3634 = vunpack.c.l.b16 %v732
    %v3635 = vunpack.c.l.b16 %v733
    %v3636 = vunpack.c.l.b16 %v734
    %v3637 = vunpack.c.l.b16 %v735
    %v3638 = vunpack.c.l.b16 %v736
    %v3639 = vunpack.c.l.b16 %v737
    %v3640 = vunpack.c.l.b16 %v738
    %v3641 = vunpack.c.l.b16 %v739
    %v3642 = vunpack.c.l.b16 %v740
    %v3643 = vunpack.c.l.b16 %v741
    %v3644 = vunpack.c.l.b16 %v742
    %v3645 = vunpack.c.l.b16 %v743
    %v3646 = vunpack.c.l.b16 %v744
    %v3647 = vunpack.c.l.b16 %v745
    %v3648 = vunpack.c.l.b16 %v746
    %v3649 = vunpack.c.l.b16 %v747
    %v3650 = vunpack.c.l.b16 %v748
    %v3651 = vunpack.c.l.b16 %v749
    %v3652 = vunpack.c.l.b16 %v750
    %v3653 = vunpack.c.l.b16 %v751
    %v3654 = vunpack.c.l.b16 %v752
    %v3655 = vunpack.c.l.b16 %v753
    %v3656 = vunpack.c.l.b16 %v754
    %v3657 = vunpack.c.l.b16 %v755
    %v3658 = vunpack.c.l.b16 %v756
    %v3659 = vunpack.c.l.b16 %v757
    %v3660 = vunpack.c.l.b16 %v758
    %v3661 = vunpack.c.l.b16 %v759
    %v3662 = vunpack.c.l.b16 %v760
    %v3663 = vunpack.c.l.b16 %v761
    %v3664 = vunpack.c.l.b16 %v762
    %v3665 = vunpack.c.l.b16 %v763
    %v3666 = vunpack.c.l.b16 %v764
    %v3667 = vunpack.c.l.b16 %v765
    %v3668 = vunpack.c.l.b16 %v766
    %v3669 = vunpack.c.l.b16 %v767
    %v3670 = vunpack.c.l.b16 %v768
    %v3671 = vunpack.c.l.b16 %v769
    %v3672 = vunpack.c.l.b16 %v770
    %v3673 = vunpack.c.l.b16 %v771
    %v3674 = vunpack.c.l.b16 %v772
    %v3675 = vunpack.c.l.b16 %v773
    %v3676 = vunpack.c.l.b16 %v774
    %v3677 = vunpack.c.l.b16 %v775
    %v3678 = vunpack.c.l.b16 %v776
    %v3679 = vunpack.c.l.b16 %v777
    %v3680 = vunpack.c.l.b16 %v778
    %v3681 = vunpack.c.l.b16 %v779
    %v3682 = vunpack.c.l.b16 %v780
    %v3683 = vunpack.c.l.b16 %v781
    %v3684 = vunpack.c.l.b16 %v782
    %v3685 = vunpack.c.l.b16 %v783
    %v3686 = vunpack.c.l.b16 %v784
    %v3687 = vunpack.c.l.b16 %v785
    %v3688 = vunpack.c.l.b16 %v786
    %v3689 = vunpack.c.l.b16 %v787
    %v3690 = vunpack.c.l.b16 %v788
    %v3691 = vunpack.c.l.b16 %v789
    %v3692 = vunpack.c.l.b16 %v790
    %v3693 = vunpack.c.l.b16 %v791
    %v3694 = vunpack.c.l.b16 %v792
    %v3695 = vunpack.c.l.b16 %v793
    %v3696 = vunpack.c.l.b16 %v794
    %v3697 = vunpack.c.l.b16 %v795
    %v3698 = vunpack.c.l.b16 %v796
    %v3699 = vunpack.c.l.b16 %v797
    %v3700 = vunpack.c.l.b16 %v798
    %v3701 = vunpack.c.l.b16 %v799
    %v3702 = vunpack.c.l.b16 %v800
    %v3703 = vunpack.c.l.b16 %v801
    %v3704 = vunpack.c.l.b16 %v802
    %v3705 = vunpack.c.l.b16 %v803
    %v3706 = vunpack.c.l.b16 %v804
    %v3707 = vunpack.c.l.b16 %v805
    %v3708 = vunpack.c.l.b16 %v806
    %v3709 = vunpack.c.l.b16 %v807
    %v3710 = vunpack.c.l.b16 %v808
    %v3711 = vunpack.c.l.b16 %v809
    %v3712 = vunpack.c.l.b16 %v810
    %v3713 = vunpack.c.l.b16 %v811
    %v3714 = vunpack.c.l.b16 %v812
    %v3715 = vunpack.c.l.b16 %v813
    %v3716 = vunpack.c.l.b16 %v814
    %v3717 = vunpack.c.l.b16 %v815
    %v3718 = vunpack.c.l.b16 %v816
    %v3719 = vunpack.c.l.b16 %v817
    %v3720 = vunpack.c.l.b16 %v818
    %v3721 = vunpack.c.l.b16 %v819
    %v3722 = vunpack.c.l.b16 %v820
    %v3723 = vunpack.c.l.b16 %v821
    %v3724 = vunpack.c.l.b16 %v822
    %v3725 = vunpack.c.l.b16 %v823
    %v3726 = vunpack.c.l.b16 %v824
    %v3727 = vunpack.c.l.b16 %v825
    %v3728 = vunpack.c.l.b16 %v826
    %v3729 = vunpack.c.l.b16 %v827
    %v3730 = vunpack.c.l.b16 %v828
    %v3731 = vunpack.c.l.b16 %v829
    %v3732 = vunpack.c.l.b16 %v830
    %v3733 = vunpack.c.l.b16 %v831
    %v3734 = vunpack.c.l.b16 %v832
    %v3735 = vunpack.c.l.b16 %v833
    %v3736 = vunpack.c.l.b16 %v834
    %v3737 = vunpack.c.l.b16 %v835
    %v3738 = vunpack.c.l.b16 %v836
    %v3739 = vunpack.c.l.b16 %v837
    %v3740 = vunpack.c.l.b16 %v838
    %v3741 = vunpack.c.l.b16 %v839
    %v3742 = vunpack.c.l.b16 %v840
    %v3743 = vunpack.c.l.b16 %v841
    %v3744 = vunpack.c.l.b16 %v842
    %v3745 = vunpack.c.l.b16 %v843
    %v3746 = vunpack.c.l.b16 %v844
    %v3747 = vunpack.c.l.b16 %v845
    %v3748 = vunpack.c.l.b16 %v846
    %v3749 = vunpack.c.l.b16 %v847
    %v3750 = vunpack.c.l.b16 %v848
    %v3751 = vunpack.c.l.b16 %v849
    %v3752 = vunpack.c.l.b16 %v850
    %v3753 = vunpack.c.l.b16 %v851
    %v3754 = vunpack.c.l.b16 %v852
    %v3755 = vunpack.c.l.b16 %v853
    %v3756 = vunpack.c.l.b16 %v854
    %v3757 = vunpack.c.l.b16 %v855
    %v3758 = vunpack.c.l.b16 %v856
    %v3759 = vunpack.c.l.b16 %v857
    %v3760 = vunpack.c.l.b16 %v858
    %v3761 = vunpack.c.l.b16 %v859
    %v3762 = vunpack.c.l.b16 %v860
    %v3763 = vunpack.c.l.b16 %v861
    %v3764 = vunpack.c.l.b16 %v862
    %v3765 = vunpack.c.l.b16 %v863
    %v3766 = vunpack.c.l.b16 %v864
    %v3767 = vunpack.c.l.b16 %v865
    %v3768 = vunpack.c.l.b16 %v866
    %v3769 = vunpack.c.l.b16 %v867
    %v3770 = vunpack.c.l.b16 %v868
    %v3771 = vunpack.c.l.b16 %v869
    %v3772 = vunpack.c.l.b16 %v870
    %v3773 = vunpack.c.l.b16 %v871
    %v3774 = vunpack.c.l.b16 %v872
    %v3775 = vunpack.c.l.b16 %v873
    %v3776 = vunpack.c.l.b16 %v874
    %v3777 = vunpack.c.l.b16 %v875
    %v3778 = vunpack.c.l.b16 %v876
    %v3779 = vunpack.c.l.b16 %v877
    %v3780 = vunpack.c.l.b16 %v878
    %v3781 = vunpack.c.l.b16 %v879
    %v3782 = vunpack.c.l.b16 %v880
    %v3783 = vunpack.c.l.b16 %v881
    %v3784 = vunpack.c.l.b16 %v882
    %v3785 = vunpack.c.l.b16 %v883
    %v3786 = vunpack.c.l.b16 %v884
    %v3787 = vunpack.c.l.b16 %v885
    %v3788 = vunpack.c.l.b16 %v886
    %v3789 = vunpack.c.l.b16 %v887
    %v3790 = vunpack.c.l.b16 %v888
    %v3791 = vunpack.c.l.b16 %v889
    %v3792 = vunpack.c.l.b16 %v890
    %v3793 = vunpack.c.l.b16 %v891
    %v3794 = vunpack.c.l.b16 %v892
    %v3795 = vunpack.c.l.b16 %v893
    %v3796 = vunpack.c.l.b16 %v894
    %v3797 = vunpack.c.l.b16 %v895
    %v3798 = vunpack.c.l.b16 %v896
    %v3799 = vunpack.c.l.b16 %v897
    %v3800 = vunpack.c.l.b16 %v898
    %v3801 = vunpack.c.l.b16 %v899
    %v3802 = vunpack.c.l.b16 %v900
    %v3803 = vunpack.c.l.b16 %v901
    %v3804 = vunpack.c.l.b16 %v902
    %v3805 = vunpack.c.l.b16 %v903
    %v3806 = vunpack.c.l.b16 %v904
    %v3807 = vunpack.c.l.b16 %v905
    %v3808 = vunpack.c.l.b16 %v906
    %v3809 = vunpack.c.l.b16 %v907
    %v3810 = vunpack.c.l.b16 %v908
    %v3811 = vunpack.c.l.b16 %v909
    %v3812 = vunpack.c.l.b16 %v910
    %v3813 = vunpack.c.l.b16 %v911
    %v3814 = vunpack.c.l.b16 %v912
    %v3815 = vunpack.c.l.b16 %v913
    %v3816 = vunpack.c.l.b16 %v914
    %v3817 = vunpack.c.l.b16 %v915
    %v3818 = vunpack.c.l.b16 %v916
    %v3819 = vunpack.c.l.b16 %v917
    %v3820 = vunpack.c.l.b16 %v918
    %v3821 = vunpack.c.l.b16 %v919
    %v3822 = vunpack.c.l.b16 %v920
    %v3823 = vunpack.c.l.b16 %v921
    %v3824 = vunpack.c.l.b16 %v922
    %v3825 = vunpack.c.l.b16 %v923
    %v3826 = vunpack.c.l.b16 %v924
    %v3827 = vunpack.c.l.b16 %v925
    %v3828 = vunpack.c.l.b16 %v926
    %v3829 = vunpack.c.l.b16 %v927
    %v3830 = vunpack.c.l.b16 %v928
    %v3831 = vunpack.c.l.b16 %v929
    %v3832 = vunpack.c.l.b16 %v930
    %v3833 = vunpack.c.l.b16 %v931
    %v3834 = vunpack.c.l.b16 %v932
    %v3835 = vunpack.c.l.b16 %v933
    %v3836 = vunpack.c.l.b16 %v934
    %v3837 = vunpack.c.l.b16 %v935
    %v3838 = vunpack.c.l.b16 %v936
    %v3839 = vunpack.c.l.b16 %v937
    %v3840 = vunpack.c.l.b16 %v938
    %v3841 = vunpack.c.l.b16 %v939
    %v3842 = vunpack.c.l.b16 %v940
    %v3843 = vunpack.c.l.b16 %v941
    %v3844 = vunpack.c.l.b16 %v942
    %v3845 = vunpack.c.l.b16 %v943
    %v3846 = vunpack.c.l.b16 %v944
    %v3847 = vunpack.c.l.b16 %v945
    %v3848 = vunpack.c.l.b16 %v946
    %v3849 = vunpack.c.l.b16 %v947
    %v3850 = vunpack.c.l.b16 %v948
    %v3851 = vunpack.c.l.b16 %v949
    %v3852 = vunpack.c.l.b16 %v950
    %v3853 = vunpack.c.l.b16 %v951
    %v3854 = vunpack.c.l.b16 %v952
    %v3855 = vunpack.c.l.b16 %v953
    %v3856 = vunpack.c.l.b16 %v954
    %v3857 = vunpack.c.l.b16 %v955
    %v3858 = vunpack.c.l.b16 %v956
    %v3859 = vunpack.c.l.b16 %v957
    %v3860 = vunpack.c.l.b16 %v958
    %v3861 = vunpack.c.l.b16 %v959
    %v3862 = vunpack.c.l.b16 %v960
    %v3863 = vunpack.c.l.b16 %v961
    %v3864 = vunpack.c.l.b16 %v962
    %v3865 = vunpack.c.l.b16 %v963
    %v3866 = vunpack.c.l.b16 %v964
    %v3867 = vunpack.c.l.b16 %v965
    %v3868 = vunpack.c.l.b16 %v966
    %v3869 = vunpack.c.l.b16 %v967
    %v3870 = vunpack.c.l.b16 %v968
    %v3871 = vunpack.c.l.b16 %v969
    %v3872 = vunpack.c.l.b16 %v970
    %v3873 = vunpack.c.l.b16 %v971
    %v3874 = vunpack.c.l.b16 %v972
    %v3875 = vunpack.c.l.b16 %v973
    %v3876 = vunpack.c.l.b16 %v974
    %v3877 = vunpack.c.l.b16 %v975
    %v3878 = vunpack.c.l.b16 %v976
    %v3879 = vunpack.c.l.b16 %v977
    %v3880 = vunpack.c.l.b16 %v978
    %v3881 = vunpack.c.l.b16 %v979
    %v3882 = vunpack.c.l.b16 %v980
    %v3883 = vunpack.c.l.b16 %v981
    %v3884 = vunpack.c.l.b16 %v982
    %v3885 = vunpack.c.l.b16 %v983
    %v3886 = vunpack.c.l.b16 %v984
    %v3887 = vunpack.c.l.b16 %v985
    %v3888 = vunpack.c.l.b16 %v986
    %v3889 = vunpack.c.l.b16 %v987
    %v3890 = vunpack.c.l.b16 %v988
    %v3891 = vunpack.c.l.b16 %v989
    %v3892 = vunpack.c.l.b16 %v990
    %v3893 = vunpack.c.l.b16 %v991
    %v3894 = vunpack.c.l.b16 %v992
    %v3895 = vunpack.c.l.b16 %v993
    %v3896 = vunpack.c.l.b16 %v994
    %v3897 = vunpack.c.l.b16 %v995
    %v3898 = vunpack.c.l.b16 %v996
    %v3899 = vunpack.c.l.b16 %v997
    %v3900 = vunpack.c.l.b16 %v998
    %v3901 = vunpack.c.l.b16 %v999
    %v3902 = vunpack.c.l.b16 %v1000
    %v3903 = vunpack.c.l.b16 %v1001
    %v3904 = vunpack.c.l.b16 %v1002
    %v3905 = vunpack.c.l.b16 %v1003
    %v3906 = vunpack.c.l.b16 %v1004
    %v3907 = vunpack.c.l.b16 %v1005
    %v3908 = vunpack.c.l.b16 %v1006
    %v3909 = vunpack.c.l.b16 %v1007
    %v3910 = vunpack.c.l.b16 %v1008
    %v3911 = vunpack.c.l.b16 %v1009
    %v3912 = vunpack.c.l.b16 %v1010
    %v3913 = vunpack.c.l.b16 %v1011
    %v3914 = vunpack.c.l.b16 %v1012
    %v3915 = vunpack.c.l.b16 %v1013
    %v3916 = vunpack.c.l.b16 %v1014
    %v3917 = vunpack.c.l.b16 %v1015
    %v3918 = vunpack.c.l.b16 %v1016
    %v3919 = vunpack.c.l.b16 %v1017
    %v3920 = vunpack.c.l.b16 %v1018
    %v3921 = vunpack.c.l.b16 %v1019
    %v3922 = vunpack.c.l.b16 %v1020
    %v3923 = vunpack.c.l.b16 %v1021
    %v3924 = vunpack.c.l.b16 %v1022
    %v3925 = vunpack.c.l.b16 %v1023
    %v3926 = vunpack.c.l.b16 %v1024
    %v3927 = vunpack.c.l.b16 %v1025
    %v3928 = vunpack.c.l.b16 %v1026
    %v3929 = vunpack.c.l.b16 %v1027
    %v3930 = vunpack.c.l.b16 %v1028
    %v3931 = vunpack.c.l.b16 %v1029
    %v3932 = vunpack.c.l.b16 %v1030
    %v3933 = vunpack.c.l.b16 %v1031
    %v3934 = vunpack.c.l.b16 %v1032
    %v3935 = vunpack.c.l.b16 %v1033
    %v3936 = vunpack.c.l.b16 %v1034
    %v3937 = vunpack.c.l.b16 %v1035
    %v3938 = vunpack.c.l.b16 %v1036
    %v3939 = vunpack.c.l.b16 %v1037
    %v3940 = vunpack.c.l.b16 %v1038
    %v3941 = vunpack.c.l.b16 %v1039
    %v3942 = vunpack.c.l.b16 %v1040
    %v3943 = vunpack.c.l.b16 %v1041
    %v3944 = vunpack.c.l.b16 %v1042
    %v3945 = vunpack.c.l.b16 %v1043
    %v3946 = vunpack.c.l.b16 %v1044
    %v3947 = vunpack.c.l.b16 %v1045
    %v3948 = vunpack.c.l.b16 %v1046
    %v3949 = vunpack.c.l.b16 %v1047
    %v3950 = vunpack.c.l.b16 %v1048
    %v3951 = vunpack.c.l.b16 %v1049
    %v3952 = vunpack.c.l.b16 %v1050
    %v3953 = vunpack.c.l.b16 %v1051
    %v3954 = vunpack.c.l.b16 %v1052
    %v3955 = vunpack.c.l.b16 %v1053
    %v3956 = vunpack.c.l.b16 %v1054
    %v3957 = vunpack.c.l.b16 %v1055
    %v3958 = vunpack.c.l.b16 %v1056
    %v3959 = vunpack.c.l.b16 %v1057
    %v3960 = vunpack.c.l.b16 %v1058
    %v3961 = vunpack.c.l.b16 %v1059
    %v3962 = vunpack.c.l.b16 %v1060
    %v3963 = vunpack.c.l.b16 %v1061
    %v3964 = vunpack.c.l.b16 %v1062
    %v3965 = vunpack.c.l.b16 %v1063
    %v3966 = vunpack.c.l.b16 %v1064
    %v3967 = vunpack.c.l.b16 %v1065
    %v3968 = vunpack.c.l.b16 %v1066
    %v3969 = vunpack.c.l.b16 %v1067
    %v3970 = vunpack.c.l.b16 %v1068
    %v3971 = vunpack.c.l.b16 %v1069
    %v3972 = vunpack.c.l.b16 %v1070
    %v3973 = vunpack.c.l.b16 %v1071
    %v3974 = vunpack.c.l.b16 %v1072
    %v3975 = vunpack.c.l.b16 %v1073
    %v3976 = vunpack.c.l.b16 %v1074
    %v3977 = vunpack.c.l.b16 %v1075
    %v3978 = vunpack.c.l.b16 %v1076
    %v3979 = vunpack.c.l.b16 %v1077
    %v3980 = vunpack.c.l.b16 %v1078
    %v3981 = vunpack.c.l.b16 %v1079
    %v3982 = vunpack.c.l.b16 %v1080
    %v3983 = vunpack.c.l.b16 %v1081
    %v3984 = vunpack.c.l.b16 %v1082
    %v3985 = vunpack.c.l.b16 %v1083
    %v3986 = vunpack.c.l.b16 %v1084
    %v3987 = vunpack.c.l.b16 %v1085
    %v3988 = vunpack.c.l.b16 %v1086
    %v3989 = vunpack.c.l.b16 %v1087
    %v3990 = vunpack.c.l.b16 %v1088
    %v3991 = vunpack.c.l.b16 %v1089
    %v3992 = vunpack.c.l.b16 %v1090
    %v3993 = vunpack.c.l.b16 %v1091
    %v3994 = vunpack.c.l.b16 %v1092
    %v3995 = vunpack.c.l.b16 %v1093
    %v3996 = vunpack.c.l.b16 %v1094
    %v3997 = vunpack.c.l.b16 %v1095
    %v3998 = vunpack.c.l.b16 %v1096
    %v3999 = vunpack.c.l.b16 %v1097
    %v4000 = vunpack.c.l.b16 %v1098
    %v4001 = vunpack.c.l.b16 %v1099
    %v4002 = vunpack.c.l.b16 %v1100
    %v4003 = vunpack.c.l.b16 %v1101
    %v4004 = vunpack.c.l.b16 %v1102
    %v4005 = vunpack.c.l.b16 %v1103
    %v4006 = vunpack.c.l.b16 %v1104
    %v4007 = vunpack.c.l.b16 %v1105
    %v4008 = vunpack.c.l.b16 %v1106
    %v4009 = vunpack.c.l.b16 %v1107
    %v4010 = vunpack.c.l.b16 %v1108
    %v4011 = vunpack.c.l.b16 %v1109
    %v4012 = vunpack.c.l.b16 %v1110
    %v4013 = vunpack.c.l.b16 %v1111
    %v4014 = vunpack.c.l.b16 %v1112
    %v4015 = vunpack.c.l.b16 %v1113
    %v4016 = vunpack.c.l.b16 %v1114
    %v4017 = vunpack.c.l.b16 %v1115
    %v4018 = vunpack.c.l.b16 %v1116
    %v4019 = vunpack.c.l.b16 %v1117
    %v4020 = vunpack.c.l.b16 %v1118
    %v4021 = vunpack.c.l.b16 %v1119
    %v4022 = vunpack.c.l.b16 %v1120
    %v4023 = vunpack.c.l.b16 %v1121
    %v4024 = vunpack.c.l.b16 %v1122
    %v4025 = vunpack.c.l.b16 %v1123
    %v4026 = vunpack.c.l.b16 %v1124
    %v4027 = vunpack.c.l.b16 %v1125
    %v4028 = vunpack.c.l.b16 %v1126
    %v4029 = vunpack.c.l.b16 %v1127
    %v4030 = vunpack.c.l.b16 %v1128
    %v4031 = vunpack.c.l.b16 %v1129
    %v4032 = vunpack.c.l.b16 %v1130
    %v4033 = vunpack.c.l.b16 %v1131
    %v4034 = vunpack.c.l.b16 %v1132
    %v4035 = vunpack.c.l.b16 %v1133
    %v4036 = vunpack.c.l.b16 %v1134
    %v4037 = vunpack.c.l.b16 %v1135
    %v4038 = vunpack.c.l.b16 %v1136
    %v4039 = vunpack.c.l.b16 %v1137
    %v4040 = vunpack.c.l.b16 %v1138
    %v4041 = vunpack.c.l.b16 %v1139
    %v4042 = vunpack.c.l.b16 %v1140
    %v4043 = vunpack.c.l.b16 %v1141
    %v4044 = vunpack.c.l.b16 %v1142
    %v4045 = vunpack.c.l.b16 %v1143
    %v4046 = vunpack.c.l.b16 %v1144
    %v4047 = vunpack.c.l.b16 %v1145
    %v4048 = vunpack.c.l.b16 %v1146
    %v4049 = vunpack.c.l.b16 %v1147
    %v4050 = vunpack.c.l.b16 %v1148
    %v4051 = vunpack.c.l.b16 %v1149
    %v4052 = vunpack.c.l.b16 %v1150
    %v4053 = vunpack.c.l.b16 %v1151
    %v4054 = vunpack.c.l.b16 %v1152
    %v4055 = vunpack.c.l.b16 %v1153
    %v4056 = vunpack.c.l.b16 %v1154
    %v4057 = vunpack.c.l.b16 %v1155
    %v4058 = vunpack.c.l.b16 %v1156
    %v4059 = vunpack.c.l.b16 %v1157
    %v4060 = vunpack.c.l.b16 %v1158
    %v4061 = vunpack.c.l.b16 %v1159
    %v4062 = vunpack.c.l.b16 %v1160
    %v4063 = vunpack.c.l.b16 %v1161
    %v4064 = vunpack.c.l.b16 %v1162
    %v4065 = vunpack.c.l.b16 %v1163
    %v4066 = vunpack.c.l.b16 %v1164
    %v4067 = vunpack.c.l.b16 %v1165
    %v4068 = vunpack.c.l.b16 %v1166
    %v4069 = vunpack.c.l.b16 %v1167
    %v4070 = vunpack.c.l.b16 %v1168
    %v4071 = vunpack.c.l.b16 %v1169
    %v4072 = vunpack.c.l.b16 %v1170
    %v4073 = vunpack.c.l.b16 %v1171
    %v4074 = vunpack.c.l.b16 %v1172
    %v4075 = vunpack.c.l.b16 %v1173
    %v4076 = vunpack.c.l.b16 %v1174
    %v4077 = vunpack.c.l.b16 %v1175
    %v4078 = vunpack.c.l.b16 %v1176
    %v4079 = vunpack.c.l.b16 %v1177
    %v4080 = vunpack.c.l.b16 %v1178
    %v4081 = vunpack.c.l.b16 %v1179
    %v4082 = vunpack.c.l.b16 %v1180
    %v4083 = vunpack.c.l.b16 %v1181
    %v4084 = vunpack.c.l.b16 %v1182
    %v4085 = vunpack.c.l.b16 %v1183
    %v4086 = vunpack.c.l.b16 %v1184
    %v4087 = vunpack.c.l.b16 %v1185
    %v4088 = vunpack.c.l.b16 %v1186
    %v4089 = vunpack.c.l.b16 %v1187
    %v4090 = vunpack.c.l.b16 %v1188
    %v4091 = vunpack.c.l.b16 %v1189
    %v4092 = vunpack.c.l.b16 %v1190
    %v4093 = vunpack.c.l.b16 %v1191
    %v4094 = vunpack.c.l.b16 %v1192
    %v4095 = vunpack.c.l.b16 %v1193
    %v4096 = vunpack.c.l.b16 %v1194
    %v4097 = vunpack.c.l.b16 %v1195
    %v4098 = vunpack.c.l.b16 %v1196
    %v4099 = vunpack.c.l.b16 %v1197
    %v4100 = vunpack.c.l.b16 %v1198
    %v4101 = vunpack.c.l.b16 %v1199
    %v4102 = vunpack.c.l.b16 %v1200
    %v4103 = vunpack.c.l.b16 %v1201
    %v4104 = vunpack.c.l.b16 %v1202
    %v4105 = vunpack.c.l.b16 %v1203
    %v4106 = vunpack.c.l.b16 %v1204
    %v4107 = vunpack.c.l.b16 %v1205
    %v4108 = vunpack.c.l.b16 %v1206
    %v4109 = vunpack.c.l.b16 %v1207
    %v4110 = vunpack.c.l.b16 %v1208
    %v4111 = vunpack.c.l.b16 %v1209
    %v4112 = vunpack.c.l.b16 %v1210
    %v4113 = vunpack.c.l.b16 %v1211
    %v4114 = vunpack.c.l.b16 %v1212
    %v4115 = vunpack.c.l.b16 %v1213
    %v4116 = vunpack.c.l.b16 %v1214
    %v4117 = vunpack.c.l.b16 %v1215
    %v4118 = vunpack.c.l.b16 %v1216
    %v4119 = vunpack.c.l.b16 %v1217
    %v4120 = vunpack.c.l.b16 %v1218
    %v4121 = vunpack.c.l.b16 %v1219
    %v4122 = vunpack.c.l.b16 %v1220
    %v4123 = vunpack.c.l.b16 %v1221
    %v4124 = vunpack.c.l.b16 %v1222
    %v4125 = vunpack.c.l.b16 %v1223
    %v4126 = vunpack.c.l.b16 %v1224
    %v4127 = vunpack.c.l.b16 %v1225
    %v4128 = vunpack.c.l.b16 %v1226
    %v4129 = vunpack.c.l.b16 %v1227
    %v4130 = vunpack.c.l.b16 %v1228
    %v4131 = vunpack.c.l.b16 %v1229
    %v4132 = vunpack.c.l.b16 %v1230
    %v4133 = vunpack.c.l.b16 %v1231
    %v4134 = vunpack.c.l.b16 %v1232
    %v4135 = vunpack.c.l.b16 %v1233
    %v4136 = vunpack.c.l.b16 %v1234
    %v4137 = vunpack.c.l.b16 %v1235
    %v4138 = vunpack.c.l.b16 %v1236
    %v4139 = vunpack.c.l.b16 %v1237
    %v4140 = vunpack.c.l.b16 %v1238
    %v4141 = vunpack.c.l.b16 %v1239
    %v4142 = vunpack.c.l.b16 %v1240
    %v4143 = vunpack.c.l.b16 %v1241
    %v4144 = vunpack.c.l.b16 %v1242
    %v4145 = vunpack.c.l.b16 %v1243
    %v4146 = vunpack.c.l.b16 %v1244
    %v4147 = vunpack.c.l.b16 %v1245
    %v4148 = vunpack.c.l.b16 %v1246
    %v4149 = vunpack.c.l.b16 %v1247
    %v4150 = vunpack.c.l.b16 %v1248
    %v4151 = vunpack.c.l.b16 %v1249
    %v4152 = vunpack.c.l.b16 %v1250
    %v4153 = vunpack.c.l.b16 %v1251
    %v4154 = vunpack.c.l.b16 %v1252
    %v4155 = vunpack.c.l.b16 %v1253
    %v4156 = vunpack.c.l.b16 %v1254
    %v4157 = vunpack.c.l.b16 %v1255
    %v4158 = vunpack.c.l.b16 %v1256
    %v4159 = vunpack.c.l.b16 %v1257
    %v4160 = vunpack.c.l.b16 %v1258
    %v4161 = vunpack.c.l.b16 %v1259
    %v4162 = vunpack.c.l.b16 %v1260
    %v4163 = vunpack.c.l.b16 %v1261
    %v4164 = vunpack.c.l.b16 %v1262
    %v4165 = vunpack.c.l.b16 %v1263
    %v4166 = vunpack.c.l.b16 %v1264
    %v4167 = vunpack.c.l.b16 %v1265
    %v4168 = vunpack.c.l.b16 %v1266
    %v4169 = vunpack.c.l.b16 %v1267
    %v4170 = vunpack.c.l.b16 %v1268
    %v4171 = vunpack.c.l.b16 %v1269
    %v4172 = vunpack.c.l.b16 %v1270
    %v4173 = vunpack.c.l.b16 %v1271
    %v4174 = vunpack.c.l.b16 %v1272
    %v4175 = vunpack.c.l.b16 %v1273
    %v4176 = vunpack.c.l.b16 %v1274
    %v4177 = vunpack.c.l.b16 %v1275
    %v4178 = vunpack.c.l.b16 %v1276
    %v4179 = vunpack.c.l.b16 %v1277
    %v4180 = vunpack.c.l.b16 %v1278
    %v4181 = vunpack.c.l.b16 %v1279
    %v4182 = vunpack.c.l.b16 %v1280
    %v4183 = vunpack.c.l.b16 %v1281
    %v4184 = vunpack.c.l.b16 %v1282
    %v4185 = vunpack.c.l.b16 %v1283
    %v4186 = vunpack.c.l.b16 %v1284
    %v4187 = vunpack.c.l.b16 %v1285
    %v4188 = vunpack.c.l.b16 %v1286
    %v4189 = vunpack.c.l.b16 %v1287
    %v4190 = vunpack.c.l.b16 %v1288
    %v4191 = vunpack.c.l.b16 %v1289
    %v4192 = vunpack.c.l.b16 %v1290
    %v4193 = vunpack.c.l.b16 %v1291
    %v4194 = vunpack.c.l.b16 %v1292
    %v4195 = vunpack.c.l.b16 %v1293
    %v4196 = vunpack.c.l.b16 %v1294
    %v4197 = vunpack.c.l.b16 %v1295
    %v4198 = vunpack.c.l.b16 %v1296
    %v4199 = vunpack.c.l.b16 %v1297
    %v4200 = vunpack.c.l.b16 %v1298
    %v4201 = vunpack.c.l.b16 %v1299
    %v4202 = vunpack.c.l.b16 %v1300
    %v4203 = vunpack.c.l.b16 %v1301
    %v4204 = vunpack.c.l.b16 %v1302
    %v4205 = vunpack.c.l.b16 %v1303
    %v4206 = vunpack.c.l.b16 %v1304
    %v4207 = vunpack.c.l.b16 %v1305
    %v4208 = vunpack.c.l.b16 %v1306
    %v4209 = vunpack.c.l.b16 %v1307
    %v4210 = vunpack.c.l.b16 %v1308
    %v4211 = vunpack.c.l.b16 %v1309
    %v4212 = vunpack.c.l.b16 %v1310
    %v4213 = vunpack.c.l.b16 %v1311
    %v4214 = vunpack.c.l.b16 %v1312
    %v4215 = vunpack.c.l.b16 %v1313
    %v4216 = vunpack.c.l.b16 %v1314
    %v4217 = vunpack.c.l.b16 %v1315
    %v4218 = vunpack.c.l.b16 %v1316
    %v4219 = vunpack.c.l.b16 %v1317
    %v4220 = vunpack.c.l.b16 %v1318
    %v4221 = vunpack.c.l.b16 %v1319
    %v4222 = vunpack.c.l.b16 %v1320
    %v4223 = vunpack.c.l.b16 %v1321
    %v4224 = vunpack.c.l.b16 %v1322
    %v4225 = vunpack.c.l.b16 %v1323
    %v4226 = vunpack.c.l.b16 %v1324
    %v4227 = vunpack.c.l.b16 %v1325
    %v4228 = vunpack.c.l.b16 %v1326
    %v4229 = vunpack.c.l.b16 %v1327
    %v4230 = vunpack.c.l.b16 %v1328
    %v4231 = vunpack.c.l.b16 %v1329
    %v4232 = vunpack.c.l.b16 %v1330
    %v4233 = vunpack.c.l.b16 %v1331
    %v4234 = vunpack.c.l.b16 %v1332
    %v4235 = vunpack.c.l.b16 %v1333
    %v4236 = vunpack.c.l.b16 %v1334
    %v4237 = vunpack.c.l.b16 %v1335
    %v4238 = vunpack.c.l.b16 %v1336
    %v4239 = vunpack.c.l.b16 %v1337
    %v4240 = vunpack.c.l.b16 %v1338
    %v4241 = vunpack.c.l.b16 %v1339
    %v4242 = vunpack.c.l.b16 %v1340
    %v4243 = vunpack.c.l.b16 %v1341
    %v4244 = vunpack.c.l.b16 %v1342
    %v4245 = vunpack.c.l.b16 %v1343
    %v4246 = vunpack.c.l.b16 %v1344
    %v4247 = vunpack.c.l.b16 %v1345
    %v4248 = vunpack.c.l.b16 %v1346
    %v4249 = vunpack.c.l.b16 %v1347
    %v4250 = vunpack.c.l.b16 %v1348
    %v4251 = vunpack.c.l.b16 %v1349
    %v4252 = vunpack.c.l.b16 %v1350
    %v4253 = vunpack.c.l.b16 %v1351
    %v4254 = vunpack.c.l.b16 %v1352
    %v4255 = vunpack.c.l.b16 %v1353
    %v4256 = vunpack.c.l.b16 %v1354
    %v4257 = vunpack.c.l.b16 %v1355
    %v4258 = vunpack.c.l.b16 %v1356
    %v4259 = vunpack.c.l.b16 %v1357
    %v4260 = vunpack.c.l.b16 %v1358
    %v4261 = vunpack.c.l.b16 %v1359
    %v4262 = vpack.c.b16 %v3013, %v3012
    %v4263 = vpack.c.b16 %v3015, %v3014
    %v4264 = vpack.c.b16 %v3017, %v3016
    %v4265 = vpack.c.b16 %v3019, %v3018
    %v4266 = vpack.c.b16 %v3021, %v3020
    %v4267 = vpack.c.b16 %v3023, %v3022
    %v4268 = vpack.c.b16 %v3025, %v3024
    %v4269 = vpack.c.b16 %v3027, %v3026
    %v4270 = vpack.c.b16 %v3029, %v3028
    %v4271 = vpack.c.b16 %v3031, %v3030
    %v4272 = vpack.c.b16 %v3033, %v3032
    %v4273 = vpack.c.b16 %v3035, %v3034
    %v4274 = vpack.c.b16 %v3037, %v3036
    %v4275 = vpack.c.b16 %v3039, %v3038
    %v4276 = vpack.c.b16 %v3041, %v3040
    %v4277 = vpack.c.b16 %v3043, %v3042
    %v4278 = vpack.c.b16 %v3045, %v3044
    %v4279 = vpack.c.b16 %v3047, %v3046
    %v4280 = vpack.c.b16 %v3049, %v3048
    %v4281 = vpack.c.b16 %v3051, %v3050
    %v4282 = vpack.c.b16 %v3053, %v3052
    %v4283 = vpack.c.b16 %v3055, %v3054
    %v4284 = vpack.c.b16 %v3057, %v3056
    %v4285 = vpack.c.b16 %v3059, %v3058
    %v4286 = vpack.c.b16 %v3061, %v3060
    %v4287 = vpack.c.b16 %v3063, %v3062
    %v4288 = vpack.c.b16 %v3065, %v3064
    %v4289 = vpack.c.b16 %v3067, %v3066
    %v4290 = vpack.c.b16 %v3069, %v3068
    %v4291 = vpack.c.b16 %v3071, %v3070
    %v4292 = vpack.c.b16 %v3073, %v3072
    %v4293 = vpack.c.b16 %v3075, %v3074
    %v4294 = vpack.c.b16 %v3077, %v3076
    %v4295 = vpack.c.b16 %v3079, %v3078
    %v4296 = vpack.c.b16 %v3081, %v3080
    %v4297 = vpack.c.b16 %v3083, %v3082
    %v4298 = vpack.c.b16 %v3085, %v3084
    %v4299 = vpack.c.b16 %v3087, %v3086
    %v4300 = vpack.c.b16 %v3089, %v3088
    %v4301 = vpack.c.b16 %v3091, %v3090
    %v4302 = vpack.c.b16 %v3093, %v3092
    %v4303 = vpack.c.b16 %v3095, %v3094
    %v4304 = vpack.c.b16 %v3097, %v3096
    %v4305 = vpack.c.b16 %v3099, %v3098
    %v4306 = vpack.c.b16 %v3101, %v3100
    %v4307 = vpack.c.b16 %v3103, %v3102
    %v4308 = vpack.c.b16 %v3105, %v3104
    %v4309 = vpack.c.b16 %v3107, %v3106
    %v4310 = vpack.c.b16 %v3109, %v3108
    %v4311 = vpack.c.b16 %v3111, %v3110
    %v4312 = vpack.c.b16 %v3113, %v3112
    %v4313 = vpack.c.b16 %v3115, %v3114
    %v4314 = vpack.c.b16 %v3117, %v3116
    %v4315 = vpack.c.b16 %v3119, %v3118
    %v4316 = vpack.c.b16 %v3121, %v3120
    %v4317 = vpack.c.b16 %v3123, %v3122
    %v4318 = vpack.c.b16 %v3125, %v3124
    %v4319 = vpack.c.b16 %v3127, %v3126
    %v4320 = vpack.c.b16 %v3129, %v3128
    %v4321 = vpack.c.b16 %v3131, %v3130
    %v4322 = vpack.c.b16 %v3133, %v3132
    %v4323 = vpack.c.b16 %v3135, %v3134
    %v4324 = vpack.c.b16 %v3137, %v3136
    %v4325 = vpack.c.b16 %v3139, %v3138
    %v4326 = vpack.c.b16 %v3141, %v3140
    %v4327 = vpack.c.b16 %v3143, %v3142
    %v4328 = vpack.c.b16 %v3145, %v3144
    %v4329 = vpack.c.b16 %v3147, %v3146
    %v4330 = vpack.c.b16 %v3149, %v3148
    %v4331 = vpack.c.b16 %v3151, %v3150
    %v4332 = vpack.c.b16 %v3153, %v3152
    %v4333 = vpack.c.b16 %v3155, %v3154
    %v4334 = vpack.c.b16 %v3157, %v3156
    %v4335 = vpack.c.b16 %v3159, %v3158
    %v4336 = vpack.c.b16 %v3161, %v3160
    %v4337 = vpack.c.b16 %v3163, %v3162
    %v4338 = vpack.c.b16 %v3165, %v3164
    %v4339 = vpack.c.b16 %v3167, %v3166
    %v4340 = vpack.c.b16 %v3169, %v3168
    %v4341 = vpack.c.b16 %v3171, %v3170
    %v4342 = vpack.c.b16 %v3173, %v3172
    %v4343 = vpack.c.b16 %v3175, %v3174
    %v4344 = vpack.c.b16 %v3177, %v3176
    %v4345 = vpack.c.b16 %v3179, %v3178
    %v4346 = vpack.c.b16 %v3181, %v3180
    %v4347 = vpack.c.b16 %v3183, %v3182
    %v4348 = vpack.c.b16 %v3185, %v3184
    %v4349 = vpack.c.b16 %v3187, %v3186
    %v4350 = vpack.c.b16 %v3189, %v3188
    %v4351 = vpack.c.b16 %v3191, %v3190
    %v4352 = vpack.c.b16 %v3193, %v3192
    %v4353 = vpack.c.b16 %v3195, %v3194
    %v4354 = vpack.c.b16 %v3197, %v3196
    %v4355 = vpack.c.b16 %v3199, %v3198
    %v4356 = vpack.c.b16 %v3201, %v3200
    %v4357 = vpack.c.b16 %v3203, %v3202
    %v4358 = vpack.c.b16 %v3205, %v3204
    %v4359 = vpack.c.b16 %v3207, %v3206
    %v4360 = vpack.c.b16 %v3209, %v3208
    %v4361 = vpack.c.b16 %v3211, %v3210
    %v4362 = vpack.c.b16 %v3213, %v3212
    %v4363 = vpack.c.b16 %v3215, %v3214
    %v4364 = vpack.c.b16 %v3217, %v3216
    %v4365 = vpack.c.b16 %v3219, %v3218
    %v4366 = vpack.c.b16 %v3221, %v3220
    %v4367 = vpack.c.b16 %v3223, %v3222
    %v4368 = vpack.c.b16 %v3225, %v3224
    %v4369 = vpack.c.b16 %v3227, %v3226
    %v4370 = vpack.c.b16 %v3229, %v3228
    %v4371 = vpack.c.b16 %v3231, %v3230
    %v4372 = vpack.c.b16 %v3233, %v3232
    %v4373 = vpack.c.b16 %v3235, %v3234
    %v4374 = vpack.c.b16 %v3237, %v3236
    %v4375 = vpack.c.b16 %v3239, %v3238
    %v4376 = vpack.c.b16 %v3241, %v3240
    %v4377 = vpack.c.b16 %v3243, %v3242
    %v4378 = vpack.c.b16 %v3245, %v3244
    %v4379 = vpack.c.b16 %v3247, %v3246
    %v4380 = vpack.c.b16 %v3249, %v3248
    %v4381 = vpack.c.b16 %v3251, %v3250
    %v4382 = vpack.c.b16 %v3253, %v3252
    %v4383 = vpack.c.b16 %v3255, %v3254
    %v4384 = vpack.c.b16 %v3257, %v3256
    %v4385 = vpack.c.b16 %v3259, %v3258
    %v4386 = vpack.c.b16 %v3261, %v3260
    %v4387 = vpack.c.b16 %v3263, %v3262
    %v4388 = vpack.c.b16 %v3265, %v3264
    %v4389 = vpack.c.b16 %v3267, %v3266
    %v4390 = vpack.c.b16 %v3269, %v3268
    %v4391 = vpack.c.b16 %v3271, %v3270
    %v4392 = vpack.c.b16 %v3273, %v3272
    %v4393 = vpack.c.b16 %v3275, %v3274
    %v4394 = vpack.c.b16 %v3277, %v3276
    %v4395 = vpack.c.b16 %v3279, %v3278
    %v4396 = vpack.c.b16 %v3281, %v3280
    %v4397 = vpack.c.b16 %v3283, %v3282
    %v4398 = vpack.c.b16 %v3285, %v3284
    %v4399 = vpack.c.b16 %v3287, %v3286
    %v4400 = vpack.c.b16 %v3289, %v3288
    %v4401 = vpack.c.b16 %v3291, %v3290
    %v4402 = vpack.c.b16 %v3293, %v3292
    %v4403 = vpack.c.b16 %v3295, %v3294
    %v4404 = vpack.c.b16 %v3297, %v3296
    %v4405 = vpack.c.b16 %v3299, %v3298
    %v4406 = vpack.c.b16 %v3301, %v3300
    %v4407 = vpack.c.b16 %v3303, %v3302
    %v4408 = vpack.c.b16 %v3305, %v3304
    %v4409 = vpack.c.b16 %v3307, %v3306
    %v4410 = vpack.c.b16 %v3309, %v3308
    %v4411 = vpack.c.b16 %v3311, %v3310
    %v4412 = vpack.c.b16 %v3313, %v3312
    %v4413 = vpack.c.b16 %v3315, %v3314
    %v4414 = vpack.c.b16 %v3317, %v3316
    %v4415 = vpack.c.b16 %v3319, %v3318
    %v4416 = vpack.c.b16 %v3321, %v3320
    %v4417 = vpack.c.b16 %v3323, %v3322
    %v4418 = vpack.c.b16 %v3325, %v3324
    %v4419 = vpack.c.b16 %v3327, %v3326
    %v4420 = vpack.c.b16 %v3329, %v3328
    %v4421 = vpack.c.b16 %v3331, %v3330
    %v4422 = vpack.c.b16 %v3333, %v3332
    %v4423 = vpack.c.b16 %v3335, %v3334
    %v4424 = vpack.c.b16 %v3337, %v3336
    %v4425 = vpack.c.b16 %v3339, %v3338
    %v4426 = vpack.c.b16 %v3341, %v3340
    %v4427 = vpack.c.b16 %v3343, %v3342
    %v4428 = vpack.c.b16 %v3345, %v3344
    %v4429 = vpack.c.b16 %v3347, %v3346
    %v4430 = vpack.c.b16 %v3349, %v3348
    %v4431 = vpack.c.b16 %v3351, %v3350
    %v4432 = vpack.c.b16 %v3353, %v3352
    %v4433 = vpack.c.b16 %v3355, %v3354
    %v4434 = vpack.c.b16 %v3357, %v3356
    %v4435 = vpack.c.b16 %v3359, %v3358
    %v4436 = vpack.c.b16 %v3361, %v3360
    %v4437 = vpack.c.b16 %v3363, %v3362
    %v4438 = vpack.c.b16 %v3365, %v3364
    %v4439 = vpack.c.b16 %v3367, %v3366
    %v4440 = vpack.c.b16 %v3369, %v3368
    %v4441 = vpack.c.b16 %v3371, %v3370
    %v4442 = vpack.c.b16 %v3373, %v3372
    %v4443 = vpack.c.b16 %v3375, %v3374
    %v4444 = vpack.c.b16 %v3377, %v3376
    %v4445 = vpack.c.b16 %v3379, %v3378
    %v4446 = vpack.c.b16 %v3381, %v3380
    %v4447 = vpack.c.b16 %v3383, %v3382
    %v4448 = vpack.c.b16 %v3385, %v3384
    %v4449 = vpack.c.b16 %v3387, %v3386
    %v4450 = vpack.c.b16 %v3389, %v3388
    %v4451 = vpack.c.b16 %v3391, %v3390
    %v4452 = vpack.c.b16 %v3393, %v3392
    %v4453 = vpack.c.b16 %v3395, %v3394
    %v4454 = vpack.c.b16 %v3397, %v3396
    %v4455 = vpack.c.b16 %v3399, %v3398
    %v4456 = vpack.c.b16 %v3401, %v3400
    %v4457 = vpack.c.b16 %v3403, %v3402
    %v4458 = vpack.c.b16 %v3405, %v3404
    %v4459 = vpack.c.b16 %v3407, %v3406
    %v4460 = vpack.c.b16 %v3409, %v3408
    %v4461 = vpack.c.b16 %v3411, %v3410
    %v4462 = vpack.c.b16 %v3413, %v3412
    %v4463 = vpack.c.b16 %v3415, %v3414
    %v4464 = vpack.c.b16 %v3417, %v3416
    %v4465 = vpack.c.b16 %v3419, %v3418
    %v4466 = vpack.c.b16 %v3421, %v3420
    %v4467 = vpack.c.b16 %v3423, %v3422
    %v4468 = vpack.c.b16 %v3425, %v3424
    %v4469 = vpack.c.b16 %v3427, %v3426
    %v4470 = vpack.c.b16 %v3429, %v3428
    %v4471 = vpack.c.b16 %v3431, %v3430
    %v4472 = vpack.c.b16 %v3433, %v3432
    %v4473 = vpack.c.b16 %v3435, %v3434
    %v4474 = vpack.c.b16 %v3437, %v3436
    %v4475 = vpack.c.b16 %v3439, %v3438
    %v4476 = vpack.c.b16 %v3441, %v3440
    %v4477 = vpack.c.b16 %v3443, %v3442
    %v4478 = vpack.c.b16 %v3445, %v3444
    %v4479 = vpack.c.b16 %v3447, %v3446
    %v4480 = vpack.c.b16 %v3449, %v3448
    %v4481 = vpack.c.b16 %v3451, %v3450
    %v4482 = vpack.c.b16 %v3453, %v3452
    %v4483 = vpack.c.b16 %v3455, %v3454
    %v4484 = vpack.c.b16 %v3457, %v3456
    %v4485 = vpack.c.b16 %v3459, %v3458
    %v4486 = vpack.c.b16 %v3461, %v3460
    %v4487 = vpack.c.b16 %v3463, %v3462
    %v4488 = vpack.c.b16 %v3465, %v3464
    %v4489 = vpack.c.b16 %v3467, %v3466
    %v4490 = vpack.c.b16 %v3469, %v3468
    %v4491 = vpack.c.b16 %v3471, %v3470
    %v4492 = vpack.c.b16 %v3473, %v3472
    %v4493 = vpack.c.b16 %v3475, %v3474
    %v4494 = vpack.c.b16 %v3477, %v3476
    %v4495 = vpack.c.b16 %v3479, %v3478
    %v4496 = vpack.c.b16 %v3481, %v3480
    %v4497 = vpack.c.b16 %v3483, %v3482
    %v4498 = vpack.c.b16 %v3485, %v3484
    %v4499 = vpack.c.b16 %v3487, %v3486
    %v4500 = vpack.c.b16 %v3489, %v3488
    %v4501 = vpack.c.b16 %v3491, %v3490
    %v4502 = vpack.c.b16 %v3493, %v3492
    %v4503 = vpack.c.b16 %v3495, %v3494
    %v4504 = vpack.c.b16 %v3497, %v3496
    %v4505 = vpack.c.b16 %v3499, %v3498
    %v4506 = vpack.c.b16 %v3501, %v3500
    %v4507 = vpack.c.b16 %v3503, %v3502
    %v4508 = vpack.c.b16 %v3505, %v3504
    %v4509 = vpack.c.b16 %v3507, %v3506
    %v4510 = vpack.c.b16 %v3509, %v3508
    %v4511 = vpack.c.b16 %v3511, %v3510
    %v4512 = vpack.c.b16 %v3513, %v3512
    %v4513 = vpack.c.b16 %v3515, %v3514
    %v4514 = vpack.c.b16 %v3517, %v3516
    %v4515 = vpack.c.b16 %v3519, %v3518
    %v4516 = vpack.c.b16 %v3521, %v3520
    %v4517 = vpack.c.b16 %v3523, %v3522
    %v4518 = vpack.c.b16 %v3525, %v3524
    %v4519 = vpack.c.b16 %v3527, %v3526
    %v4520 = vpack.c.b16 %v3529, %v3528
    %v4521 = vpack.c.b16 %v3531, %v3530
    %v4522 = vpack.c.b16 %v3533, %v3532
    %v4523 = vpack.c.b16 %v3535, %v3534
    %v4524 = vpack.c.b16 %v3537, %v3536
    %v4525 = vpack.c.b16 %v3539, %v3538
    %v4526 = vpack.c.b16 %v3541, %v3540
    %v4527 = vpack.c.b16 %v3543, %v3542
    %v4528 = vpack.c.b16 %v3545, %v3544
    %v4529 = vpack.c.b16 %v3547, %v3546
    %v4530 = vpack.c.b16 %v3549, %v3548
    %v4531 = vpack.c.b16 %v3551, %v3550
    %v4532 = vpack.c.b16 %v3553, %v3552
    %v4533 = vpack.c.b16 %v3555, %v3554
    %v4534 = vpack.c.b16 %v3557, %v3556
    %v4535 = vpack.c.b16 %v3559, %v3558
    %v4536 = vpack.c.b16 %v3561, %v3560
    %v4537 = vpack.c.b16 %v3563, %v3562
    %v4538 = vpack.c.b16 %v3565, %v3564
    %v4539 = vpack.c.b16 %v3567, %v3566
    %v4540 = vpack.c.b16 %v3569, %v3568
    %v4541 = vpack.c.b16 %v3571, %v3570
    %v4542 = vpack.c.b16 %v3573, %v3572
    %v4543 = vpack.c.b16 %v3575, %v3574
    %v4544 = vpack.c.b16 %v3577, %v3576
    %v4545 = vpack.c.b16 %v3579, %v3578
    %v4546 = vpack.c.b16 %v3581, %v3580
    %v4547 = vpack.c.b16 %v3583, %v3582
    %v4548 = vpack.c.b16 %v3585, %v3584
    %v4549 = vpack.c.b16 %v3587, %v3586
    %v4550 = vpack.c.b16 %v3589, %v3588
    %v4551 = vpack.c.b16 %v3591, %v3590
    %v4552 = vpack.c.b16 %v3593, %v3592
    %v4553 = vpack.c.b16 %v3595, %v3594
    %v4554 = vpack.c.b16 %v3597, %v3596
    %v4555 = vpack.c.b16 %v3599, %v3598
    %v4556 = vpack.c.b16 %v3601, %v3600
    %v4557 = vpack.c.b16 %v3603, %v3602
    %v4558 = vpack.c.b16 %v3605, %v3604
    %v4559 = vpack.c.b16 %v3607, %v3606
    %v4560 = vpack.c.b16 %v3609, %v3608
    %v4561 = vpack.c.b16 %v3611, %v3610
    %v4562 = vpack.c.b16 %v3613, %v3612
    %v4563 = vpack.c.b16 %v3615, %v3614
    %v4564 = vpack.c.b16 %v3617, %v3616
    %v4565 = vpack.c.b16 %v3619, %v3618
    %v4566 = vpack.c.b16 %v3621, %v3620
    %v4567 = vpack.c.b16 %v3623, %v3622
    %v4568 = vpack.c.b16 %v3625, %v3624
    %v4569 = vpack.c.b16 %v3627, %v3626
    %v4570 = vpack.c.b16 %v3629, %v3628
    %v4571 = vpack.c.b16 %v3631, %v3630
    %v4572 = vpack.c.b16 %v3633, %v3632
    %v4573 = vpack.c.b16 %v3635, %v3634
    %v4574 = vpack.c.b16 %v3637, %v3636
    %v4575 = vpack.c.b16 %v3639, %v3638
    %v4576 = vpack.c.b16 %v3641, %v3640
    %v4577 = vpack.c.b16 %v3643, %v3642
    %v4578 = vpack.c.b16 %v3645, %v3644
    %v4579 = vpack.c.b16 %v3647, %v3646
    %v4580 = vpack.c.b16 %v3649, %v3648
    %v4581 = vpack.c.b16 %v3651, %v3650
    %v4582 = vpack.c.b16 %v3653, %v3652
    %v4583 = vpack.c.b16 %v3655, %v3654
    %v4584 = vpack.c.b16 %v3657, %v3656
    %v4585 = vpack.c.b16 %v3659, %v3658
    %v4586 = vpack.c.b16 %v3661, %v3660
    %v4587 = vpack.c.b16 %v3663, %v3662
    %v4588 = vpack.c.b16 %v3665, %v3664
    %v4589 = vpack.c.b16 %v3667, %v3666
    %v4590 = vpack.c.b16 %v3669, %v3668
    %v4591 = vpack.c.b16 %v3671, %v3670
    %v4592 = vpack.c.b16 %v3673, %v3672
    %v4593 = vpack.c.b16 %v3675, %v3674
    %v4594 = vpack.c.b16 %v3677, %v3676
    %v4595 = vpack.c.b16 %v3679, %v3678
    %v4596 = vpack.c.b16 %v3681, %v3680
    %v4597 = vpack.c.b16 %v3683, %v3682
    %v4598 = vpack.c.b16 %v3685, %v3684
    %v4599 = vpack.c.b16 %v3687, %v3686
    %v4600 = vpack.c.b16 %v3689, %v3688
    %v4601 = vpack.c.b16 %v3691, %v3690
    %v4602 = vpack.c.b16 %v3693, %v3692
    %v4603 = vpack.c.b16 %v3695, %v3694
    %v4604 = vpack.c.b16 %v3697, %v3696
    %v4605 = vpack.c.b16 %v3699, %v3698
    %v4606 = vpack.c.b16 %v3701, %v3700
    %v4607 = vpack.c.b16 %v3703, %v3702
    %v4608 = vpack.c.b16 %v3705, %v3704
    %v4609 = vpack.c.b16 %v3707, %v3706
    %v4610 = vpack.c.b16 %v3709, %v3708
    %v4611 = vpack.c.b16 %v3711, %v3710
    %v4612 = vpack.c.b16 %v3713, %v3712
    %v4613 = vpack.c.b16 %v3715, %v3714
    %v4614 = vpack.c.b16 %v3717, %v3716
    %v4615 = vpack.c.b16 %v3719, %v3718
    %v4616 = vpack.c.b16 %v3721, %v3720
    %v4617 = vpack.c.b16 %v3723, %v3722
    %v4618 = vpack.c.b16 %v3725, %v3724
    %v4619 = vpack.c.b16 %v3727, %v3726
    %v4620 = vpack.c.b16 %v3729, %v3728
    %v4621 = vpack.c.b16 %v3731, %v3730
    %v4622 = vpack.c.b16 %v3733, %v3732
    %v4623 = vpack.c.b16 %v3735, %v3734
    %v4624 = vpack.c.b16 %v3737, %v3736
    %v4625 = vpack.c.b16 %v3739, %v3738
    %v4626 = vpack.c.b16 %v3741, %v3740
    %v4627 = vpack.c.b16 %v3743, %v3742
    %v4628 = vpack.c.b16 %v3745, %v3744
    %v4629 = vpack.c.b16 %v3747, %v3746
    %v4630 = vpack.c.b16 %v3749, %v3748
    %v4631 = vpack.c.b16 %v3751, %v3750
    %v4632 = vpack.c.b16 %v3753, %v3752
    %v4633 = vpack.c.b16 %v3755, %v3754
    %v4634 = vpack.c.b16 %v3757, %v3756
    %v4635 = vpack.c.b16 %v3759, %v3758
    %v4636 = vpack.c.b16 %v3761, %v3760
    %v4637 = vpack.c.b16 %v3763, %v3762
    %v4638 = vpack.c.b16 %v3765, %v3764
    %v4639 = vpack.c.b16 %v3767, %v3766
    %v4640 = vpack.c.b16 %v3769, %v3768
    %v4641 = vpack.c.b16 %v3771, %v3770
    %v4642 = vpack.c.b16 %v3773, %v3772
    %v4643 = vpack.c.b16 %v3775, %v3774
    %v4644 = vpack.c.b16 %v3777, %v3776
    %v4645 = vpack.c.b16 %v3779, %v3778
    %v4646 = vpack.c.b16 %v3781, %v3780
    %v4647 = vpack.c.b16 %v3783, %v3782
    %v4648 = vpack.c.b16 %v3785, %v3784
    %v4649 = vpack.c.b16 %v3787, %v3786
    %v4650 = vpack.c.b16 %v3789, %v3788
    %v4651 = vpack.c.b16 %v3791, %v3790
    %v4652 = vpack.c.b16 %v3793, %v3792
    %v4653 = vpack.c.b16 %v3795, %v3794
    %v4654 = vpack.c.b16 %v3797, %v3796
    %v4655 = vpack.c.b16 %v3799, %v3798
    %v4656 = vpack.c.b16 %v3801, %v3800
    %v4657 = vpack.c.b16 %v3803, %v3802
    %v4658 = vpack.c.b16 %v3805, %v3804
    %v4659 = vpack.c.b16 %v3807, %v3806
    %v4660 = vpack.c.b16 %v3809, %v3808
    %v4661 = vpack.c.b16 %v3811, %v3810
    %v4662 = vpack.c.b16 %v3813, %v3812
    %v4663 = vpack.c.b16 %v3815, %v3814
    %v4664 = vpack.c.b16 %v3817, %v3816
    %v4665 = vpack.c.b16 %v3819, %v3818
    %v4666 = vpack.c.b16 %v3821, %v3820
    %v4667 = vpack.c.b16 %v3823, %v3822
    %v4668 = vpack.c.b16 %v3825, %v3824
    %v4669 = vpack.c.b16 %v3827, %v3826
    %v4670 = vpack.c.b16 %v3829, %v3828
    %v4671 = vpack.c.b16 %v3831, %v3830
    %v4672 = vpack.c.b16 %v3833, %v3832
    %v4673 = vpack.c.b16 %v3835, %v3834
    %v4674 = vpack.c.b16 %v3837, %v3836
    %v4675 = vpack.c.b16 %v3839, %v3838
    %v4676 = vpack.c.b16 %v3841, %v3840
    %v4677 = vpack.c.b16 %v3843, %v3842
    %v4678 = vpack.c.b16 %v3845, %v3844
    %v4679 = vpack.c.b16 %v3847, %v3846
    %v4680 = vpack.c.b16 %v3849, %v3848
    %v4681 = vpack.c.b16 %v3851, %v3850
    %v4682 = vpack.c.b16 %v3853, %v3852
    %v4683 = vpack.c.b16 %v3855, %v3854
    %v4684 = vpack.c.b16 %v3857, %v3856
    %v4685 = vpack.c.b16 %v3859, %v3858
    %v4686 = vpack.c.b16 %v3861, %v3860
    %v4687 = vpack.c.b16 %v3863, %v3862
    %v4688 = vpack.c.b16 %v3865, %v3864
    %v4689 = vpack.c.b16 %v3867, %v3866
    %v4690 = vpack.c.b16 %v3869, %v3868
    %v4691 = vpack.c.b16 %v3871, %v3870
    %v4692 = vpack.c.b16 %v3873, %v3872
    %v4693 = vpack.c.b16 %v3875, %v3874
    %v4694 = vpack.c.b16 %v3877, %v3876
    %v4695 = vpack.c.b16 %v3879, %v3878
    %v4696 = vpack.c.b16 %v3881, %v3880
    %v4697 = vpack.c.b16 %v3883, %v3882
    %v4698 = vpack.c.b16 %v3885, %v3884
    %v4699 = vpack.c.b16 %v3887, %v3886
    %v4700 = vpack.c.b16 %v3889, %v3888
    %v4701 = vpack.c.b16 %v3891, %v3890
    %v4702 = vpack.c.b16 %v3893, %v3892
    %v4703 = vpack.c.b16 %v3895, %v3894
    %v4704 = vpack.c.b16 %v3897, %v3896
    %v4705 = vpack.c.b16 %v3899, %v3898
    %v4706 = vpack.c.b16 %v3901, %v3900
    %v4707 = vpack.c.b16 %v3903, %v3902
    %v4708 = vpack.c.b16 %v3905, %v3904
    %v4709 = vpack.c.b16 %v3907, %v3906
    %v4710 = vpack.c.b16 %v3909, %v3908
    %v4711 = vpack.c.b16 %v3911, %v3910
    %v4712 = vpack.c.b16 %v3913, %v3912
    %v4713 = vpack.c.b16 %v3915, %v3914
    %v4714 = vpack.c.b16 %v3917, %v3916
    %v4715 = vpack.c.b16 %v3919, %v3918
    %v4716 = vpack.c.b16 %v3921, %v3920
    %v4717 = vpack.c.b16 %v3923, %v3922
    %v4718 = vpack.c.b16 %v3925, %v3924
    %v4719 = vpack.c.b16 %v3927, %v3926
    %v4720 = vpack.c.b16 %v3929, %v3928
    %v4721 = vpack.c.b16 %v3931, %v3930
    %v4722 = vpack.c.b16 %v3933, %v3932
    %v4723 = vpack.c.b16 %v3935, %v3934
    %v4724 = vpack.c.b16 %v3937, %v3936
    %v4725 = vpack.c.b16 %v3939, %v3938
    %v4726 = vpack.c.b16 %v3941, %v3940
    %v4727 = vpack.c.b16 %v3943, %v3942
    %v4728 = vpack.c.b16 %v3945, %v3944
    %v4729 = vpack.c.b16 %v3947, %v3946
    %v4730 = vpack.c.b16 %v3949, %v3948
    %v4731 = vpack.c.b16 %v3951, %v3950
    %v4732 = vpack.c.b16 %v3953, %v3952
    %v4733 = vpack.c.b16 %v3955, %v3954
    %v4734 = vpack.c.b16 %v3957, %v3956
    %v4735 = vpack.c.b16 %v3959, %v3958
    %v4736 = vpack.c.b16 %v3961, %v3960
    %v4737 = vpack.c.b16 %v3963, %v3962
    %v4738 = vpack.c.b16 %v3965, %v3964
    %v4739 = vpack.c.b16 %v3967, %v3966
    %v4740 = vpack.c.b16 %v3969, %v3968
    %v4741 = vpack.c.b16 %v3971, %v3970
    %v4742 = vpack.c.b16 %v3973, %v3972
    %v4743 = vpack.c.b16 %v3975, %v3974
    %v4744 = vpack.c.b16 %v3977, %v3976
    %v4745 = vpack.c.b16 %v3979, %v3978
    %v4746 = vpack.c.b16 %v3981, %v3980
    %v4747 = vpack.c.b16 %v3983, %v3982
    %v4748 = vpack.c.b16 %v3985, %v3984
    %v4749 = vpack.c.b16 %v3987, %v3986
    %v4750 = vpack.c.b16 %v3989, %v3988
    %v4751 = vpack.c.b16 %v3991, %v3990
    %v4752 = vpack.c.b16 %v3993, %v3992
    %v4753 = vpack.c.b16 %v3995, %v3994
    %v4754 = vpack.c.b16 %v3997, %v3996
    %v4755 = vpack.c.b16 %v3999, %v3998
    %v4756 = vpack.c.b16 %v4001, %v4000
    %v4757 = vpack.c.b16 %v4003, %v4002
    %v4758 = vpack.c.b16 %v4005, %v4004
    %v4759 = vpack.c.b16 %v4007, %v4006
    %v4760 = vpack.c.b16 %v4009, %v4008
    %v4761 = vpack.c.b16 %v4011, %v4010
    %v4762 = vpack.c.b16 %v4013, %v4012
    %v4763 = vpack.c.b16 %v4015, %v4014
    %v4764 = vpack.c.b16 %v4017, %v4016
    %v4765 = vpack.c.b16 %v4019, %v4018
    %v4766 = vpack.c.b16 %v4021, %v4020
    %v4767 = vpack.c.b16 %v4023, %v4022
    %v4768 = vpack.c.b16 %v4025, %v4024
    %v4769 = vpack.c.b16 %v4027, %v4026
    %v4770 = vpack.c.b16 %v4029, %v4028
    %v4771 = vpack.c.b16 %v4031, %v4030
    %v4772 = vpack.c.b16 %v4033, %v4032
    %v4773 = vpack.c.b16 %v4035, %v4034
    %v4774 = vpack.c.b16 %v4037, %v4036
    %v4775 = vpack.c.b16 %v4039, %v4038
    %v4776 = vpack.c.b16 %v4041, %v4040
    %v4777 = vpack.c.b16 %v4043, %v4042
    %v4778 = vpack.c.b16 %v4045, %v4044
    %v4779 = vpack.c.b16 %v4047, %v4046
    %v4780 = vpack.c.b16 %v4049, %v4048
    %v4781 = vpack.c.b16 %v4051, %v4050
    %v4782 = vpack.c.b16 %v4053, %v4052
    %v4783 = vpack.c.b16 %v4055, %v4054
    %v4784 = vpack.c.b16 %v4057, %v4056
    %v4785 = vpack.c.b16 %v4059, %v4058
    %v4786 = vpack.c.b16 %v4061, %v4060
    %v4787 = vpack.c.b16 %v4063, %v4062
    %v4788 = vpack.c.b16 %v4065, %v4064
    %v4789 = vpack.c.b16 %v4067, %v4066
    %v4790 = vpack.c.b16 %v4069, %v4068
    %v4791 = vpack.c.b16 %v4071, %v4070
    %v4792 = vpack.c.b16 %v4073, %v4072
    %v4793 = vpack.c.b16 %v4075, %v4074
    %v4794 = vpack.c.b16 %v4077, %v4076
    %v4795 = vpack.c.b16 %v4079, %v4078
    %v4796 = vpack.c.b16 %v4081, %v4080
    %v4797 = vpack.c.b16 %v4083, %v4082
    %v4798 = vpack.c.b16 %v4085, %v4084
    %v4799 = vpack.c.b16 %v4087, %v4086
    %v4800 = vpack.c.b16 %v4089, %v4088
    %v4801 = vpack.c.b16 %v4091, %v4090
    %v4802 = vpack.c.b16 %v4093, %v4092
    %v4803 = vpack.c.b16 %v4095, %v4094
    %v4804 = vpack.c.b16 %v4097, %v4096
    %v4805 = vpack.c.b16 %v4099, %v4098
    %v4806 = vpack.c.b16 %v4101, %v4100
    %v4807 = vpack.c.b16 %v4103, %v4102
    %v4808 = vpack.c.b16 %v4105, %v4104
    %v4809 = vpack.c.b16 %v4107, %v4106
    %v4810 = vpack.c.b16 %v4109, %v4108
    %v4811 = vpack.c.b16 %v4111, %v4110
    %v4812 = vpack.c.b16 %v4113, %v4112
    %v4813 = vpack.c.b16 %v4115, %v4114
    %v4814 = vpack.c.b16 %v4117, %v4116
    %v4815 = vpack.c.b16 %v4119, %v4118
    %v4816 = vpack.c.b16 %v4121, %v4120
    %v4817 = vpack.c.b16 %v4123, %v4122
    %v4818 = vpack.c.b16 %v4125, %v4124
    %v4819 = vpack.c.b16 %v4127, %v4126
    %v4820 = vpack.c.b16 %v4129, %v4128
    %v4821 = vpack.c.b16 %v4131, %v4130
    %v4822 = vpack.c.b16 %v4133, %v4132
    %v4823 = vpack.c.b16 %v4135, %v4134
    %v4824 = vpack.c.b16 %v4137, %v4136
    %v4825 = vpack.c.b16 %v4139, %v4138
    %v4826 = vpack.c.b16 %v4141, %v4140
    %v4827 = vpack.c.b16 %v4143, %v4142
    %v4828 = vpack.c.b16 %v4145, %v4144
    %v4829 = vpack.c.b16 %v4147, %v4146
    %v4830 = vpack.c.b16 %v4149, %v4148
    %v4831 = vpack.c.b16 %v4151, %v4150
    %v4832 = vpack.c.b16 %v4153, %v4152
    %v4833 = vpack.c.b16 %v4155, %v4154
    %v4834 = vpack.c.b16 %v4157, %v4156
    %v4835 = vpack.c.b16 %v4159, %v4158
    %v4836 = vpack.c.b16 %v4161, %v4160
    %v4837 = vpack.c.b16 %v4163, %v4162
    %v4838 = vpack.c.b16 %v4165, %v4164
    %v4839 = vpack.c.b16 %v4167, %v4166
    %v4840 = vpack.c.b16 %v4169, %v4168
    %v4841 = vpack.c.b16 %v4171, %v4170
    %v4842 = vpack.c.b16 %v4173, %v4172
    %v4843 = vpack.c.b16 %v4175, %v4174
    %v4844 = vpack.c.b16 %v4177, %v4176
    %v4845 = vpack.c.b16 %v4179, %v4178
    %v4846 = vpack.c.b16 %v4181, %v4180
    %v4847 = vpack.c.b16 %v4183, %v4182
    %v4848 = vpack.c.b16 %v4185, %v4184
    %v4849 = vpack.c.b16 %v4187, %v4186
    %v4850 = vpack.c.b16 %v4189, %v4188
    %v4851 = vpack.c.b16 %v4191, %v4190
    %v4852 = vpack.c.b16 %v4193, %v4192
    %v4853 = vpack.c.b16 %v4195, %v4194
    %v4854 = vpack.c.b16 %v4197, %v4196
    %v4855 = vpack.c.b16 %v4199, %v4198
    %v4856 = vpack.c.b16 %v4201, %v4200
    %v4857 = vpack.c.b16 %v4203, %v4202
    %v4858 = vpack.c.b16 %v4205, %v4204
    %v4859 = vpack.c.b16 %v4207, %v4206
    %v4860 = vpack.c.b16 %v4209, %v4208
    %v4861 = vpack.c.b16 %v4211, %v4210
    %v4862 = vpack.c.b16 %v4213, %v4212
    %v4863 = vpack.c.b16 %v4215, %v4214
    %v4864 = vpack.c.b16 %v4217, %v4216
    %v4865 = vpack.c.b16 %v4219, %v4218
    %v4866 = vpack.c.b16 %v4221, %v4220
    %v4867 = vpack.c.b16 %v4223, %v4222
    %v4868 = vpack.c.b16 %v4225, %v4224
    %v4869 = vpack.c.b16 %v4227, %v4226
    %v4870 = vpack.c.b16 %v4229, %v4228
    %v4871 = vpack.c.b16 %v4231, %v4230
    %v4872 = vpack.c.b16 %v4233, %v4232
    %v4873 = vpack.c.b16 %v4235, %v4234
    %v4874 = vpack.c.b16 %v4237, %v4236
    %v4875 = vpack.c.b16 %v4239, %v4238
    %v4876 = vpack.c.b16 %v4241, %v4240
    %v4877 = vpack.c.b16 %v4243, %v4242
    %v4878 = vpack.c.b16 %v4245, %v4244
    %v4879 = vpack.c.b16 %v4247, %v4246
    %v4880 = vpack.c.b16 %v4249, %v4248
    %v4881 = vpack.c.b16 %v4251, %v4250
    %v4882 = vpack.c.b16 %v4253, %v4252
    %v4883 = vpack.c.b16 %v4255, %v4254
    %v4884 = vpack.c.b16 %v4257, %v4256
    %v4885 = vpack.c.b16 %v4259, %v4258
    %v4886 = vpack.c.b16 %v4261, %v4260
    %vm5512 = vcmask 130048
    %v5514 = vsel %vm5512, %v1683, 0
    %5516 = vmatprep.subr.bf16.mxu0 0
    %5517 = vmatpush1.bf16.msra.mxu0 %v4269
    %5518 = vmatprep.subr.bf16.mxu0 0
    %5519 = vmatpush1.bf16.msra.mxu0 %v4268
    %5520 = vmatprep.subr.bf16.mxu0 0
    %5521 = vmatpush1.bf16.msra.mxu0 %v4267
    %5522 = vmatprep.subr.bf16.mxu0 0
    %5523 = vmatpush1.bf16.msra.mxu0 %v4266
    %5524 = vmatprep.subr.bf16.mxu0 0
    %5525 = vmatpush1.bf16.msra.mxu0 %v4265
    %5526 = vmatprep.subr.bf16.mxu0 0
    %5527 = vmatpush1.bf16.msra.mxu0 %v4264
    %5528 = vmatprep.subr.bf16.mxu0 0
    %5529 = vmatpush1.bf16.msra.mxu0 %v4263
    %5530 = vmatprep.subr.bf16.mxu0 0
    %5531 = vmatpush1.bf16.msra.mxu0 %v4262
    %5532 = vmatprep.subr.bf16.mxu0 0
    %5533 = vmatpush2.bf16.msra.mxu0 %v4277
    %5534 = vmatprep.subr.bf16.mxu0 0
    %5535 = vmatpush2.bf16.msra.mxu0 %v4276
    %5536 = vmatprep.subr.bf16.mxu0 0
    %5537 = vmatpush2.bf16.msra.mxu0 %v4275
    %5538 = vmatprep.subr.bf16.mxu0 0
    %5539 = vmatpush2.bf16.msra.mxu0 %v4274
    %5540 = vmatprep.subr.bf16.mxu0 0
    %5541 = vmatpush2.bf16.msra.mxu0 %v4273
    %5542 = vmatprep.subr.bf16.mxu0 0
    %5543 = vmatpush2.bf16.msra.mxu0 %v4272
    %5544 = vmatprep.subr.bf16.mxu0 0
    %5545 = vmatpush2.bf16.msra.mxu0 %v4271
    %5546 = vmatprep.subr.bf16.mxu0 0
    %5547 = vmatpush2.bf16.msra.mxu0 %v4270
    %5548 = vmatprep.mubr.bf16.mxu0 %v1606
    %5549 = vmatmul.mubr.bf16.gmra.mxu0 %v1605
    %v5550 = vpop.f32.mrf.mxu0
    %v5551 = vadd.f32 %v1365, %v5550
    %v5552 = vpop.f32.mrf.mxu0
    %v5553 = vpop.f32.mrf.mxu0
    %v5554 = vadd.f32 %v1365, %v5553
    %v5555 = vpop.f32.mrf.mxu0
    %5556 = vdwg.mxu0
    %5557 = vmatprep.subr.bf16.mxu0 0
    %5558 = vmatpush1.bf16.msra.mxu0 %v4285
    %5559 = vmatprep.subr.bf16.mxu0 0
    %5560 = vmatpush1.bf16.msra.mxu0 %v4284
    %5561 = vmatprep.subr.bf16.mxu0 0
    %5562 = vmatpush1.bf16.msra.mxu0 %v4283
    %5563 = vmatprep.subr.bf16.mxu0 0
    %5564 = vmatpush1.bf16.msra.mxu0 %v4282
    %5565 = vmatprep.subr.bf16.mxu0 0
    %5566 = vmatpush1.bf16.msra.mxu0 %v4281
    %5567 = vmatprep.subr.bf16.mxu0 0
    %5568 = vmatpush1.bf16.msra.mxu0 %v4280
    %5569 = vmatprep.subr.bf16.mxu0 0
    %5570 = vmatpush1.bf16.msra.mxu0 %v4279
    %5571 = vmatprep.subr.bf16.mxu0 0
    %5572 = vmatpush1.bf16.msra.mxu0 %v4278
    %5573 = vmatprep.subr.bf16.mxu0 0
    %5574 = vmatpush2.bf16.msra.mxu0 %v4293
    %5575 = vmatprep.subr.bf16.mxu0 0
    %5576 = vmatpush2.bf16.msra.mxu0 %v4292
    %5577 = vmatprep.subr.bf16.mxu0 0
    %5578 = vmatpush2.bf16.msra.mxu0 %v4291
    %5579 = vmatprep.subr.bf16.mxu0 0
    %5580 = vmatpush2.bf16.msra.mxu0 %v4290
    %5581 = vmatprep.subr.bf16.mxu0 0
    %5582 = vmatpush2.bf16.msra.mxu0 %v4289
    %5583 = vmatprep.subr.bf16.mxu0 0
    %5584 = vmatpush2.bf16.msra.mxu0 %v4288
    %5585 = vmatprep.subr.bf16.mxu0 0
    %5586 = vmatpush2.bf16.msra.mxu0 %v4287
    %5587 = vmatprep.subr.bf16.mxu0 0
    %5588 = vmatpush2.bf16.msra.mxu0 %v4286
    %5589 = vmatprep.mubr.bf16.mxu0 %v1608
    %5590 = vmatmul.mubr.bf16.gmra.mxu0 %v1607
    %v5591 = vpop.f32.mrf.mxu0
    %v5592 = vadd.f32 %v5551, %v5591
    %v5593 = vpop.f32.mrf.mxu0
    %v5594 = vpop.f32.mrf.mxu0
    %v5595 = vadd.f32 %v5554, %v5594
    %v5596 = vpop.f32.mrf.mxu0
    %5597 = vdwg.mxu0
    %5598 = vmatprep.subr.bf16.mxu0 0
    %5599 = vmatpush1.bf16.msra.mxu0 %v4301
    %5600 = vmatprep.subr.bf16.mxu0 0
    %5601 = vmatpush1.bf16.msra.mxu0 %v4300
    %5602 = vmatprep.subr.bf16.mxu0 0
    %5603 = vmatpush1.bf16.msra.mxu0 %v4299
    %5604 = vmatprep.subr.bf16.mxu0 0
    %5605 = vmatpush1.bf16.msra.mxu0 %v4298
    %5606 = vmatprep.subr.bf16.mxu0 0
    %5607 = vmatpush1.bf16.msra.mxu0 %v4297
    %5608 = vmatprep.subr.bf16.mxu0 0
    %5609 = vmatpush1.bf16.msra.mxu0 %v4296
    %5610 = vmatprep.subr.bf16.mxu0 0
    %5611 = vmatpush1.bf16.msra.mxu0 %v4295
    %5612 = vmatprep.subr.bf16.mxu0 0
    %5613 = vmatpush1.bf16.msra.mxu0 %v4294
    %5614 = vmatprep.subr.bf16.mxu0 0
    %5615 = vmatpush2.bf16.msra.mxu0 %v4309
    %5616 = vmatprep.subr.bf16.mxu0 0
    %5617 = vmatpush2.bf16.msra.mxu0 %v4308
    %5618 = vmatprep.subr.bf16.mxu0 0
    %5619 = vmatpush2.bf16.msra.mxu0 %v4307
    %5620 = vmatprep.subr.bf16.mxu0 0
    %5621 = vmatpush2.bf16.msra.mxu0 %v4306
    %5622 = vmatprep.subr.bf16.mxu0 0
    %5623 = vmatpush2.bf16.msra.mxu0 %v4305
    %5624 = vmatprep.subr.bf16.mxu0 0
    %5625 = vmatpush2.bf16.msra.mxu0 %v4304
    %5626 = vmatprep.subr.bf16.mxu0 0
    %5627 = vmatpush2.bf16.msra.mxu0 %v4303
    %5628 = vmatprep.subr.bf16.mxu0 0
    %5629 = vmatpush2.bf16.msra.mxu0 %v4302
    %5630 = vmatprep.mubr.bf16.mxu0 %v1610
    %5631 = vmatmul.mubr.bf16.gmra.mxu0 %v1609
    %v5632 = vpop.f32.mrf.mxu0
    %v5633 = vadd.f32 %v5592, %v5632
    %v5634 = vpop.f32.mrf.mxu0
    %v5635 = vpop.f32.mrf.mxu0
    %v5636 = vadd.f32 %v5595, %v5635
    %v5637 = vpop.f32.mrf.mxu0
    %5638 = vdwg.mxu0
    %5639 = vmatprep.subr.bf16.mxu0 0
    %5640 = vmatpush1.bf16.msra.mxu0 %v4317
    %5641 = vmatprep.subr.bf16.mxu0 0
    %5642 = vmatpush1.bf16.msra.mxu0 %v4316
    %5643 = vmatprep.subr.bf16.mxu0 0
    %5644 = vmatpush1.bf16.msra.mxu0 %v4315
    %5645 = vmatprep.subr.bf16.mxu0 0
    %5646 = vmatpush1.bf16.msra.mxu0 %v4314
    %5647 = vmatprep.subr.bf16.mxu0 0
    %5648 = vmatpush1.bf16.msra.mxu0 %v4313
    %5649 = vmatprep.subr.bf16.mxu0 0
    %5650 = vmatpush1.bf16.msra.mxu0 %v4312
    %5651 = vmatprep.subr.bf16.mxu0 0
    %5652 = vmatpush1.bf16.msra.mxu0 %v4311
    %5653 = vmatprep.subr.bf16.mxu0 0
    %5654 = vmatpush1.bf16.msra.mxu0 %v4310
    %5655 = vmatprep.subr.bf16.mxu0 0
    %5656 = vmatpush2.bf16.msra.mxu0 %v4325
    %5657 = vmatprep.subr.bf16.mxu0 0
    %5658 = vmatpush2.bf16.msra.mxu0 %v4324
    %5659 = vmatprep.subr.bf16.mxu0 0
    %5660 = vmatpush2.bf16.msra.mxu0 %v4323
    %5661 = vmatprep.subr.bf16.mxu0 0
    %5662 = vmatpush2.bf16.msra.mxu0 %v4322
    %5663 = vmatprep.subr.bf16.mxu0 0
    %5664 = vmatpush2.bf16.msra.mxu0 %v4321
    %5665 = vmatprep.subr.bf16.mxu0 0
    %5666 = vmatpush2.bf16.msra.mxu0 %v4320
    %5667 = vmatprep.subr.bf16.mxu0 0
    %5668 = vmatpush2.bf16.msra.mxu0 %v4319
    %5669 = vmatprep.subr.bf16.mxu0 0
    %5670 = vmatpush2.bf16.msra.mxu0 %v4318
    %5671 = vmatprep.mubr.bf16.mxu0 %v1612
    %5672 = vmatmul.mubr.bf16.gmra.mxu0 %v1611
    %v5673 = vpop.f32.mrf.mxu0
    %v5674 = vadd.f32 %v5633, %v5673
    %v5675 = vpop.f32.mrf.mxu0
    %v5676 = vpop.f32.mrf.mxu0
    %v5677 = vadd.f32 %v5636, %v5676
    %v5678 = vpop.f32.mrf.mxu0
    %5679 = vdwg.mxu0
    %5680 = vmatprep.subr.bf16.mxu0 0
    %5681 = vmatpush1.bf16.msra.mxu0 %v4333
    %5682 = vmatprep.subr.bf16.mxu0 0
    %5683 = vmatpush1.bf16.msra.mxu0 %v4332
    %5684 = vmatprep.subr.bf16.mxu0 0
    %5685 = vmatpush1.bf16.msra.mxu0 %v4331
    %5686 = vmatprep.subr.bf16.mxu0 0
    %5687 = vmatpush1.bf16.msra.mxu0 %v4330
    %5688 = vmatprep.subr.bf16.mxu0 0
    %5689 = vmatpush1.bf16.msra.mxu0 %v4329
    %5690 = vmatprep.subr.bf16.mxu0 0
    %5691 = vmatpush1.bf16.msra.mxu0 %v4328
    %5692 = vmatprep.subr.bf16.mxu0 0
    %5693 = vmatpush1.bf16.msra.mxu0 %v4327
    %5694 = vmatprep.subr.bf16.mxu0 0
    %5695 = vmatpush1.bf16.msra.mxu0 %v4326
    %5696 = vmatprep.subr.bf16.mxu0 0
    %5697 = vmatpush2.bf16.msra.mxu0 %v4341
    %5698 = vmatprep.subr.bf16.mxu0 0
    %5699 = vmatpush2.bf16.msra.mxu0 %v4340
    %5700 = vmatprep.subr.bf16.mxu0 0
    %5701 = vmatpush2.bf16.msra.mxu0 %v4339
    %5702 = vmatprep.subr.bf16.mxu0 0
    %5703 = vmatpush2.bf16.msra.mxu0 %v4338
    %5704 = vmatprep.subr.bf16.mxu0 0
    %5705 = vmatpush2.bf16.msra.mxu0 %v4337
    %5706 = vmatprep.subr.bf16.mxu0 0
    %5707 = vmatpush2.bf16.msra.mxu0 %v4336
    %5708 = vmatprep.subr.bf16.mxu0 0
    %5709 = vmatpush2.bf16.msra.mxu0 %v4335
    %5710 = vmatprep.subr.bf16.mxu0 0
    %5711 = vmatpush2.bf16.msra.mxu0 %v4334
    %5712 = vmatprep.mubr.bf16.mxu0 %v1614
    %5713 = vmatmul.mubr.bf16.gmra.mxu0 %v1613
    %v5714 = vpop.f32.mrf.mxu0
    %v5715 = vadd.f32 %v5674, %v5714
    %v5716 = vpop.f32.mrf.mxu0
    %v5717 = vpop.f32.mrf.mxu0
    %v5718 = vadd.f32 %v5677, %v5717
    %v5719 = vpop.f32.mrf.mxu0
    %5720 = vdwg.mxu0
    %5721 = vmatprep.subr.bf16.mxu0 0
    %5722 = vmatpush1.bf16.msra.mxu0 %v4349
    %5723 = vmatprep.subr.bf16.mxu0 0
    %5724 = vmatpush1.bf16.msra.mxu0 %v4348
    %5725 = vmatprep.subr.bf16.mxu0 0
    %5726 = vmatpush1.bf16.msra.mxu0 %v4347
    %5727 = vmatprep.subr.bf16.mxu0 0
    %5728 = vmatpush1.bf16.msra.mxu0 %v4346
    %5729 = vmatprep.subr.bf16.mxu0 0
    %5730 = vmatpush1.bf16.msra.mxu0 %v4345
    %5731 = vmatprep.subr.bf16.mxu0 0
    %5732 = vmatpush1.bf16.msra.mxu0 %v4344
    %5733 = vmatprep.subr.bf16.mxu0 0
    %5734 = vmatpush1.bf16.msra.mxu0 %v4343
    %5735 = vmatprep.subr.bf16.mxu0 0
    %5736 = vmatpush1.bf16.msra.mxu0 %v4342
    %5737 = vmatprep.subr.bf16.mxu0 0
    %5738 = vmatpush2.bf16.msra.mxu0 %v4357
    %5739 = vmatprep.subr.bf16.mxu0 0
    %5740 = vmatpush2.bf16.msra.mxu0 %v4356
    %5741 = vmatprep.subr.bf16.mxu0 0
    %5742 = vmatpush2.bf16.msra.mxu0 %v4355
    %5743 = vmatprep.subr.bf16.mxu0 0
    %5744 = vmatpush2.bf16.msra.mxu0 %v4354
    %5745 = vmatprep.subr.bf16.mxu0 0
    %5746 = vmatpush2.bf16.msra.mxu0 %v4353
    %5747 = vmatprep.subr.bf16.mxu0 0
    %5748 = vmatpush2.bf16.msra.mxu0 %v4352
    %5749 = vmatprep.subr.bf16.mxu0 0
    %5750 = vmatpush2.bf16.msra.mxu0 %v4351
    %5751 = vmatprep.subr.bf16.mxu0 0
    %5752 = vmatpush2.bf16.msra.mxu0 %v4350
    %5753 = vmatprep.mubr.bf16.mxu0 %v1616
    %5754 = vmatmul.mubr.bf16.gmra.mxu0 %v1615
    %v5755 = vpop.f32.mrf.mxu0
    %v5756 = vadd.f32 %v5715, %v5755
    %v5757 = vpop.f32.mrf.mxu0
    %v5758 = vpop.f32.mrf.mxu0
    %v5759 = vadd.f32 %v5718, %v5758
    %v5760 = vpop.f32.mrf.mxu0
    %5761 = vdwg.mxu0
    %5762 = vmatprep.subr.bf16.mxu0 0
    %5763 = vmatpush1.bf16.msra.mxu0 %v4365
    %5764 = vmatprep.subr.bf16.mxu0 0
    %5765 = vmatpush1.bf16.msra.mxu0 %v4364
    %5766 = vmatprep.subr.bf16.mxu0 0
    %5767 = vmatpush1.bf16.msra.mxu0 %v4363
    %5768 = vmatprep.subr.bf16.mxu0 0
    %5769 = vmatpush1.bf16.msra.mxu0 %v4362
    %5770 = vmatprep.subr.bf16.mxu0 0
    %5771 = vmatpush1.bf16.msra.mxu0 %v4361
    %5772 = vmatprep.subr.bf16.mxu0 0
    %5773 = vmatpush1.bf16.msra.mxu0 %v4360
    %5774 = vmatprep.subr.bf16.mxu0 0
    %5775 = vmatpush1.bf16.msra.mxu0 %v4359
    %5776 = vmatprep.subr.bf16.mxu0 0
    %5777 = vmatpush1.bf16.msra.mxu0 %v4358
    %5778 = vmatprep.subr.bf16.mxu0 0
    %5779 = vmatpush2.bf16.msra.mxu0 %v4373
    %5780 = vmatprep.subr.bf16.mxu0 0
    %5781 = vmatpush2.bf16.msra.mxu0 %v4372
    %5782 = vmatprep.subr.bf16.mxu0 0
    %5783 = vmatpush2.bf16.msra.mxu0 %v4371
    %5784 = vmatprep.subr.bf16.mxu0 0
    %5785 = vmatpush2.bf16.msra.mxu0 %v4370
    %5786 = vmatprep.subr.bf16.mxu0 0
    %5787 = vmatpush2.bf16.msra.mxu0 %v4369
    %5788 = vmatprep.subr.bf16.mxu0 0
    %5789 = vmatpush2.bf16.msra.mxu0 %v4368
    %5790 = vmatprep.subr.bf16.mxu0 0
    %5791 = vmatpush2.bf16.msra.mxu0 %v4367
    %5792 = vmatprep.subr.bf16.mxu0 0
    %5793 = vmatpush2.bf16.msra.mxu0 %v4366
    %5794 = vmatprep.mubr.bf16.mxu0 %v1618
    %5795 = vmatmul.mubr.bf16.gmra.mxu0 %v1617
    %v5796 = vpop.f32.mrf.mxu0
    %v5797 = vadd.f32 %v5756, %v5796
    %v5798 = vpop.f32.mrf.mxu0
    %v5799 = vpop.f32.mrf.mxu0
    %v5800 = vadd.f32 %v5759, %v5799
    %v5801 = vpop.f32.mrf.mxu0
    %5802 = vdwg.mxu0
    %5803 = vmatprep.subr.bf16.mxu0 0
    %5804 = vmatpush1.bf16.msra.mxu0 %v4381
    %5805 = vmatprep.subr.bf16.mxu0 0
    %5806 = vmatpush1.bf16.msra.mxu0 %v4380
    %5807 = vmatprep.subr.bf16.mxu0 0
    %5808 = vmatpush1.bf16.msra.mxu0 %v4379
    %5809 = vmatprep.subr.bf16.mxu0 0
    %5810 = vmatpush1.bf16.msra.mxu0 %v4378
    %5811 = vmatprep.subr.bf16.mxu0 0
    %5812 = vmatpush1.bf16.msra.mxu0 %v4377
    %5813 = vmatprep.subr.bf16.mxu0 0
    %5814 = vmatpush1.bf16.msra.mxu0 %v4376
    %5815 = vmatprep.subr.bf16.mxu0 0
    %5816 = vmatpush1.bf16.msra.mxu0 %v4375
    %5817 = vmatprep.subr.bf16.mxu0 0
    %5818 = vmatpush1.bf16.msra.mxu0 %v4374
    %5819 = vmatprep.subr.bf16.mxu0 0
    %5820 = vmatpush2.bf16.msra.mxu0 %v4389
    %5821 = vmatprep.subr.bf16.mxu0 0
    %5822 = vmatpush2.bf16.msra.mxu0 %v4388
    %5823 = vmatprep.subr.bf16.mxu0 0
    %5824 = vmatpush2.bf16.msra.mxu0 %v4387
    %5825 = vmatprep.subr.bf16.mxu0 0
    %5826 = vmatpush2.bf16.msra.mxu0 %v4386
    %5827 = vmatprep.subr.bf16.mxu0 0
    %5828 = vmatpush2.bf16.msra.mxu0 %v4385
    %5829 = vmatprep.subr.bf16.mxu0 0
    %5830 = vmatpush2.bf16.msra.mxu0 %v4384
    %5831 = vmatprep.subr.bf16.mxu0 0
    %5832 = vmatpush2.bf16.msra.mxu0 %v4383
    %5833 = vmatprep.subr.bf16.mxu0 0
    %5834 = vmatpush2.bf16.msra.mxu0 %v4382
    %5835 = vmatprep.mubr.bf16.mxu0 %v1620
    %5836 = vmatmul.mubr.bf16.gmra.mxu0 %v1619
    %v5837 = vpop.f32.mrf.mxu0
    %v5838 = vadd.f32 %v5797, %v5837
    %v5839 = vpop.f32.mrf.mxu0
    %v5840 = vpop.f32.mrf.mxu0
    %v5841 = vadd.f32 %v5800, %v5840
    %v5842 = vpop.f32.mrf.mxu0
    %5843 = vdwg.mxu0
    %5844 = vmatprep.subr.bf16.mxu0 0
    %5845 = vmatpush1.bf16.msra.mxu0 %v4397
    %5846 = vmatprep.subr.bf16.mxu0 0
    %5847 = vmatpush1.bf16.msra.mxu0 %v4396
    %5848 = vmatprep.subr.bf16.mxu0 0
    %5849 = vmatpush1.bf16.msra.mxu0 %v4395
    %5850 = vmatprep.subr.bf16.mxu0 0
    %5851 = vmatpush1.bf16.msra.mxu0 %v4394
    %5852 = vmatprep.subr.bf16.mxu0 0
    %5853 = vmatpush1.bf16.msra.mxu0 %v4393
    %5854 = vmatprep.subr.bf16.mxu0 0
    %5855 = vmatpush1.bf16.msra.mxu0 %v4392
    %5856 = vmatprep.subr.bf16.mxu0 0
    %5857 = vmatpush1.bf16.msra.mxu0 %v4391
    %5858 = vmatprep.subr.bf16.mxu0 0
    %5859 = vmatpush1.bf16.msra.mxu0 %v4390
    %5860 = vmatprep.subr.bf16.mxu0 0
    %5861 = vmatpush2.bf16.msra.mxu0 %v4405
    %5862 = vmatprep.subr.bf16.mxu0 0
    %5863 = vmatpush2.bf16.msra.mxu0 %v4404
    %5864 = vmatprep.subr.bf16.mxu0 0
    %5865 = vmatpush2.bf16.msra.mxu0 %v4403
    %5866 = vmatprep.subr.bf16.mxu0 0
    %5867 = vmatpush2.bf16.msra.mxu0 %v4402
    %5868 = vmatprep.subr.bf16.mxu0 0
    %5869 = vmatpush2.bf16.msra.mxu0 %v4401
    %5870 = vmatprep.subr.bf16.mxu0 0
    %5871 = vmatpush2.bf16.msra.mxu0 %v4400
    %5872 = vmatprep.subr.bf16.mxu0 0
    %5873 = vmatpush2.bf16.msra.mxu0 %v4399
    %5874 = vmatprep.subr.bf16.mxu0 0
    %5875 = vmatpush2.bf16.msra.mxu0 %v4398
    %5876 = vmatprep.mubr.bf16.mxu0 %v1622
    %5877 = vmatmul.mubr.bf16.gmra.mxu0 %v1621
    %v5878 = vpop.f32.mrf.mxu0
    %v5879 = vadd.f32 %v5838, %v5878
    %v5880 = vpop.f32.mrf.mxu0
    %v5881 = vpop.f32.mrf.mxu0
    %v5882 = vadd.f32 %v5841, %v5881
    %v5883 = vpop.f32.mrf.mxu0
    %5884 = vdwg.mxu0
    %5885 = vmatprep.subr.bf16.mxu0 0
    %5886 = vmatpush1.bf16.msra.mxu0 %v4413
    %5887 = vmatprep.subr.bf16.mxu0 0
    %5888 = vmatpush1.bf16.msra.mxu0 %v4412
    %5889 = vmatprep.subr.bf16.mxu0 0
    %5890 = vmatpush1.bf16.msra.mxu0 %v4411
    %5891 = vmatprep.subr.bf16.mxu0 0
    %5892 = vmatpush1.bf16.msra.mxu0 %v4410
    %5893 = vmatprep.subr.bf16.mxu0 0
    %5894 = vmatpush1.bf16.msra.mxu0 %v4409
    %5895 = vmatprep.subr.bf16.mxu0 0
    %5896 = vmatpush1.bf16.msra.mxu0 %v4408
    %5897 = vmatprep.subr.bf16.mxu0 0
    %5898 = vmatpush1.bf16.msra.mxu0 %v4407
    %5899 = vmatprep.subr.bf16.mxu0 0
    %5900 = vmatpush1.bf16.msra.mxu0 %v4406
    %5901 = vmatprep.subr.bf16.mxu0 0
    %5902 = vmatpush2.bf16.msra.mxu0 %v4421
    %5903 = vmatprep.subr.bf16.mxu0 0
    %5904 = vmatpush2.bf16.msra.mxu0 %v4420
    %5905 = vmatprep.subr.bf16.mxu0 0
    %5906 = vmatpush2.bf16.msra.mxu0 %v4419
    %5907 = vmatprep.subr.bf16.mxu0 0
    %5908 = vmatpush2.bf16.msra.mxu0 %v4418
    %5909 = vmatprep.subr.bf16.mxu0 0
    %5910 = vmatpush2.bf16.msra.mxu0 %v4417
    %5911 = vmatprep.subr.bf16.mxu0 0
    %5912 = vmatpush2.bf16.msra.mxu0 %v4416
    %5913 = vmatprep.subr.bf16.mxu0 0
    %5914 = vmatpush2.bf16.msra.mxu0 %v4415
    %5915 = vmatprep.subr.bf16.mxu0 0
    %5916 = vmatpush2.bf16.msra.mxu0 %v4414
    %5917 = vmatprep.mubr.bf16.mxu0 %v1624
    %5918 = vmatmul.mubr.bf16.gmra.mxu0 %v1623
    %v5919 = vpop.f32.mrf.mxu0
    %v5920 = vadd.f32 %v5879, %v5919
    %v5921 = vpop.f32.mrf.mxu0
    %v5922 = vpop.f32.mrf.mxu0
    %v5923 = vadd.f32 %v5882, %v5922
    %v5924 = vpop.f32.mrf.mxu0
    %5925 = vdwg.mxu0
    %5926 = vmatprep.subr.bf16.mxu0 0
    %5927 = vmatpush1.bf16.msra.mxu0 %v4429
    %5928 = vmatprep.subr.bf16.mxu0 0
    %5929 = vmatpush1.bf16.msra.mxu0 %v4428
    %5930 = vmatprep.subr.bf16.mxu0 0
    %5931 = vmatpush1.bf16.msra.mxu0 %v4427
    %5932 = vmatprep.subr.bf16.mxu0 0
    %5933 = vmatpush1.bf16.msra.mxu0 %v4426
    %5934 = vmatprep.subr.bf16.mxu0 0
    %5935 = vmatpush1.bf16.msra.mxu0 %v4425
    %5936 = vmatprep.subr.bf16.mxu0 0
    %5937 = vmatpush1.bf16.msra.mxu0 %v4424
    %5938 = vmatprep.subr.bf16.mxu0 0
    %5939 = vmatpush1.bf16.msra.mxu0 %v4423
    %5940 = vmatprep.subr.bf16.mxu0 0
    %5941 = vmatpush1.bf16.msra.mxu0 %v4422
    %5942 = vmatprep.subr.bf16.mxu0 0
    %5943 = vmatpush2.bf16.msra.mxu0 %v4437
    %5944 = vmatprep.subr.bf16.mxu0 0
    %5945 = vmatpush2.bf16.msra.mxu0 %v4436
    %5946 = vmatprep.subr.bf16.mxu0 0
    %5947 = vmatpush2.bf16.msra.mxu0 %v4435
    %5948 = vmatprep.subr.bf16.mxu0 0
    %5949 = vmatpush2.bf16.msra.mxu0 %v4434
    %5950 = vmatprep.subr.bf16.mxu0 0
    %5951 = vmatpush2.bf16.msra.mxu0 %v4433
    %5952 = vmatprep.subr.bf16.mxu0 0
    %5953 = vmatpush2.bf16.msra.mxu0 %v4432
    %5954 = vmatprep.subr.bf16.mxu0 0
    %5955 = vmatpush2.bf16.msra.mxu0 %v4431
    %5956 = vmatprep.subr.bf16.mxu0 0
    %5957 = vmatpush2.bf16.msra.mxu0 %v4430
    %5958 = vmatprep.mubr.bf16.mxu0 %v1626
    %5959 = vmatmul.mubr.bf16.gmra.mxu0 %v1625
    %v5960 = vpop.f32.mrf.mxu0
    %v5961 = vadd.f32 %v5920, %v5960
    %v5962 = vpop.f32.mrf.mxu0
    %v5963 = vpop.f32.mrf.mxu0
    %v5964 = vadd.f32 %v5923, %v5963
    %v5965 = vpop.f32.mrf.mxu0
    %5966 = vdwg.mxu0
    %5967 = vmatprep.subr.bf16.mxu0 0
    %5968 = vmatpush1.bf16.msra.mxu0 %v4445
    %5969 = vmatprep.subr.bf16.mxu0 0
    %5970 = vmatpush1.bf16.msra.mxu0 %v4444
    %5971 = vmatprep.subr.bf16.mxu0 0
    %5972 = vmatpush1.bf16.msra.mxu0 %v4443
    %5973 = vmatprep.subr.bf16.mxu0 0
    %5974 = vmatpush1.bf16.msra.mxu0 %v4442
    %5975 = vmatprep.subr.bf16.mxu0 0
    %5976 = vmatpush1.bf16.msra.mxu0 %v4441
    %5977 = vmatprep.subr.bf16.mxu0 0
    %5978 = vmatpush1.bf16.msra.mxu0 %v4440
    %5979 = vmatprep.subr.bf16.mxu0 0
    %5980 = vmatpush1.bf16.msra.mxu0 %v4439
    %5981 = vmatprep.subr.bf16.mxu0 0
    %5982 = vmatpush1.bf16.msra.mxu0 %v4438
    %5983 = vmatprep.subr.bf16.mxu0 0
    %5984 = vmatpush2.bf16.msra.mxu0 %v4453
    %5985 = vmatprep.subr.bf16.mxu0 0
    %5986 = vmatpush2.bf16.msra.mxu0 %v4452
    %5987 = vmatprep.subr.bf16.mxu0 0
    %5988 = vmatpush2.bf16.msra.mxu0 %v4451
    %5989 = vmatprep.subr.bf16.mxu0 0
    %5990 = vmatpush2.bf16.msra.mxu0 %v4450
    %5991 = vmatprep.subr.bf16.mxu0 0
    %5992 = vmatpush2.bf16.msra.mxu0 %v4449
    %5993 = vmatprep.subr.bf16.mxu0 0
    %5994 = vmatpush2.bf16.msra.mxu0 %v4448
    %5995 = vmatprep.subr.bf16.mxu0 0
    %5996 = vmatpush2.bf16.msra.mxu0 %v4447
    %5997 = vmatprep.subr.bf16.mxu0 0
    %5998 = vmatpush2.bf16.msra.mxu0 %v4446
    %5999 = vmatprep.mubr.bf16.mxu0 %v1628
    %6000 = vmatmul.mubr.bf16.gmra.mxu0 %v1627
    %v6001 = vpop.f32.mrf.mxu0
    %v6002 = vadd.f32 %v5961, %v6001
    %v6003 = vpop.f32.mrf.mxu0
    %v6004 = vpop.f32.mrf.mxu0
    %v6005 = vadd.f32 %v5964, %v6004
    %v6006 = vpop.f32.mrf.mxu0
    %6007 = vdwg.mxu0
    %6008 = vmatprep.subr.bf16.mxu0 0
    %6009 = vmatpush1.bf16.msra.mxu0 %v4461
    %6010 = vmatprep.subr.bf16.mxu0 0
    %6011 = vmatpush1.bf16.msra.mxu0 %v4460
    %6012 = vmatprep.subr.bf16.mxu0 0
    %6013 = vmatpush1.bf16.msra.mxu0 %v4459
    %6014 = vmatprep.subr.bf16.mxu0 0
    %6015 = vmatpush1.bf16.msra.mxu0 %v4458
    %6016 = vmatprep.subr.bf16.mxu0 0
    %6017 = vmatpush1.bf16.msra.mxu0 %v4457
    %6018 = vmatprep.subr.bf16.mxu0 0
    %6019 = vmatpush1.bf16.msra.mxu0 %v4456
    %6020 = vmatprep.subr.bf16.mxu0 0
    %6021 = vmatpush1.bf16.msra.mxu0 %v4455
    %6022 = vmatprep.subr.bf16.mxu0 0
    %6023 = vmatpush1.bf16.msra.mxu0 %v4454
    %6024 = vmatprep.subr.bf16.mxu0 0
    %6025 = vmatpush2.bf16.msra.mxu0 %v4469
    %6026 = vmatprep.subr.bf16.mxu0 0
    %6027 = vmatpush2.bf16.msra.mxu0 %v4468
    %6028 = vmatprep.subr.bf16.mxu0 0
    %6029 = vmatpush2.bf16.msra.mxu0 %v4467
    %6030 = vmatprep.subr.bf16.mxu0 0
    %6031 = vmatpush2.bf16.msra.mxu0 %v4466
    %6032 = vmatprep.subr.bf16.mxu0 0
    %6033 = vmatpush2.bf16.msra.mxu0 %v4465
    %6034 = vmatprep.subr.bf16.mxu0 0
    %6035 = vmatpush2.bf16.msra.mxu0 %v4464
    %6036 = vmatprep.subr.bf16.mxu0 0
    %6037 = vmatpush2.bf16.msra.mxu0 %v4463
    %6038 = vmatprep.subr.bf16.mxu0 0
    %6039 = vmatpush2.bf16.msra.mxu0 %v4462
    %6040 = vmatprep.mubr.bf16.mxu0 %v1630
    %6041 = vmatmul.mubr.bf16.gmra.mxu0 %v1629
    %v6042 = vpop.f32.mrf.mxu0
    %v6043 = vadd.f32 %v6002, %v6042
    %v6044 = vpop.f32.mrf.mxu0
    %v6045 = vpop.f32.mrf.mxu0
    %v6046 = vadd.f32 %v6005, %v6045
    %v6047 = vpop.f32.mrf.mxu0
    %6048 = vdwg.mxu0
    %6049 = vmatprep.subr.bf16.mxu0 0
    %6050 = vmatpush1.bf16.msra.mxu0 %v4477
    %6051 = vmatprep.subr.bf16.mxu0 0
    %6052 = vmatpush1.bf16.msra.mxu0 %v4476
    %6053 = vmatprep.subr.bf16.mxu0 0
    %6054 = vmatpush1.bf16.msra.mxu0 %v4475
    %6055 = vmatprep.subr.bf16.mxu0 0
    %6056 = vmatpush1.bf16.msra.mxu0 %v4474
    %6057 = vmatprep.subr.bf16.mxu0 0
    %6058 = vmatpush1.bf16.msra.mxu0 %v4473
    %6059 = vmatprep.subr.bf16.mxu0 0
    %6060 = vmatpush1.bf16.msra.mxu0 %v4472
    %6061 = vmatprep.subr.bf16.mxu0 0
    %6062 = vmatpush1.bf16.msra.mxu0 %v4471
    %6063 = vmatprep.subr.bf16.mxu0 0
    %6064 = vmatpush1.bf16.msra.mxu0 %v4470
    %6065 = vmatprep.subr.bf16.mxu0 0
    %6066 = vmatpush2.bf16.msra.mxu0 %v4485
    %6067 = vmatprep.subr.bf16.mxu0 0
    %6068 = vmatpush2.bf16.msra.mxu0 %v4484
    %6069 = vmatprep.subr.bf16.mxu0 0
    %6070 = vmatpush2.bf16.msra.mxu0 %v4483
    %6071 = vmatprep.subr.bf16.mxu0 0
    %6072 = vmatpush2.bf16.msra.mxu0 %v4482
    %6073 = vmatprep.subr.bf16.mxu0 0
    %6074 = vmatpush2.bf16.msra.mxu0 %v4481
    %6075 = vmatprep.subr.bf16.mxu0 0
    %6076 = vmatpush2.bf16.msra.mxu0 %v4480
    %6077 = vmatprep.subr.bf16.mxu0 0
    %6078 = vmatpush2.bf16.msra.mxu0 %v4479
    %6079 = vmatprep.subr.bf16.mxu0 0
    %6080 = vmatpush2.bf16.msra.mxu0 %v4478
    %6081 = vmatprep.mubr.bf16.mxu0 %v1632
    %6082 = vmatmul.mubr.bf16.gmra.mxu0 %v1631
    %v6083 = vpop.f32.mrf.mxu0
    %v6084 = vadd.f32 %v6043, %v6083
    %v6085 = vpop.f32.mrf.mxu0
    %v6086 = vpop.f32.mrf.mxu0
    %v6087 = vadd.f32 %v6046, %v6086
    %v6088 = vpop.f32.mrf.mxu0
    %6089 = vdwg.mxu0
    %6090 = vmatprep.subr.bf16.mxu0 0
    %6091 = vmatpush1.bf16.msra.mxu0 %v4493
    %6092 = vmatprep.subr.bf16.mxu0 0
    %6093 = vmatpush1.bf16.msra.mxu0 %v4492
    %6094 = vmatprep.subr.bf16.mxu0 0
    %6095 = vmatpush1.bf16.msra.mxu0 %v4491
    %6096 = vmatprep.subr.bf16.mxu0 0
    %6097 = vmatpush1.bf16.msra.mxu0 %v4490
    %6098 = vmatprep.subr.bf16.mxu0 0
    %6099 = vmatpush1.bf16.msra.mxu0 %v4489
    %6100 = vmatprep.subr.bf16.mxu0 0
    %6101 = vmatpush1.bf16.msra.mxu0 %v4488
    %6102 = vmatprep.subr.bf16.mxu0 0
    %6103 = vmatpush1.bf16.msra.mxu0 %v4487
    %6104 = vmatprep.subr.bf16.mxu0 0
    %6105 = vmatpush1.bf16.msra.mxu0 %v4486
    %6106 = vmatprep.subr.bf16.mxu0 0
    %6107 = vmatpush2.bf16.msra.mxu0 %v4501
    %6108 = vmatprep.subr.bf16.mxu0 0
    %6109 = vmatpush2.bf16.msra.mxu0 %v4500
    %6110 = vmatprep.subr.bf16.mxu0 0
    %6111 = vmatpush2.bf16.msra.mxu0 %v4499
    %6112 = vmatprep.subr.bf16.mxu0 0
    %6113 = vmatpush2.bf16.msra.mxu0 %v4498
    %6114 = vmatprep.subr.bf16.mxu0 0
    %6115 = vmatpush2.bf16.msra.mxu0 %v4497
    %6116 = vmatprep.subr.bf16.mxu0 0
    %6117 = vmatpush2.bf16.msra.mxu0 %v4496
    %6118 = vmatprep.subr.bf16.mxu0 0
    %6119 = vmatpush2.bf16.msra.mxu0 %v4495
    %6120 = vmatprep.subr.bf16.mxu0 0
    %6121 = vmatpush2.bf16.msra.mxu0 %v4494
    %6122 = vmatprep.mubr.bf16.mxu0 %v1634
    %6123 = vmatmul.mubr.bf16.gmra.mxu0 %v1633
    %v6124 = vpop.f32.mrf.mxu0
    %v6125 = vadd.f32 %v6084, %v6124
    %v6126 = vpop.f32.mrf.mxu0
    %v6127 = vpop.f32.mrf.mxu0
    %v6128 = vadd.f32 %v6087, %v6127
    %v6129 = vpop.f32.mrf.mxu0
    %6130 = vdwg.mxu0
    %6131 = vmatprep.subr.bf16.mxu0 0
    %6132 = vmatpush1.bf16.msra.mxu0 %v4509
    %6133 = vmatprep.subr.bf16.mxu0 0
    %6134 = vmatpush1.bf16.msra.mxu0 %v4508
    %6135 = vmatprep.subr.bf16.mxu0 0
    %6136 = vmatpush1.bf16.msra.mxu0 %v4507
    %6137 = vmatprep.subr.bf16.mxu0 0
    %6138 = vmatpush1.bf16.msra.mxu0 %v4506
    %6139 = vmatprep.subr.bf16.mxu0 0
    %6140 = vmatpush1.bf16.msra.mxu0 %v4505
    %6141 = vmatprep.subr.bf16.mxu0 0
    %6142 = vmatpush1.bf16.msra.mxu0 %v4504
    %6143 = vmatprep.subr.bf16.mxu0 0
    %6144 = vmatpush1.bf16.msra.mxu0 %v4503
    %6145 = vmatprep.subr.bf16.mxu0 0
    %6146 = vmatpush1.bf16.msra.mxu0 %v4502
    %6147 = vmatprep.subr.bf16.mxu0 0
    %6148 = vmatpush2.bf16.msra.mxu0 %v4517
    %6149 = vmatprep.subr.bf16.mxu0 0
    %6150 = vmatpush2.bf16.msra.mxu0 %v4516
    %6151 = vmatprep.subr.bf16.mxu0 0
    %6152 = vmatpush2.bf16.msra.mxu0 %v4515
    %6153 = vmatprep.subr.bf16.mxu0 0
    %6154 = vmatpush2.bf16.msra.mxu0 %v4514
    %6155 = vmatprep.subr.bf16.mxu0 0
    %6156 = vmatpush2.bf16.msra.mxu0 %v4513
    %6157 = vmatprep.subr.bf16.mxu0 0
    %6158 = vmatpush2.bf16.msra.mxu0 %v4512
    %6159 = vmatprep.subr.bf16.mxu0 0
    %6160 = vmatpush2.bf16.msra.mxu0 %v4511
    %6161 = vmatprep.subr.bf16.mxu0 0
    %6162 = vmatpush2.bf16.msra.mxu0 %v4510
    %6163 = vmatprep.mubr.bf16.mxu0 %v1636
    %6164 = vmatmul.mubr.bf16.gmra.mxu0 %v1635
    %v6165 = vpop.f32.mrf.mxu0
    %v6166 = vadd.f32 %v6125, %v6165
    %v6167 = vpop.f32.mrf.mxu0
    %v6168 = vpop.f32.mrf.mxu0
    %v6169 = vadd.f32 %v6128, %v6168
    %v6170 = vpop.f32.mrf.mxu0
    %6171 = vdwg.mxu0
    %6172 = vmatprep.subr.bf16.mxu0 0
    %6173 = vmatpush1.bf16.msra.mxu0 %v4525
    %6174 = vmatprep.subr.bf16.mxu0 0
    %6175 = vmatpush1.bf16.msra.mxu0 %v4524
    %6176 = vmatprep.subr.bf16.mxu0 0
    %6177 = vmatpush1.bf16.msra.mxu0 %v4523
    %6178 = vmatprep.subr.bf16.mxu0 0
    %6179 = vmatpush1.bf16.msra.mxu0 %v4522
    %6180 = vmatprep.subr.bf16.mxu0 0
    %6181 = vmatpush1.bf16.msra.mxu0 %v4521
    %6182 = vmatprep.subr.bf16.mxu0 0
    %6183 = vmatpush1.bf16.msra.mxu0 %v4520
    %6184 = vmatprep.subr.bf16.mxu0 0
    %6185 = vmatpush1.bf16.msra.mxu0 %v4519
    %6186 = vmatprep.subr.bf16.mxu0 0
    %6187 = vmatpush1.bf16.msra.mxu0 %v4518
    %6188 = vmatprep.subr.bf16.mxu0 0
    %6189 = vmatpush2.bf16.msra.mxu0 %v4533
    %6190 = vmatprep.subr.bf16.mxu0 0
    %6191 = vmatpush2.bf16.msra.mxu0 %v4532
    %6192 = vmatprep.subr.bf16.mxu0 0
    %6193 = vmatpush2.bf16.msra.mxu0 %v4531
    %6194 = vmatprep.subr.bf16.mxu0 0
    %6195 = vmatpush2.bf16.msra.mxu0 %v4530
    %6196 = vmatprep.subr.bf16.mxu0 0
    %6197 = vmatpush2.bf16.msra.mxu0 %v4529
    %6198 = vmatprep.subr.bf16.mxu0 0
    %6199 = vmatpush2.bf16.msra.mxu0 %v4528
    %6200 = vmatprep.subr.bf16.mxu0 0
    %6201 = vmatpush2.bf16.msra.mxu0 %v4527
    %6202 = vmatprep.subr.bf16.mxu0 0
    %6203 = vmatpush2.bf16.msra.mxu0 %v4526
    %6204 = vmatprep.mubr.bf16.mxu0 %v1638
    %6205 = vmatmul.mubr.bf16.gmra.mxu0 %v1637
    %v6206 = vpop.f32.mrf.mxu0
    %v6207 = vadd.f32 %v6166, %v6206
    %v6208 = vpop.f32.mrf.mxu0
    %v6209 = vpop.f32.mrf.mxu0
    %v6210 = vadd.f32 %v6169, %v6209
    %v6211 = vpop.f32.mrf.mxu0
    %6212 = vdwg.mxu0
    %6213 = vmatprep.subr.bf16.mxu0 0
    %6214 = vmatpush1.bf16.msra.mxu0 %v4541
    %6215 = vmatprep.subr.bf16.mxu0 0
    %6216 = vmatpush1.bf16.msra.mxu0 %v4540
    %6217 = vmatprep.subr.bf16.mxu0 0
    %6218 = vmatpush1.bf16.msra.mxu0 %v4539
    %6219 = vmatprep.subr.bf16.mxu0 0
    %6220 = vmatpush1.bf16.msra.mxu0 %v4538
    %6221 = vmatprep.subr.bf16.mxu0 0
    %6222 = vmatpush1.bf16.msra.mxu0 %v4537
    %6223 = vmatprep.subr.bf16.mxu0 0
    %6224 = vmatpush1.bf16.msra.mxu0 %v4536
    %6225 = vmatprep.subr.bf16.mxu0 0
    %6226 = vmatpush1.bf16.msra.mxu0 %v4535
    %6227 = vmatprep.subr.bf16.mxu0 0
    %6228 = vmatpush1.bf16.msra.mxu0 %v4534
    %6229 = vmatprep.subr.bf16.mxu0 0
    %6230 = vmatpush2.bf16.msra.mxu0 %v4549
    %6231 = vmatprep.subr.bf16.mxu0 0
    %6232 = vmatpush2.bf16.msra.mxu0 %v4548
    %6233 = vmatprep.subr.bf16.mxu0 0
    %6234 = vmatpush2.bf16.msra.mxu0 %v4547
    %6235 = vmatprep.subr.bf16.mxu0 0
    %6236 = vmatpush2.bf16.msra.mxu0 %v4546
    %6237 = vmatprep.subr.bf16.mxu0 0
    %6238 = vmatpush2.bf16.msra.mxu0 %v4545
    %6239 = vmatprep.subr.bf16.mxu0 0
    %6240 = vmatpush2.bf16.msra.mxu0 %v4544
    %6241 = vmatprep.subr.bf16.mxu0 0
    %6242 = vmatpush2.bf16.msra.mxu0 %v4543
    %6243 = vmatprep.subr.bf16.mxu0 0
    %6244 = vmatpush2.bf16.msra.mxu0 %v4542
    %6245 = vmatprep.mubr.bf16.mxu0 %v1640
    %6246 = vmatmul.mubr.bf16.gmra.mxu0 %v1639
    %v6247 = vpop.f32.mrf.mxu0
    %v6248 = vadd.f32 %v6207, %v6247
    %v6249 = vpop.f32.mrf.mxu0
    %v6250 = vpop.f32.mrf.mxu0
    %v6251 = vadd.f32 %v6210, %v6250
    %v6252 = vpop.f32.mrf.mxu0
    %6253 = vdwg.mxu0
    %6254 = vmatprep.subr.bf16.mxu0 0
    %6255 = vmatpush1.bf16.msra.mxu0 %v4557
    %6256 = vmatprep.subr.bf16.mxu0 0
    %6257 = vmatpush1.bf16.msra.mxu0 %v4556
    %6258 = vmatprep.subr.bf16.mxu0 0
    %6259 = vmatpush1.bf16.msra.mxu0 %v4555
    %6260 = vmatprep.subr.bf16.mxu0 0
    %6261 = vmatpush1.bf16.msra.mxu0 %v4554
    %6262 = vmatprep.subr.bf16.mxu0 0
    %6263 = vmatpush1.bf16.msra.mxu0 %v4553
    %6264 = vmatprep.subr.bf16.mxu0 0
    %6265 = vmatpush1.bf16.msra.mxu0 %v4552
    %6266 = vmatprep.subr.bf16.mxu0 0
    %6267 = vmatpush1.bf16.msra.mxu0 %v4551
    %6268 = vmatprep.subr.bf16.mxu0 0
    %6269 = vmatpush1.bf16.msra.mxu0 %v4550
    %6270 = vmatprep.subr.bf16.mxu0 0
    %6271 = vmatpush2.bf16.msra.mxu0 %v4565
    %6272 = vmatprep.subr.bf16.mxu0 0
    %6273 = vmatpush2.bf16.msra.mxu0 %v4564
    %6274 = vmatprep.subr.bf16.mxu0 0
    %6275 = vmatpush2.bf16.msra.mxu0 %v4563
    %6276 = vmatprep.subr.bf16.mxu0 0
    %6277 = vmatpush2.bf16.msra.mxu0 %v4562
    %6278 = vmatprep.subr.bf16.mxu0 0
    %6279 = vmatpush2.bf16.msra.mxu0 %v4561
    %6280 = vmatprep.subr.bf16.mxu0 0
    %6281 = vmatpush2.bf16.msra.mxu0 %v4560
    %6282 = vmatprep.subr.bf16.mxu0 0
    %6283 = vmatpush2.bf16.msra.mxu0 %v4559
    %6284 = vmatprep.subr.bf16.mxu0 0
    %6285 = vmatpush2.bf16.msra.mxu0 %v4558
    %6286 = vmatprep.mubr.bf16.mxu0 %v1642
    %6287 = vmatmul.mubr.bf16.gmra.mxu0 %v1641
    %v6288 = vpop.f32.mrf.mxu0
    %v6289 = vadd.f32 %v6248, %v6288
    %v6290 = vpop.f32.mrf.mxu0
    %v6291 = vpop.f32.mrf.mxu0
    %v6292 = vadd.f32 %v6251, %v6291
    %v6293 = vpop.f32.mrf.mxu0
    %6294 = vdwg.mxu0
    %6295 = vmatprep.subr.bf16.mxu0 0
    %6296 = vmatpush1.bf16.msra.mxu0 %v4573
    %6297 = vmatprep.subr.bf16.mxu0 0
    %6298 = vmatpush1.bf16.msra.mxu0 %v4572
    %6299 = vmatprep.subr.bf16.mxu0 0
    %6300 = vmatpush1.bf16.msra.mxu0 %v4571
    %6301 = vmatprep.subr.bf16.mxu0 0
    %6302 = vmatpush1.bf16.msra.mxu0 %v4570
    %6303 = vmatprep.subr.bf16.mxu0 0
    %6304 = vmatpush1.bf16.msra.mxu0 %v4569
    %6305 = vmatprep.subr.bf16.mxu0 0
    %6306 = vmatpush1.bf16.msra.mxu0 %v4568
    %6307 = vmatprep.subr.bf16.mxu0 0
    %6308 = vmatpush1.bf16.msra.mxu0 %v4567
    %6309 = vmatprep.subr.bf16.mxu0 0
    %6310 = vmatpush1.bf16.msra.mxu0 %v4566
    %6311 = vmatprep.subr.bf16.mxu0 0
    %6312 = vmatpush2.bf16.msra.mxu0 %v4581
    %6313 = vmatprep.subr.bf16.mxu0 0
    %6314 = vmatpush2.bf16.msra.mxu0 %v4580
    %6315 = vmatprep.subr.bf16.mxu0 0
    %6316 = vmatpush2.bf16.msra.mxu0 %v4579
    %6317 = vmatprep.subr.bf16.mxu0 0
    %6318 = vmatpush2.bf16.msra.mxu0 %v4578
    %6319 = vmatprep.subr.bf16.mxu0 0
    %6320 = vmatpush2.bf16.msra.mxu0 %v4577
    %6321 = vmatprep.subr.bf16.mxu0 0
    %6322 = vmatpush2.bf16.msra.mxu0 %v4576
    %6323 = vmatprep.subr.bf16.mxu0 0
    %6324 = vmatpush2.bf16.msra.mxu0 %v4575
    %6325 = vmatprep.subr.bf16.mxu0 0
    %6326 = vmatpush2.bf16.msra.mxu0 %v4574
    %6327 = vmatprep.mubr.bf16.mxu0 %v1644
    %6328 = vmatmul.mubr.bf16.gmra.mxu0 %v1643
    %v6329 = vpop.f32.mrf.mxu0
    %v6330 = vadd.f32 %v6289, %v6329
    %v6331 = vpop.f32.mrf.mxu0
    %v6332 = vpop.f32.mrf.mxu0
    %v6333 = vadd.f32 %v6292, %v6332
    %v6334 = vpop.f32.mrf.mxu0
    %6335 = vdwg.mxu0
    %6336 = vmatprep.subr.bf16.mxu0 0
    %6337 = vmatpush1.bf16.msra.mxu0 %v4589
    %6338 = vmatprep.subr.bf16.mxu0 0
    %6339 = vmatpush1.bf16.msra.mxu0 %v4588
    %6340 = vmatprep.subr.bf16.mxu0 0
    %6341 = vmatpush1.bf16.msra.mxu0 %v4587
    %6342 = vmatprep.subr.bf16.mxu0 0
    %6343 = vmatpush1.bf16.msra.mxu0 %v4586
    %6344 = vmatprep.subr.bf16.mxu0 0
    %6345 = vmatpush1.bf16.msra.mxu0 %v4585
    %6346 = vmatprep.subr.bf16.mxu0 0
    %6347 = vmatpush1.bf16.msra.mxu0 %v4584
    %6348 = vmatprep.subr.bf16.mxu0 0
    %6349 = vmatpush1.bf16.msra.mxu0 %v4583
    %6350 = vmatprep.subr.bf16.mxu0 0
    %6351 = vmatpush1.bf16.msra.mxu0 %v4582
    %6352 = vmatprep.subr.bf16.mxu0 0
    %6353 = vmatpush2.bf16.msra.mxu0 %v4597
    %6354 = vmatprep.subr.bf16.mxu0 0
    %6355 = vmatpush2.bf16.msra.mxu0 %v4596
    %6356 = vmatprep.subr.bf16.mxu0 0
    %6357 = vmatpush2.bf16.msra.mxu0 %v4595
    %6358 = vmatprep.subr.bf16.mxu0 0
    %6359 = vmatpush2.bf16.msra.mxu0 %v4594
    %6360 = vmatprep.subr.bf16.mxu0 0
    %6361 = vmatpush2.bf16.msra.mxu0 %v4593
    %6362 = vmatprep.subr.bf16.mxu0 0
    %6363 = vmatpush2.bf16.msra.mxu0 %v4592
    %6364 = vmatprep.subr.bf16.mxu0 0
    %6365 = vmatpush2.bf16.msra.mxu0 %v4591
    %6366 = vmatprep.subr.bf16.mxu0 0
    %6367 = vmatpush2.bf16.msra.mxu0 %v4590
    %6368 = vmatprep.mubr.bf16.mxu0 %v1646
    %6369 = vmatmul.mubr.bf16.gmra.mxu0 %v1645
    %v6370 = vpop.f32.mrf.mxu0
    %v6371 = vadd.f32 %v6330, %v6370
    %v6372 = vpop.f32.mrf.mxu0
    %v6373 = vpop.f32.mrf.mxu0
    %v6374 = vadd.f32 %v6333, %v6373
    %v6375 = vpop.f32.mrf.mxu0
    %6376 = vdwg.mxu0
    %6377 = vmatprep.subr.bf16.mxu0 0
    %6378 = vmatpush1.bf16.msra.mxu0 %v4605
    %6379 = vmatprep.subr.bf16.mxu0 0
    %6380 = vmatpush1.bf16.msra.mxu0 %v4604
    %6381 = vmatprep.subr.bf16.mxu0 0
    %6382 = vmatpush1.bf16.msra.mxu0 %v4603
    %6383 = vmatprep.subr.bf16.mxu0 0
    %6384 = vmatpush1.bf16.msra.mxu0 %v4602
    %6385 = vmatprep.subr.bf16.mxu0 0
    %6386 = vmatpush1.bf16.msra.mxu0 %v4601
    %6387 = vmatprep.subr.bf16.mxu0 0
    %6388 = vmatpush1.bf16.msra.mxu0 %v4600
    %6389 = vmatprep.subr.bf16.mxu0 0
    %6390 = vmatpush1.bf16.msra.mxu0 %v4599
    %6391 = vmatprep.subr.bf16.mxu0 0
    %6392 = vmatpush1.bf16.msra.mxu0 %v4598
    %6393 = vmatprep.subr.bf16.mxu0 0
    %6394 = vmatpush2.bf16.msra.mxu0 %v4613
    %6395 = vmatprep.subr.bf16.mxu0 0
    %6396 = vmatpush2.bf16.msra.mxu0 %v4612
    %6397 = vmatprep.subr.bf16.mxu0 0
    %6398 = vmatpush2.bf16.msra.mxu0 %v4611
    %6399 = vmatprep.subr.bf16.mxu0 0
    %6400 = vmatpush2.bf16.msra.mxu0 %v4610
    %6401 = vmatprep.subr.bf16.mxu0 0
    %6402 = vmatpush2.bf16.msra.mxu0 %v4609
    %6403 = vmatprep.subr.bf16.mxu0 0
    %6404 = vmatpush2.bf16.msra.mxu0 %v4608
    %6405 = vmatprep.subr.bf16.mxu0 0
    %6406 = vmatpush2.bf16.msra.mxu0 %v4607
    %6407 = vmatprep.subr.bf16.mxu0 0
    %6408 = vmatpush2.bf16.msra.mxu0 %v4606
    %6409 = vmatprep.mubr.bf16.mxu0 %v1648
    %6410 = vmatmul.mubr.bf16.gmra.mxu0 %v1647
    %v6411 = vpop.f32.mrf.mxu0
    %v6412 = vadd.f32 %v6371, %v6411
    %v6413 = vpop.f32.mrf.mxu0
    %v6414 = vpop.f32.mrf.mxu0
    %v6415 = vadd.f32 %v6374, %v6414
    %v6416 = vpop.f32.mrf.mxu0
    %6417 = vdwg.mxu0
    %6418 = vmatprep.subr.bf16.mxu0 0
    %6419 = vmatpush1.bf16.msra.mxu0 %v4621
    %6420 = vmatprep.subr.bf16.mxu0 0
    %6421 = vmatpush1.bf16.msra.mxu0 %v4620
    %6422 = vmatprep.subr.bf16.mxu0 0
    %6423 = vmatpush1.bf16.msra.mxu0 %v4619
    %6424 = vmatprep.subr.bf16.mxu0 0
    %6425 = vmatpush1.bf16.msra.mxu0 %v4618
    %6426 = vmatprep.subr.bf16.mxu0 0
    %6427 = vmatpush1.bf16.msra.mxu0 %v4617
    %6428 = vmatprep.subr.bf16.mxu0 0
    %6429 = vmatpush1.bf16.msra.mxu0 %v4616
    %6430 = vmatprep.subr.bf16.mxu0 0
    %6431 = vmatpush1.bf16.msra.mxu0 %v4615
    %6432 = vmatprep.subr.bf16.mxu0 0
    %6433 = vmatpush1.bf16.msra.mxu0 %v4614
    %6434 = vmatprep.subr.bf16.mxu0 0
    %6435 = vmatpush2.bf16.msra.mxu0 %v4629
    %6436 = vmatprep.subr.bf16.mxu0 0
    %6437 = vmatpush2.bf16.msra.mxu0 %v4628
    %6438 = vmatprep.subr.bf16.mxu0 0
    %6439 = vmatpush2.bf16.msra.mxu0 %v4627
    %6440 = vmatprep.subr.bf16.mxu0 0
    %6441 = vmatpush2.bf16.msra.mxu0 %v4626
    %6442 = vmatprep.subr.bf16.mxu0 0
    %6443 = vmatpush2.bf16.msra.mxu0 %v4625
    %6444 = vmatprep.subr.bf16.mxu0 0
    %6445 = vmatpush2.bf16.msra.mxu0 %v4624
    %6446 = vmatprep.subr.bf16.mxu0 0
    %6447 = vmatpush2.bf16.msra.mxu0 %v4623
    %6448 = vmatprep.subr.bf16.mxu0 0
    %6449 = vmatpush2.bf16.msra.mxu0 %v4622
    %6450 = vmatprep.mubr.bf16.mxu0 %v1650
    %6451 = vmatmul.mubr.bf16.gmra.mxu0 %v1649
    %v6452 = vpop.f32.mrf.mxu0
    %v6453 = vadd.f32 %v6412, %v6452
    %v6454 = vpop.f32.mrf.mxu0
    %v6455 = vpop.f32.mrf.mxu0
    %v6456 = vadd.f32 %v6415, %v6455
    %v6457 = vpop.f32.mrf.mxu0
    %6458 = vdwg.mxu0
    %6459 = vmatprep.subr.bf16.mxu0 0
    %6460 = vmatpush1.bf16.msra.mxu0 %v4637
    %6461 = vmatprep.subr.bf16.mxu0 0
    %6462 = vmatpush1.bf16.msra.mxu0 %v4636
    %6463 = vmatprep.subr.bf16.mxu0 0
    %6464 = vmatpush1.bf16.msra.mxu0 %v4635
    %6465 = vmatprep.subr.bf16.mxu0 0
    %6466 = vmatpush1.bf16.msra.mxu0 %v4634
    %6467 = vmatprep.subr.bf16.mxu0 0
    %6468 = vmatpush1.bf16.msra.mxu0 %v4633
    %6469 = vmatprep.subr.bf16.mxu0 0
    %6470 = vmatpush1.bf16.msra.mxu0 %v4632
    %6471 = vmatprep.subr.bf16.mxu0 0
    %6472 = vmatpush1.bf16.msra.mxu0 %v4631
    %6473 = vmatprep.subr.bf16.mxu0 0
    %6474 = vmatpush1.bf16.msra.mxu0 %v4630
    %6475 = vmatprep.subr.bf16.mxu0 0
    %6476 = vmatpush2.bf16.msra.mxu0 %v4645
    %6477 = vmatprep.subr.bf16.mxu0 0
    %6478 = vmatpush2.bf16.msra.mxu0 %v4644
    %6479 = vmatprep.subr.bf16.mxu0 0
    %6480 = vmatpush2.bf16.msra.mxu0 %v4643
    %6481 = vmatprep.subr.bf16.mxu0 0
    %6482 = vmatpush2.bf16.msra.mxu0 %v4642
    %6483 = vmatprep.subr.bf16.mxu0 0
    %6484 = vmatpush2.bf16.msra.mxu0 %v4641
    %6485 = vmatprep.subr.bf16.mxu0 0
    %6486 = vmatpush2.bf16.msra.mxu0 %v4640
    %6487 = vmatprep.subr.bf16.mxu0 0
    %6488 = vmatpush2.bf16.msra.mxu0 %v4639
    %6489 = vmatprep.subr.bf16.mxu0 0
    %6490 = vmatpush2.bf16.msra.mxu0 %v4638
    %6491 = vmatprep.mubr.bf16.mxu0 %v1652
    %6492 = vmatmul.mubr.bf16.gmra.mxu0 %v1651
    %v6493 = vpop.f32.mrf.mxu0
    %v6494 = vadd.f32 %v6453, %v6493
    %v6495 = vpop.f32.mrf.mxu0
    %v6496 = vpop.f32.mrf.mxu0
    %v6497 = vadd.f32 %v6456, %v6496
    %v6498 = vpop.f32.mrf.mxu0
    %6499 = vdwg.mxu0
    %6500 = vmatprep.subr.bf16.mxu0 0
    %6501 = vmatpush1.bf16.msra.mxu0 %v4653
    %6502 = vmatprep.subr.bf16.mxu0 0
    %6503 = vmatpush1.bf16.msra.mxu0 %v4652
    %6504 = vmatprep.subr.bf16.mxu0 0
    %6505 = vmatpush1.bf16.msra.mxu0 %v4651
    %6506 = vmatprep.subr.bf16.mxu0 0
    %6507 = vmatpush1.bf16.msra.mxu0 %v4650
    %6508 = vmatprep.subr.bf16.mxu0 0
    %6509 = vmatpush1.bf16.msra.mxu0 %v4649
    %6510 = vmatprep.subr.bf16.mxu0 0
    %6511 = vmatpush1.bf16.msra.mxu0 %v4648
    %6512 = vmatprep.subr.bf16.mxu0 0
    %6513 = vmatpush1.bf16.msra.mxu0 %v4647
    %6514 = vmatprep.subr.bf16.mxu0 0
    %6515 = vmatpush1.bf16.msra.mxu0 %v4646
    %6516 = vmatprep.subr.bf16.mxu0 0
    %6517 = vmatpush2.bf16.msra.mxu0 %v4661
    %6518 = vmatprep.subr.bf16.mxu0 0
    %6519 = vmatpush2.bf16.msra.mxu0 %v4660
    %6520 = vmatprep.subr.bf16.mxu0 0
    %6521 = vmatpush2.bf16.msra.mxu0 %v4659
    %6522 = vmatprep.subr.bf16.mxu0 0
    %6523 = vmatpush2.bf16.msra.mxu0 %v4658
    %6524 = vmatprep.subr.bf16.mxu0 0
    %6525 = vmatpush2.bf16.msra.mxu0 %v4657
    %6526 = vmatprep.subr.bf16.mxu0 0
    %6527 = vmatpush2.bf16.msra.mxu0 %v4656
    %6528 = vmatprep.subr.bf16.mxu0 0
    %6529 = vmatpush2.bf16.msra.mxu0 %v4655
    %6530 = vmatprep.subr.bf16.mxu0 0
    %6531 = vmatpush2.bf16.msra.mxu0 %v4654
    %6532 = vmatprep.mubr.bf16.mxu0 %v1654
    %6533 = vmatmul.mubr.bf16.gmra.mxu0 %v1653
    %v6534 = vpop.f32.mrf.mxu0
    %v6535 = vadd.f32 %v6494, %v6534
    %v6536 = vpop.f32.mrf.mxu0
    %v6537 = vpop.f32.mrf.mxu0
    %v6538 = vadd.f32 %v6497, %v6537
    %v6539 = vpop.f32.mrf.mxu0
    %6540 = vdwg.mxu0
    %6541 = vmatprep.subr.bf16.mxu0 0
    %6542 = vmatpush1.bf16.msra.mxu0 %v4669
    %6543 = vmatprep.subr.bf16.mxu0 0
    %6544 = vmatpush1.bf16.msra.mxu0 %v4668
    %6545 = vmatprep.subr.bf16.mxu0 0
    %6546 = vmatpush1.bf16.msra.mxu0 %v4667
    %6547 = vmatprep.subr.bf16.mxu0 0
    %6548 = vmatpush1.bf16.msra.mxu0 %v4666
    %6549 = vmatprep.subr.bf16.mxu0 0
    %6550 = vmatpush1.bf16.msra.mxu0 %v4665
    %6551 = vmatprep.subr.bf16.mxu0 0
    %6552 = vmatpush1.bf16.msra.mxu0 %v4664
    %6553 = vmatprep.subr.bf16.mxu0 0
    %6554 = vmatpush1.bf16.msra.mxu0 %v4663
    %6555 = vmatprep.subr.bf16.mxu0 0
    %6556 = vmatpush1.bf16.msra.mxu0 %v4662
    %6557 = vmatprep.subr.bf16.mxu0 0
    %6558 = vmatpush2.bf16.msra.mxu0 %v4677
    %6559 = vmatprep.subr.bf16.mxu0 0
    %6560 = vmatpush2.bf16.msra.mxu0 %v4676
    %6561 = vmatprep.subr.bf16.mxu0 0
    %6562 = vmatpush2.bf16.msra.mxu0 %v4675
    %6563 = vmatprep.subr.bf16.mxu0 0
    %6564 = vmatpush2.bf16.msra.mxu0 %v4674
    %6565 = vmatprep.subr.bf16.mxu0 0
    %6566 = vmatpush2.bf16.msra.mxu0 %v4673
    %6567 = vmatprep.subr.bf16.mxu0 0
    %6568 = vmatpush2.bf16.msra.mxu0 %v4672
    %6569 = vmatprep.subr.bf16.mxu0 0
    %6570 = vmatpush2.bf16.msra.mxu0 %v4671
    %6571 = vmatprep.subr.bf16.mxu0 0
    %6572 = vmatpush2.bf16.msra.mxu0 %v4670
    %6573 = vmatprep.mubr.bf16.mxu0 %v1656
    %6574 = vmatmul.mubr.bf16.gmra.mxu0 %v1655
    %v6575 = vpop.f32.mrf.mxu0
    %v6576 = vadd.f32 %v6535, %v6575
    %v6577 = vpop.f32.mrf.mxu0
    %v6578 = vpop.f32.mrf.mxu0
    %v6579 = vadd.f32 %v6538, %v6578
    %v6580 = vpop.f32.mrf.mxu0
    %6581 = vdwg.mxu0
    %6582 = vmatprep.subr.bf16.mxu0 0
    %6583 = vmatpush1.bf16.msra.mxu0 %v4685
    %6584 = vmatprep.subr.bf16.mxu0 0
    %6585 = vmatpush1.bf16.msra.mxu0 %v4684
    %6586 = vmatprep.subr.bf16.mxu0 0
    %6587 = vmatpush1.bf16.msra.mxu0 %v4683
    %6588 = vmatprep.subr.bf16.mxu0 0
    %6589 = vmatpush1.bf16.msra.mxu0 %v4682
    %6590 = vmatprep.subr.bf16.mxu0 0
    %6591 = vmatpush1.bf16.msra.mxu0 %v4681
    %6592 = vmatprep.subr.bf16.mxu0 0
    %6593 = vmatpush1.bf16.msra.mxu0 %v4680
    %6594 = vmatprep.subr.bf16.mxu0 0
    %6595 = vmatpush1.bf16.msra.mxu0 %v4679
    %6596 = vmatprep.subr.bf16.mxu0 0
    %6597 = vmatpush1.bf16.msra.mxu0 %v4678
    %6598 = vmatprep.subr.bf16.mxu0 0
    %6599 = vmatpush2.bf16.msra.mxu0 %v4693
    %6600 = vmatprep.subr.bf16.mxu0 0
    %6601 = vmatpush2.bf16.msra.mxu0 %v4692
    %6602 = vmatprep.subr.bf16.mxu0 0
    %6603 = vmatpush2.bf16.msra.mxu0 %v4691
    %6604 = vmatprep.subr.bf16.mxu0 0
    %6605 = vmatpush2.bf16.msra.mxu0 %v4690
    %6606 = vmatprep.subr.bf16.mxu0 0
    %6607 = vmatpush2.bf16.msra.mxu0 %v4689
    %6608 = vmatprep.subr.bf16.mxu0 0
    %6609 = vmatpush2.bf16.msra.mxu0 %v4688
    %6610 = vmatprep.subr.bf16.mxu0 0
    %6611 = vmatpush2.bf16.msra.mxu0 %v4687
    %6612 = vmatprep.subr.bf16.mxu0 0
    %6613 = vmatpush2.bf16.msra.mxu0 %v4686
    %6614 = vmatprep.mubr.bf16.mxu0 %v1658
    %6615 = vmatmul.mubr.bf16.gmra.mxu0 %v1657
    %v6616 = vpop.f32.mrf.mxu0
    %v6617 = vadd.f32 %v6576, %v6616
    %v6618 = vpop.f32.mrf.mxu0
    %v6619 = vpop.f32.mrf.mxu0
    %v6620 = vadd.f32 %v6579, %v6619
    %v6621 = vpop.f32.mrf.mxu0
    %6622 = vdwg.mxu0
    %6623 = vmatprep.subr.bf16.mxu0 0
    %6624 = vmatpush1.bf16.msra.mxu0 %v4701
    %6625 = vmatprep.subr.bf16.mxu0 0
    %6626 = vmatpush1.bf16.msra.mxu0 %v4700
    %6627 = vmatprep.subr.bf16.mxu0 0
    %6628 = vmatpush1.bf16.msra.mxu0 %v4699
    %6629 = vmatprep.subr.bf16.mxu0 0
    %6630 = vmatpush1.bf16.msra.mxu0 %v4698
    %6631 = vmatprep.subr.bf16.mxu0 0
    %6632 = vmatpush1.bf16.msra.mxu0 %v4697
    %6633 = vmatprep.subr.bf16.mxu0 0
    %6634 = vmatpush1.bf16.msra.mxu0 %v4696
    %6635 = vmatprep.subr.bf16.mxu0 0
    %6636 = vmatpush1.bf16.msra.mxu0 %v4695
    %6637 = vmatprep.subr.bf16.mxu0 0
    %6638 = vmatpush1.bf16.msra.mxu0 %v4694
    %6639 = vmatprep.subr.bf16.mxu0 0
    %6640 = vmatpush2.bf16.msra.mxu0 %v4709
    %6641 = vmatprep.subr.bf16.mxu0 0
    %6642 = vmatpush2.bf16.msra.mxu0 %v4708
    %6643 = vmatprep.subr.bf16.mxu0 0
    %6644 = vmatpush2.bf16.msra.mxu0 %v4707
    %6645 = vmatprep.subr.bf16.mxu0 0
    %6646 = vmatpush2.bf16.msra.mxu0 %v4706
    %6647 = vmatprep.subr.bf16.mxu0 0
    %6648 = vmatpush2.bf16.msra.mxu0 %v4705
    %6649 = vmatprep.subr.bf16.mxu0 0
    %6650 = vmatpush2.bf16.msra.mxu0 %v4704
    %6651 = vmatprep.subr.bf16.mxu0 0
    %6652 = vmatpush2.bf16.msra.mxu0 %v4703
    %6653 = vmatprep.subr.bf16.mxu0 0
    %6654 = vmatpush2.bf16.msra.mxu0 %v4702
    %6655 = vmatprep.mubr.bf16.mxu0 %v1660
    %6656 = vmatmul.mubr.bf16.gmra.mxu0 %v1659
    %v6657 = vpop.f32.mrf.mxu0
    %v6658 = vadd.f32 %v6617, %v6657
    %v6659 = vpop.f32.mrf.mxu0
    %v6660 = vpop.f32.mrf.mxu0
    %v6661 = vadd.f32 %v6620, %v6660
    %v6662 = vpop.f32.mrf.mxu0
    %6663 = vdwg.mxu0
    %6664 = vmatprep.subr.bf16.mxu0 0
    %6665 = vmatpush1.bf16.msra.mxu0 %v4717
    %6666 = vmatprep.subr.bf16.mxu0 0
    %6667 = vmatpush1.bf16.msra.mxu0 %v4716
    %6668 = vmatprep.subr.bf16.mxu0 0
    %6669 = vmatpush1.bf16.msra.mxu0 %v4715
    %6670 = vmatprep.subr.bf16.mxu0 0
    %6671 = vmatpush1.bf16.msra.mxu0 %v4714
    %6672 = vmatprep.subr.bf16.mxu0 0
    %6673 = vmatpush1.bf16.msra.mxu0 %v4713
    %6674 = vmatprep.subr.bf16.mxu0 0
    %6675 = vmatpush1.bf16.msra.mxu0 %v4712
    %6676 = vmatprep.subr.bf16.mxu0 0
    %6677 = vmatpush1.bf16.msra.mxu0 %v4711
    %6678 = vmatprep.subr.bf16.mxu0 0
    %6679 = vmatpush1.bf16.msra.mxu0 %v4710
    %6680 = vmatprep.subr.bf16.mxu0 0
    %6681 = vmatpush2.bf16.msra.mxu0 %v4725
    %6682 = vmatprep.subr.bf16.mxu0 0
    %6683 = vmatpush2.bf16.msra.mxu0 %v4724
    %6684 = vmatprep.subr.bf16.mxu0 0
    %6685 = vmatpush2.bf16.msra.mxu0 %v4723
    %6686 = vmatprep.subr.bf16.mxu0 0
    %6687 = vmatpush2.bf16.msra.mxu0 %v4722
    %6688 = vmatprep.subr.bf16.mxu0 0
    %6689 = vmatpush2.bf16.msra.mxu0 %v4721
    %6690 = vmatprep.subr.bf16.mxu0 0
    %6691 = vmatpush2.bf16.msra.mxu0 %v4720
    %6692 = vmatprep.subr.bf16.mxu0 0
    %6693 = vmatpush2.bf16.msra.mxu0 %v4719
    %6694 = vmatprep.subr.bf16.mxu0 0
    %6695 = vmatpush2.bf16.msra.mxu0 %v4718
    %6696 = vmatprep.mubr.bf16.mxu0 %v1662
    %6697 = vmatmul.mubr.bf16.gmra.mxu0 %v1661
    %v6698 = vpop.f32.mrf.mxu0
    %v6699 = vadd.f32 %v6658, %v6698
    %v6700 = vpop.f32.mrf.mxu0
    %v6701 = vpop.f32.mrf.mxu0
    %v6702 = vadd.f32 %v6661, %v6701
    %v6703 = vpop.f32.mrf.mxu0
    %6704 = vdwg.mxu0
    %6705 = vmatprep.subr.bf16.mxu0 0
    %6706 = vmatpush1.bf16.msra.mxu0 %v4733
    %6707 = vmatprep.subr.bf16.mxu0 0
    %6708 = vmatpush1.bf16.msra.mxu0 %v4732
    %6709 = vmatprep.subr.bf16.mxu0 0
    %6710 = vmatpush1.bf16.msra.mxu0 %v4731
    %6711 = vmatprep.subr.bf16.mxu0 0
    %6712 = vmatpush1.bf16.msra.mxu0 %v4730
    %6713 = vmatprep.subr.bf16.mxu0 0
    %6714 = vmatpush1.bf16.msra.mxu0 %v4729
    %6715 = vmatprep.subr.bf16.mxu0 0
    %6716 = vmatpush1.bf16.msra.mxu0 %v4728
    %6717 = vmatprep.subr.bf16.mxu0 0
    %6718 = vmatpush1.bf16.msra.mxu0 %v4727
    %6719 = vmatprep.subr.bf16.mxu0 0
    %6720 = vmatpush1.bf16.msra.mxu0 %v4726
    %6721 = vmatprep.subr.bf16.mxu0 0
    %6722 = vmatpush2.bf16.msra.mxu0 %v4741
    %6723 = vmatprep.subr.bf16.mxu0 0
    %6724 = vmatpush2.bf16.msra.mxu0 %v4740
    %6725 = vmatprep.subr.bf16.mxu0 0
    %6726 = vmatpush2.bf16.msra.mxu0 %v4739
    %6727 = vmatprep.subr.bf16.mxu0 0
    %6728 = vmatpush2.bf16.msra.mxu0 %v4738
    %6729 = vmatprep.subr.bf16.mxu0 0
    %6730 = vmatpush2.bf16.msra.mxu0 %v4737
    %6731 = vmatprep.subr.bf16.mxu0 0
    %6732 = vmatpush2.bf16.msra.mxu0 %v4736
    %6733 = vmatprep.subr.bf16.mxu0 0
    %6734 = vmatpush2.bf16.msra.mxu0 %v4735
    %6735 = vmatprep.subr.bf16.mxu0 0
    %6736 = vmatpush2.bf16.msra.mxu0 %v4734
    %6737 = vmatprep.mubr.bf16.mxu0 %v1664
    %6738 = vmatmul.mubr.bf16.gmra.mxu0 %v1663
    %v6739 = vpop.f32.mrf.mxu0
    %v6740 = vadd.f32 %v6699, %v6739
    %v6741 = vpop.f32.mrf.mxu0
    %v6742 = vpop.f32.mrf.mxu0
    %v6743 = vadd.f32 %v6702, %v6742
    %v6744 = vpop.f32.mrf.mxu0
    %6745 = vdwg.mxu0
    %6746 = vmatprep.subr.bf16.mxu0 0
    %6747 = vmatpush1.bf16.msra.mxu0 %v4749
    %6748 = vmatprep.subr.bf16.mxu0 0
    %6749 = vmatpush1.bf16.msra.mxu0 %v4748
    %6750 = vmatprep.subr.bf16.mxu0 0
    %6751 = vmatpush1.bf16.msra.mxu0 %v4747
    %6752 = vmatprep.subr.bf16.mxu0 0
    %6753 = vmatpush1.bf16.msra.mxu0 %v4746
    %6754 = vmatprep.subr.bf16.mxu0 0
    %6755 = vmatpush1.bf16.msra.mxu0 %v4745
    %6756 = vmatprep.subr.bf16.mxu0 0
    %6757 = vmatpush1.bf16.msra.mxu0 %v4744
    %6758 = vmatprep.subr.bf16.mxu0 0
    %6759 = vmatpush1.bf16.msra.mxu0 %v4743
    %6760 = vmatprep.subr.bf16.mxu0 0
    %6761 = vmatpush1.bf16.msra.mxu0 %v4742
    %6762 = vmatprep.subr.bf16.mxu0 0
    %6763 = vmatpush2.bf16.msra.mxu0 %v4757
    %6764 = vmatprep.subr.bf16.mxu0 0
    %6765 = vmatpush2.bf16.msra.mxu0 %v4756
    %6766 = vmatprep.subr.bf16.mxu0 0
    %6767 = vmatpush2.bf16.msra.mxu0 %v4755
    %6768 = vmatprep.subr.bf16.mxu0 0
    %6769 = vmatpush2.bf16.msra.mxu0 %v4754
    %6770 = vmatprep.subr.bf16.mxu0 0
    %6771 = vmatpush2.bf16.msra.mxu0 %v4753
    %6772 = vmatprep.subr.bf16.mxu0 0
    %6773 = vmatpush2.bf16.msra.mxu0 %v4752
    %6774 = vmatprep.subr.bf16.mxu0 0
    %6775 = vmatpush2.bf16.msra.mxu0 %v4751
    %6776 = vmatprep.subr.bf16.mxu0 0
    %6777 = vmatpush2.bf16.msra.mxu0 %v4750
    %6778 = vmatprep.mubr.bf16.mxu0 %v1666
    %6779 = vmatmul.mubr.bf16.gmra.mxu0 %v1665
    %v6780 = vpop.f32.mrf.mxu0
    %v6781 = vadd.f32 %v6740, %v6780
    %v6782 = vpop.f32.mrf.mxu0
    %v6783 = vpop.f32.mrf.mxu0
    %v6784 = vadd.f32 %v6743, %v6783
    %v6785 = vpop.f32.mrf.mxu0
    %6786 = vdwg.mxu0
    %6787 = vmatprep.subr.bf16.mxu0 0
    %6788 = vmatpush1.bf16.msra.mxu0 %v4765
    %6789 = vmatprep.subr.bf16.mxu0 0
    %6790 = vmatpush1.bf16.msra.mxu0 %v4764
    %6791 = vmatprep.subr.bf16.mxu0 0
    %6792 = vmatpush1.bf16.msra.mxu0 %v4763
    %6793 = vmatprep.subr.bf16.mxu0 0
    %6794 = vmatpush1.bf16.msra.mxu0 %v4762
    %6795 = vmatprep.subr.bf16.mxu0 0
    %6796 = vmatpush1.bf16.msra.mxu0 %v4761
    %6797 = vmatprep.subr.bf16.mxu0 0
    %6798 = vmatpush1.bf16.msra.mxu0 %v4760
    %6799 = vmatprep.subr.bf16.mxu0 0
    %6800 = vmatpush1.bf16.msra.mxu0 %v4759
    %6801 = vmatprep.subr.bf16.mxu0 0
    %6802 = vmatpush1.bf16.msra.mxu0 %v4758
    %6803 = vmatprep.subr.bf16.mxu0 0
    %6804 = vmatpush2.bf16.msra.mxu0 %v4773
    %6805 = vmatprep.subr.bf16.mxu0 0
    %6806 = vmatpush2.bf16.msra.mxu0 %v4772
    %6807 = vmatprep.subr.bf16.mxu0 0
    %6808 = vmatpush2.bf16.msra.mxu0 %v4771
    %6809 = vmatprep.subr.bf16.mxu0 0
    %6810 = vmatpush2.bf16.msra.mxu0 %v4770
    %6811 = vmatprep.subr.bf16.mxu0 0
    %6812 = vmatpush2.bf16.msra.mxu0 %v4769
    %6813 = vmatprep.subr.bf16.mxu0 0
    %6814 = vmatpush2.bf16.msra.mxu0 %v4768
    %6815 = vmatprep.subr.bf16.mxu0 0
    %6816 = vmatpush2.bf16.msra.mxu0 %v4767
    %6817 = vmatprep.subr.bf16.mxu0 0
    %6818 = vmatpush2.bf16.msra.mxu0 %v4766
    %6819 = vmatprep.mubr.bf16.mxu0 %v1668
    %6820 = vmatmul.mubr.bf16.gmra.mxu0 %v1667
    %v6821 = vpop.f32.mrf.mxu0
    %v6822 = vadd.f32 %v6781, %v6821
    %v6823 = vpop.f32.mrf.mxu0
    %v6824 = vpop.f32.mrf.mxu0
    %v6825 = vadd.f32 %v6784, %v6824
    %v6826 = vpop.f32.mrf.mxu0
    %6827 = vdwg.mxu0
    %6828 = vmatprep.subr.bf16.mxu0 0
    %6829 = vmatpush1.bf16.msra.mxu0 %v4781
    %6830 = vmatprep.subr.bf16.mxu0 0
    %6831 = vmatpush1.bf16.msra.mxu0 %v4780
    %6832 = vmatprep.subr.bf16.mxu0 0
    %6833 = vmatpush1.bf16.msra.mxu0 %v4779
    %6834 = vmatprep.subr.bf16.mxu0 0
    %6835 = vmatpush1.bf16.msra.mxu0 %v4778
    %6836 = vmatprep.subr.bf16.mxu0 0
    %6837 = vmatpush1.bf16.msra.mxu0 %v4777
    %6838 = vmatprep.subr.bf16.mxu0 0
    %6839 = vmatpush1.bf16.msra.mxu0 %v4776
    %6840 = vmatprep.subr.bf16.mxu0 0
    %6841 = vmatpush1.bf16.msra.mxu0 %v4775
    %6842 = vmatprep.subr.bf16.mxu0 0
    %6843 = vmatpush1.bf16.msra.mxu0 %v4774
    %6844 = vmatprep.subr.bf16.mxu0 0
    %6845 = vmatpush2.bf16.msra.mxu0 %v4789
    %6846 = vmatprep.subr.bf16.mxu0 0
    %6847 = vmatpush2.bf16.msra.mxu0 %v4788
    %6848 = vmatprep.subr.bf16.mxu0 0
    %6849 = vmatpush2.bf16.msra.mxu0 %v4787
    %6850 = vmatprep.subr.bf16.mxu0 0
    %6851 = vmatpush2.bf16.msra.mxu0 %v4786
    %6852 = vmatprep.subr.bf16.mxu0 0
    %6853 = vmatpush2.bf16.msra.mxu0 %v4785
    %6854 = vmatprep.subr.bf16.mxu0 0
    %6855 = vmatpush2.bf16.msra.mxu0 %v4784
    %6856 = vmatprep.subr.bf16.mxu0 0
    %6857 = vmatpush2.bf16.msra.mxu0 %v4783
    %6858 = vmatprep.subr.bf16.mxu0 0
    %6859 = vmatpush2.bf16.msra.mxu0 %v4782
    %6860 = vmatprep.mubr.bf16.mxu0 %v1670
    %6861 = vmatmul.mubr.bf16.gmra.mxu0 %v1669
    %v6862 = vpop.f32.mrf.mxu0
    %v6863 = vadd.f32 %v6822, %v6862
    %v6864 = vpop.f32.mrf.mxu0
    %v6865 = vpop.f32.mrf.mxu0
    %v6866 = vadd.f32 %v6825, %v6865
    %v6867 = vpop.f32.mrf.mxu0
    %6868 = vdwg.mxu0
    %6869 = vmatprep.subr.bf16.mxu0 0
    %6870 = vmatpush1.bf16.msra.mxu0 %v4797
    %6871 = vmatprep.subr.bf16.mxu0 0
    %6872 = vmatpush1.bf16.msra.mxu0 %v4796
    %6873 = vmatprep.subr.bf16.mxu0 0
    %6874 = vmatpush1.bf16.msra.mxu0 %v4795
    %6875 = vmatprep.subr.bf16.mxu0 0
    %6876 = vmatpush1.bf16.msra.mxu0 %v4794
    %6877 = vmatprep.subr.bf16.mxu0 0
    %6878 = vmatpush1.bf16.msra.mxu0 %v4793
    %6879 = vmatprep.subr.bf16.mxu0 0
    %6880 = vmatpush1.bf16.msra.mxu0 %v4792
    %6881 = vmatprep.subr.bf16.mxu0 0
    %6882 = vmatpush1.bf16.msra.mxu0 %v4791
    %6883 = vmatprep.subr.bf16.mxu0 0
    %6884 = vmatpush1.bf16.msra.mxu0 %v4790
    %6885 = vmatprep.subr.bf16.mxu0 0
    %6886 = vmatpush2.bf16.msra.mxu0 %v4805
    %6887 = vmatprep.subr.bf16.mxu0 0
    %6888 = vmatpush2.bf16.msra.mxu0 %v4804
    %6889 = vmatprep.subr.bf16.mxu0 0
    %6890 = vmatpush2.bf16.msra.mxu0 %v4803
    %6891 = vmatprep.subr.bf16.mxu0 0
    %6892 = vmatpush2.bf16.msra.mxu0 %v4802
    %6893 = vmatprep.subr.bf16.mxu0 0
    %6894 = vmatpush2.bf16.msra.mxu0 %v4801
    %6895 = vmatprep.subr.bf16.mxu0 0
    %6896 = vmatpush2.bf16.msra.mxu0 %v4800
    %6897 = vmatprep.subr.bf16.mxu0 0
    %6898 = vmatpush2.bf16.msra.mxu0 %v4799
    %6899 = vmatprep.subr.bf16.mxu0 0
    %6900 = vmatpush2.bf16.msra.mxu0 %v4798
    %6901 = vmatprep.mubr.bf16.mxu0 %v1672
    %6902 = vmatmul.mubr.bf16.gmra.mxu0 %v1671
    %v6903 = vpop.f32.mrf.mxu0
    %v6904 = vadd.f32 %v6863, %v6903
    %v6905 = vpop.f32.mrf.mxu0
    %v6906 = vpop.f32.mrf.mxu0
    %v6907 = vadd.f32 %v6866, %v6906
    %v6908 = vpop.f32.mrf.mxu0
    %6909 = vdwg.mxu0
    %6910 = vmatprep.subr.bf16.mxu0 0
    %6911 = vmatpush1.bf16.msra.mxu0 %v4813
    %6912 = vmatprep.subr.bf16.mxu0 0
    %6913 = vmatpush1.bf16.msra.mxu0 %v4812
    %6914 = vmatprep.subr.bf16.mxu0 0
    %6915 = vmatpush1.bf16.msra.mxu0 %v4811
    %6916 = vmatprep.subr.bf16.mxu0 0
    %6917 = vmatpush1.bf16.msra.mxu0 %v4810
    %6918 = vmatprep.subr.bf16.mxu0 0
    %6919 = vmatpush1.bf16.msra.mxu0 %v4809
    %6920 = vmatprep.subr.bf16.mxu0 0
    %6921 = vmatpush1.bf16.msra.mxu0 %v4808
    %6922 = vmatprep.subr.bf16.mxu0 0
    %6923 = vmatpush1.bf16.msra.mxu0 %v4807
    %6924 = vmatprep.subr.bf16.mxu0 0
    %6925 = vmatpush1.bf16.msra.mxu0 %v4806
    %6926 = vmatprep.subr.bf16.mxu0 0
    %6927 = vmatpush2.bf16.msra.mxu0 %v4821
    %6928 = vmatprep.subr.bf16.mxu0 0
    %6929 = vmatpush2.bf16.msra.mxu0 %v4820
    %6930 = vmatprep.subr.bf16.mxu0 0
    %6931 = vmatpush2.bf16.msra.mxu0 %v4819
    %6932 = vmatprep.subr.bf16.mxu0 0
    %6933 = vmatpush2.bf16.msra.mxu0 %v4818
    %6934 = vmatprep.subr.bf16.mxu0 0
    %6935 = vmatpush2.bf16.msra.mxu0 %v4817
    %6936 = vmatprep.subr.bf16.mxu0 0
    %6937 = vmatpush2.bf16.msra.mxu0 %v4816
    %6938 = vmatprep.subr.bf16.mxu0 0
    %6939 = vmatpush2.bf16.msra.mxu0 %v4815
    %6940 = vmatprep.subr.bf16.mxu0 0
    %6941 = vmatpush2.bf16.msra.mxu0 %v4814
    %6942 = vmatprep.mubr.bf16.mxu0 %v1674
    %6943 = vmatmul.mubr.bf16.gmra.mxu0 %v1673
    %v6944 = vpop.f32.mrf.mxu0
    %v6945 = vadd.f32 %v6904, %v6944
    %v6946 = vpop.f32.mrf.mxu0
    %v6947 = vpop.f32.mrf.mxu0
    %v6948 = vadd.f32 %v6907, %v6947
    %v6949 = vpop.f32.mrf.mxu0
    %6950 = vdwg.mxu0
    %6951 = vmatprep.subr.bf16.mxu0 0
    %6952 = vmatpush1.bf16.msra.mxu0 %v4829
    %6953 = vmatprep.subr.bf16.mxu0 0
    %6954 = vmatpush1.bf16.msra.mxu0 %v4828
    %6955 = vmatprep.subr.bf16.mxu0 0
    %6956 = vmatpush1.bf16.msra.mxu0 %v4827
    %6957 = vmatprep.subr.bf16.mxu0 0
    %6958 = vmatpush1.bf16.msra.mxu0 %v4826
    %6959 = vmatprep.subr.bf16.mxu0 0
    %6960 = vmatpush1.bf16.msra.mxu0 %v4825
    %6961 = vmatprep.subr.bf16.mxu0 0
    %6962 = vmatpush1.bf16.msra.mxu0 %v4824
    %6963 = vmatprep.subr.bf16.mxu0 0
    %6964 = vmatpush1.bf16.msra.mxu0 %v4823
    %6965 = vmatprep.subr.bf16.mxu0 0
    %6966 = vmatpush1.bf16.msra.mxu0 %v4822
    %6967 = vmatprep.subr.bf16.mxu0 0
    %6968 = vmatpush2.bf16.msra.mxu0 %v4837
    %6969 = vmatprep.subr.bf16.mxu0 0
    %6970 = vmatpush2.bf16.msra.mxu0 %v4836
    %6971 = vmatprep.subr.bf16.mxu0 0
    %6972 = vmatpush2.bf16.msra.mxu0 %v4835
    %6973 = vmatprep.subr.bf16.mxu0 0
    %6974 = vmatpush2.bf16.msra.mxu0 %v4834
    %6975 = vmatprep.subr.bf16.mxu0 0
    %6976 = vmatpush2.bf16.msra.mxu0 %v4833
    %6977 = vmatprep.subr.bf16.mxu0 0
    %6978 = vmatpush2.bf16.msra.mxu0 %v4832
    %6979 = vmatprep.subr.bf16.mxu0 0
    %6980 = vmatpush2.bf16.msra.mxu0 %v4831
    %6981 = vmatprep.subr.bf16.mxu0 0
    %6982 = vmatpush2.bf16.msra.mxu0 %v4830
    %6983 = vmatprep.mubr.bf16.mxu0 %v1676
    %6984 = vmatmul.mubr.bf16.gmra.mxu0 %v1675
    %v6985 = vpop.f32.mrf.mxu0
    %v6986 = vadd.f32 %v6945, %v6985
    %v6987 = vpop.f32.mrf.mxu0
    %v6988 = vpop.f32.mrf.mxu0
    %v6989 = vadd.f32 %v6948, %v6988
    %v6990 = vpop.f32.mrf.mxu0
    %6991 = vdwg.mxu0
    %6992 = vmatprep.subr.bf16.mxu0 0
    %6993 = vmatpush1.bf16.msra.mxu0 %v4845
    %6994 = vmatprep.subr.bf16.mxu0 0
    %6995 = vmatpush1.bf16.msra.mxu0 %v4844
    %6996 = vmatprep.subr.bf16.mxu0 0
    %6997 = vmatpush1.bf16.msra.mxu0 %v4843
    %6998 = vmatprep.subr.bf16.mxu0 0
    %6999 = vmatpush1.bf16.msra.mxu0 %v4842
    %7000 = vmatprep.subr.bf16.mxu0 0
    %7001 = vmatpush1.bf16.msra.mxu0 %v4841
    %7002 = vmatprep.subr.bf16.mxu0 0
    %7003 = vmatpush1.bf16.msra.mxu0 %v4840
    %7004 = vmatprep.subr.bf16.mxu0 0
    %7005 = vmatpush1.bf16.msra.mxu0 %v4839
    %7006 = vmatprep.subr.bf16.mxu0 0
    %7007 = vmatpush1.bf16.msra.mxu0 %v4838
    %7008 = vmatprep.subr.bf16.mxu0 0
    %7009 = vmatpush2.bf16.msra.mxu0 %v4853
    %7010 = vmatprep.subr.bf16.mxu0 0
    %7011 = vmatpush2.bf16.msra.mxu0 %v4852
    %7012 = vmatprep.subr.bf16.mxu0 0
    %7013 = vmatpush2.bf16.msra.mxu0 %v4851
    %7014 = vmatprep.subr.bf16.mxu0 0
    %7015 = vmatpush2.bf16.msra.mxu0 %v4850
    %7016 = vmatprep.subr.bf16.mxu0 0
    %7017 = vmatpush2.bf16.msra.mxu0 %v4849
    %7018 = vmatprep.subr.bf16.mxu0 0
    %7019 = vmatpush2.bf16.msra.mxu0 %v4848
    %7020 = vmatprep.subr.bf16.mxu0 0
    %7021 = vmatpush2.bf16.msra.mxu0 %v4847
    %7022 = vmatprep.subr.bf16.mxu0 0
    %7023 = vmatpush2.bf16.msra.mxu0 %v4846
    %7024 = vmatprep.mubr.bf16.mxu0 %v1678
    %7025 = vmatmul.mubr.bf16.gmra.mxu0 %v1677
    %v7026 = vpop.f32.mrf.mxu0
    %v7027 = vadd.f32 %v6986, %v7026
    %v7028 = vpop.f32.mrf.mxu0
    %v7029 = vpop.f32.mrf.mxu0
    %v7030 = vadd.f32 %v6989, %v7029
    %v7031 = vpop.f32.mrf.mxu0
    %7032 = vdwg.mxu0
    %7033 = vmatprep.subr.bf16.mxu0 0
    %7034 = vmatpush1.bf16.msra.mxu0 %v4861
    %7035 = vmatprep.subr.bf16.mxu0 0
    %7036 = vmatpush1.bf16.msra.mxu0 %v4860
    %7037 = vmatprep.subr.bf16.mxu0 0
    %7038 = vmatpush1.bf16.msra.mxu0 %v4859
    %7039 = vmatprep.subr.bf16.mxu0 0
    %7040 = vmatpush1.bf16.msra.mxu0 %v4858
    %7041 = vmatprep.subr.bf16.mxu0 0
    %7042 = vmatpush1.bf16.msra.mxu0 %v4857
    %7043 = vmatprep.subr.bf16.mxu0 0
    %7044 = vmatpush1.bf16.msra.mxu0 %v4856
    %7045 = vmatprep.subr.bf16.mxu0 0
    %7046 = vmatpush1.bf16.msra.mxu0 %v4855
    %7047 = vmatprep.subr.bf16.mxu0 0
    %7048 = vmatpush1.bf16.msra.mxu0 %v4854
    %7049 = vmatprep.subr.bf16.mxu0 0
    %7050 = vmatpush2.bf16.msra.mxu0 %v4869
    %7051 = vmatprep.subr.bf16.mxu0 0
    %7052 = vmatpush2.bf16.msra.mxu0 %v4868
    %7053 = vmatprep.subr.bf16.mxu0 0
    %7054 = vmatpush2.bf16.msra.mxu0 %v4867
    %7055 = vmatprep.subr.bf16.mxu0 0
    %7056 = vmatpush2.bf16.msra.mxu0 %v4866
    %7057 = vmatprep.subr.bf16.mxu0 0
    %7058 = vmatpush2.bf16.msra.mxu0 %v4865
    %7059 = vmatprep.subr.bf16.mxu0 0
    %7060 = vmatpush2.bf16.msra.mxu0 %v4864
    %7061 = vmatprep.subr.bf16.mxu0 0
    %7062 = vmatpush2.bf16.msra.mxu0 %v4863
    %7063 = vmatprep.subr.bf16.mxu0 0
    %7064 = vmatpush2.bf16.msra.mxu0 %v4862
    %7065 = vmatprep.mubr.bf16.mxu0 %v1680
    %7066 = vmatmul.mubr.bf16.gmra.mxu0 %v1679
    %v7067 = vpop.f32.mrf.mxu0
    %v7068 = vadd.f32 %v7027, %v7067
    %v7069 = vpop.f32.mrf.mxu0
    %v7070 = vpop.f32.mrf.mxu0
    %v7071 = vadd.f32 %v7030, %v7070
    %v7072 = vpop.f32.mrf.mxu0
    %7073 = vdwg.mxu0
    %7074 = vmatprep.subr.bf16.mxu0 0
    %7075 = vmatpush1.bf16.msra.mxu0 %v4877
    %7076 = vmatprep.subr.bf16.mxu0 0
    %7077 = vmatpush1.bf16.msra.mxu0 %v4876
    %7078 = vmatprep.subr.bf16.mxu0 0
    %7079 = vmatpush1.bf16.msra.mxu0 %v4875
    %7080 = vmatprep.subr.bf16.mxu0 0
    %7081 = vmatpush1.bf16.msra.mxu0 %v4874
    %7082 = vmatprep.subr.bf16.mxu0 0
    %7083 = vmatpush1.bf16.msra.mxu0 %v4873
    %7084 = vmatprep.subr.bf16.mxu0 0
    %7085 = vmatpush1.bf16.msra.mxu0 %v4872
    %7086 = vmatprep.subr.bf16.mxu0 0
    %7087 = vmatpush1.bf16.msra.mxu0 %v4871
    %7088 = vmatprep.subr.bf16.mxu0 0
    %7089 = vmatpush1.bf16.msra.mxu0 %v4870
    %7090 = vmatprep.subr.bf16.mxu0 0
    %7091 = vmatpush2.bf16.msra.mxu0 %v4885
    %7092 = vmatprep.subr.bf16.mxu0 0
    %7093 = vmatpush2.bf16.msra.mxu0 %v4884
    %7094 = vmatprep.subr.bf16.mxu0 0
    %7095 = vmatpush2.bf16.msra.mxu0 %v4883
    %7096 = vmatprep.subr.bf16.mxu0 0
    %7097 = vmatpush2.bf16.msra.mxu0 %v4882
    %7098 = vmatprep.subr.bf16.mxu0 0
    %7099 = vmatpush2.bf16.msra.mxu0 %v4881
    %7100 = vmatprep.subr.bf16.mxu0 0
    %7101 = vmatpush2.bf16.msra.mxu0 %v4880
    %7102 = vmatprep.subr.bf16.mxu0 0
    %7103 = vmatpush2.bf16.msra.mxu0 %v4879
    %7104 = vmatprep.subr.bf16.mxu0 0
    %7105 = vmatpush2.bf16.msra.mxu0 %v4878
    %7106 = vmatprep.mubr.bf16.mxu0 %v1682
    %7107 = vmatmul.mubr.bf16.gmra.mxu0 %v1681
    %v7108 = vpop.f32.mrf.mxu0
    %v7109 = vadd.f32 %v7068, %v7108
    %v7110 = vpop.f32.mrf.mxu0
    %v7111 = vpop.f32.mrf.mxu0
    %v7112 = vadd.f32 %v7071, %v7111
    %v7113 = vpop.f32.mrf.mxu0
    %7114 = vdwg.mxu0
    %7115 = vmatprep.subr.bf16.mxu0 0
    %7116 = vmatpush1.bf16.msra.mxu0 0
    %7117 = vmatprep.subr.bf16.mxu0 0
    %7118 = vmatpush1.bf16.msra.mxu0 0
    %7119 = vmatprep.subr.bf16.mxu0 0
    %7120 = vmatpush1.bf16.msra.mxu0 0
    %7121 = vmatprep.subr.bf16.mxu0 0
    %7122 = vmatpush1.bf16.msra.mxu0 0
    %7123 = vmatprep.subr.bf16.mxu0 0
    %7124 = vmatpush1.bf16.msra.mxu0 0
    %7125 = vmatprep.subr.bf16.mxu0 0
    %7126 = vmatpush1.bf16.msra.mxu0 0
    %7127 = vmatprep.subr.bf16.mxu0 0
    %7128 = vmatpush1.bf16.msra.mxu0 0
    %7129 = vmatprep.subr.bf16.mxu0 0
    %7130 = vmatpush1.bf16.msra.mxu0 %v4886
    %7131 = vmatprep.subr.bf16.mxu0 0
    %7132 = vmatpush2.bf16.msra.mxu0 0
    %7133 = vmatprep.subr.bf16.mxu0 0
    %7134 = vmatpush2.bf16.msra.mxu0 0
    %7135 = vmatprep.subr.bf16.mxu0 0
    %7136 = vmatpush2.bf16.msra.mxu0 0
    %7137 = vmatprep.subr.bf16.mxu0 0
    %7138 = vmatpush2.bf16.msra.mxu0 0
    %7139 = vmatprep.subr.bf16.mxu0 0
    %7140 = vmatpush2.bf16.msra.mxu0 0
    %7141 = vmatprep.subr.bf16.mxu0 0
    %7142 = vmatpush2.bf16.msra.mxu0 0
    %7143 = vmatprep.subr.bf16.mxu0 0
    %7144 = vmatpush2.bf16.msra.mxu0 0
    %7145 = vmatprep.subr.bf16.mxu0 0
    %7146 = vmatpush2.bf16.msra.mxu0 0
    %7147 = vmatprep.mubr.bf16.mxu0 0
    %7148 = vmatmul.mubr.bf16.gmra.mxu0 %v5514
    %v7149 = vpop.f32.mrf.mxu0
    %v7150 = vadd.f32 %v7109, %v7149
    %v7151 = vpop.f32.mrf.mxu0
    %v7152 = vpop.f32.mrf.mxu0
    %v7153 = vadd.f32 %v7112, %v7152
    %v7154 = vpop.f32.mrf.mxu0
    %7155 = vdwg.mxu0
    %v7156 = vmax.f32 %v7150, 0.0
    %v7157 = vmax.f32 %v7153, 0.0
    %v7158 = vld [vmem:[%s3] sm:$0xff]
    %v7159 = vld [vmem:[%s3 + $0x8] sm:$0xff]
    %v7160 = vld [vmem:[%s4] sm:$0x1]
    %v7162 = vlaneseq
    %v7163 = vshrl.u32 %v7162, 7
    %v7164 = vsub.s32 0, %v7163
    %v7165 = vrot.slane %v7160, %v7164
    %v7168 = vsel %vm5512, %v7156, 0
    %v7171 = vsel %vm5512, %v7157, 0
    %7173 = vmatprep.subr.mxu0 0.0
    %7174 = vmatpush1.msra.mxu0 0.0
    %7175 = vmatprep.subr.mxu0 0.0
    %7176 = vmatpush1.msra.mxu0 0.0
    %7177 = vmatprep.subr.mxu0 0.0
    %7178 = vmatpush1.msra.mxu0 0.0
    %7179 = vmatprep.subr.mxu0 0.0
    %7180 = vmatpush1.msra.mxu0 0.0
    %7181 = vmatprep.subr.mxu0 0.0
    %7182 = vmatpush1.msra.mxu0 0.0
    %7183 = vmatprep.subr.mxu0 0.0
    %7184 = vmatpush1.msra.mxu0 0.0
    %7185 = vmatprep.subr.mxu0 0.0
    %7186 = vmatpush1.msra.mxu0 0.0
    %7187 = vmatprep.subr.mxu0 0.0
    %7188 = vmatpush1.msra.mxu0 0.0
    %7189 = vmatprep.subr.mxu0 0.0
    %7190 = vmatpush1.msra.mxu0 0.0
    %7191 = vmatprep.subr.mxu0 0.0
    %7192 = vmatpush1.msra.mxu0 0.0
    %7193 = vmatprep.subr.mxu0 0.0
    %7194 = vmatpush1.msra.mxu0 0.0
    %7195 = vmatprep.subr.mxu0 0.0
    %7196 = vmatpush1.msra.mxu0 0.0
    %7197 = vmatprep.subr.mxu0 0.0
    %7198 = vmatpush1.msra.mxu0 0.0
    %7199 = vmatprep.subr.mxu0 0.0
    %7200 = vmatpush1.msra.mxu0 0.0
    %7201 = vmatprep.subr.mxu0 0.0
    %7202 = vmatpush1.msra.mxu0 %v7159
    %7203 = vmatprep.subr.mxu0 0.0
    %7204 = vmatpush1.msra.mxu0 %v7158
    %7205 = vmatprep.subr.mxu0 0.0
    %7206 = vmatpush2.msra.mxu0 0.0
    %7207 = vmatprep.subr.mxu0 0.0
    %7208 = vmatpush2.msra.mxu0 0.0
    %7209 = vmatprep.subr.mxu0 0.0
    %7210 = vmatpush2.msra.mxu0 0.0
    %7211 = vmatprep.subr.mxu0 0.0
    %7212 = vmatpush2.msra.mxu0 0.0
    %7213 = vmatprep.subr.mxu0 0.0
    %7214 = vmatpush2.msra.mxu0 0.0
    %7215 = vmatprep.subr.mxu0 0.0
    %7216 = vmatpush2.msra.mxu0 0.0
    %7217 = vmatprep.subr.mxu0 0.0
    %7218 = vmatpush2.msra.mxu0 0.0
    %7219 = vmatprep.subr.mxu0 0.0
    %7220 = vmatpush2.msra.mxu0 0.0
    %7221 = vmatprep.subr.mxu0 0.0
    %7222 = vmatpush2.msra.mxu0 0.0
    %7223 = vmatprep.subr.mxu0 0.0
    %7224 = vmatpush2.msra.mxu0 0.0
    %7225 = vmatprep.subr.mxu0 0.0
    %7226 = vmatpush2.msra.mxu0 0.0
    %7227 = vmatprep.subr.mxu0 0.0
    %7228 = vmatpush2.msra.mxu0 0.0
    %7229 = vmatprep.subr.mxu0 0.0
    %7230 = vmatpush2.msra.mxu0 0.0
    %7231 = vmatprep.subr.mxu0 0.0
    %7232 = vmatpush2.msra.mxu0 0.0
    %7233 = vmatprep.subr.mxu0 0.0
    %7234 = vmatpush2.msra.mxu0 0.0
    %7235 = vmatprep.subr.mxu0 0.0
    %7236 = vmatpush2.msra.mxu0 0.0
    %7237 = vmatprep.mubr.f32.mxu0 0.0
    %7238 = vmatmul.mubr.f32.gmra.mxu0 %v7168
    %v7239 = vpop.f32.mrf.mxu0
    %v7240 = vadd.f32 %v7165, %v7239
    %v7241 = vpop.f32.mrf.mxu0
    %7242 = vmatprep.mubr.f32.mxu0 0.0
    %7243 = vmatmul.mubr.f32.gmra.mxu0 %v7171
    %v7244 = vpop.f32.mrf.mxu0
    %v7245 = vadd.f32 %v7165, %v7244
    %v7246 = vpop.f32.mrf.mxu0
    %7247 = vdwg.mxu0
    %v7248 = vmax.f32 %v7240, 0.0
    %v7249 = vmax.f32 %v7245, 0.0
    %v7250 = vld [vmem:[%s5] sm:$0x1]
    %v7251 = vld [vmem:[#allocation2] sm:$0x1]
    %7253 = vset.pattern.permute.xlu0 0
    %7254 = vperm.xlu0 %7253, %v7251
    %v7255 = vpop.permute.xlu0 %7254
    %v7257 = vlaneseq
    %v7258 = vshrl.u32 %v7257, 7
    %v7259 = vsub.s32 0, %v7258
    %v7260 = vrot.slane %v7255, %v7259
    %v7262 = vsel %vm5512, %v7250, 0
    %v7265 = vsel %vm5512, %v7248, 0
    %v7268 = vsel %vm5512, %v7249, 0
    %7270 = vmatprep.subr.mxu0 0.0
    %7271 = vmatpush1.xpose.msra.mxu0 0.0
    %7272 = vmatprep.subr.mxu0 0.0
    %7273 = vmatpush1.xpose.msra.mxu0 0.0
    %7274 = vmatprep.subr.mxu0 0.0
    %7275 = vmatpush1.xpose.msra.mxu0 0.0
    %7276 = vmatprep.subr.mxu0 0.0
    %7277 = vmatpush1.xpose.msra.mxu0 0.0
    %7278 = vmatprep.subr.mxu0 0.0
    %7279 = vmatpush1.xpose.msra.mxu0 0.0
    %7280 = vmatprep.subr.mxu0 0.0
    %7281 = vmatpush1.xpose.msra.mxu0 0.0
    %7282 = vmatprep.subr.mxu0 0.0
    %7283 = vmatpush1.xpose.msra.mxu0 0.0
    %7284 = vmatprep.subr.mxu0 0.0
    %7285 = vmatpush1.xpose.msra.mxu0 0.0
    %7286 = vmatprep.subr.mxu0 0.0
    %7287 = vmatpush1.xpose.msra.mxu0 0.0
    %7288 = vmatprep.subr.mxu0 0.0
    %7289 = vmatpush1.xpose.msra.mxu0 0.0
    %7290 = vmatprep.subr.mxu0 0.0
    %7291 = vmatpush1.xpose.msra.mxu0 0.0
    %7292 = vmatprep.subr.mxu0 0.0
    %7293 = vmatpush1.xpose.msra.mxu0 0.0
    %7294 = vmatprep.subr.mxu0 0.0
    %7295 = vmatpush1.xpose.msra.mxu0 0.0
    %7296 = vmatprep.subr.mxu0 0.0
    %7297 = vmatpush1.xpose.msra.mxu0 0.0
    %7298 = vmatprep.subr.mxu0 0.0
    %7299 = vmatpush1.xpose.msra.mxu0 %v7268
    %7300 = vmatprep.subr.mxu0 0.0
    %7301 = vmatpush1.xpose.msra.mxu0 %v7265
    %7302 = vmatprep.subr.mxu0 0.0
    %7303 = vmatpush2.xpose.msra.mxu0 0.0
    %7304 = vmatprep.subr.mxu0 0.0
    %7305 = vmatpush2.xpose.msra.mxu0 0.0
    %7306 = vmatprep.subr.mxu0 0.0
    %7307 = vmatpush2.xpose.msra.mxu0 0.0
    %7308 = vmatprep.subr.mxu0 0.0
    %7309 = vmatpush2.xpose.msra.mxu0 0.0
    %7310 = vmatprep.subr.mxu0 0.0
    %7311 = vmatpush2.xpose.msra.mxu0 0.0
    %7312 = vmatprep.subr.mxu0 0.0
    %7313 = vmatpush2.xpose.msra.mxu0 0.0
    %7314 = vmatprep.subr.mxu0 0.0
    %7315 = vmatpush2.xpose.msra.mxu0 0.0
    %7316 = vmatprep.subr.mxu0 0.0
    %7317 = vmatpush2.xpose.msra.mxu0 0.0
    %7318 = vmatprep.subr.mxu0 0.0
    %7319 = vmatpush2.xpose.msra.mxu0 0.0
    %7320 = vmatprep.subr.mxu0 0.0
    %7321 = vmatpush2.xpose.msra.mxu0 0.0
    %7322 = vmatprep.subr.mxu0 0.0
    %7323 = vmatpush2.xpose.msra.mxu0 0.0
    %7324 = vmatprep.subr.mxu0 0.0
    %7325 = vmatpush2.xpose.msra.mxu0 0.0
    %7326 = vmatprep.subr.mxu0 0.0
    %7327 = vmatpush2.xpose.msra.mxu0 0.0
    %7328 = vmatprep.subr.mxu0 0.0
    %7329 = vmatpush2.xpose.msra.mxu0 0.0
    %7330 = vmatprep.subr.mxu0 0.0
    %7331 = vmatpush2.xpose.msra.mxu0 0.0
    %7332 = vmatprep.subr.mxu0 0.0
    %7333 = vmatpush2.xpose.msra.mxu0 0.0
    %7334 = vmatprep.mubr.f32.mxu0 0.0
    %7335 = vmatmul.mubr.f32.gmra.mxu0 %v7262
    %v7336 = vpop.f32.mrf.mxu0
    %v7337 = vadd.f32 %v7260, %v7336
    %v7338 = vpop.f32.mrf.mxu0
    %7339 = vdwg.mxu0
    %v7340 = vsub.f32 0.0, %v7337
    %v7341 = vmul.f32 %v7340, 1.442695
    %v7342 = vpow.pop %v7341
    %v7343 = vadd.f32 %v7342, 1.0
    %v7344 = vrcp.pop %v7343
    %vm7345 = vcmask 122880
    %7346 = vst.msk [vmem:[#allocation3] sm:$0x1] %vm7345, %v7344
    // Predicated region
    $region30: #{tpu_custom_call.1} parent=1 // pred_check
      _
    $region31: #{tpu_custom_call.1} parent=1 // pred_check_branch
      %7348 = sbr.rel (0) target = $region33
    $region32: #{tpu_custom_call.1} parent=1 // pred_region
      %s7350 = ssub.s32 16, 16
      %7351 = vsyncadd [#allocation4], %s7350
      %s7353 = sshll.u32 [#allocation3], 4
      %s7354 = int_to_ptr.vmem [resolvable:$true] %s7353
      %7356 = dma.vmem_to_hbm [thread:$0]  %s7354, 16, %s7, [#allocation4]
    $region33: #{tpu_custom_call.1} parent=1 // pred_fallthru
      _
    // Predicated region
    $region34: #{tpu_custom_call.1} parent=1 // pred_check
      _
    $region35: #{tpu_custom_call.1} parent=1 // pred_check_branch
      %7358 = sbr.rel (0) target = $region37
    $region36: #{tpu_custom_call.1} parent=1 // pred_region
      %7359 = dma.done [#allocation4], 16
    $region37: #{tpu_custom_call.1} parent=1 // pred_fallthru
      _
    %7360 = vsyncpa [#allocation4], 1

</llo_original>
